<compile_context>
chip_gen: v6e
topology: v6e:2x2x1
jax: 0.10.0
libtpu: 0.0.40
codegen_flags: <defaults>
</compile_context>

<pallas_src>
import numpy as np
import jax
import jax.numpy as jnp
from jax.experimental import pallas as pl
from jax.experimental.pallas import tpu as pltpu


def _make_gru_kernel(ndir, block_t, hidden):
    """Recurrent GRU kernel. One grid step = `block_t` timesteps of one
    (direction, batch-block) pair.

    Refs:
      gi_ref   : (Bb, Tc, 3H) compute-dtype  hoisted x @ W_ih^T (raw, no biases)
      w_ref    : (H, 3H)      compute-dtype  W_hh^T with all three gates fused
      bi_ref   : (1, 3H)      f32            [b_ir+b_hr | b_iz+b_hz | b_in]
      bhn_ref  : (1, H)       f32            b_hn (lives inside r * (.))
      out_ref  : (Bb, Tc, H)  out-dtype      per-step hidden states
      hlast_ref: (Bb, H)      f32            final hidden state
      h_ref    : (Bb, H)      f32            persistent hidden-state scratch
    """
    H = hidden

    def kernel(gi_ref, w_ref, bi_ref, bhn_ref, out_ref, hlast_ref, h_ref):
        t_blk = pl.program_id(2)

        @pl.when(t_blk == 0)
        def _():
            h_ref[...] = jnp.zeros_like(h_ref)

        w = w_ref[...]                              # (H, 3H) compute-dtype
        bi = bi_ref[...].astype(jnp.float32)        # (1, 3H)
        bhn = bhn_ref[...].astype(jnp.float32)      # (1, H)

        def run_chunk(order):
            # Statically unrolled inner time loop: all Ref accesses use static
            # indices -> aligned sublane slices, no dynamic relayouts.
            # TODO(synk): for large block_t, switch to lax.fori_loop over sub-chunks
            # with a small static unroll to bound vreg live ranges / code size.
            h = h_ref[...]                          # (Bb, H) f32 carried as a value
            for i in order:
                hc = h.astype(w.dtype)
                # One fused (Bb,H)@(H,3H) MXU matmul per timestep (f32 accumulate).
                # TODO(synk): at production H (multiple of the MXU tile) hold W_hh
                # resident across the chunk via pltpu.matmul_push_rhs/acc_lhs/pop.
                gh = jnp.dot(hc, w, preferred_element_type=jnp.float32)   # (Bb, 3H)
                s = gi_ref[:, i, :].astype(jnp.float32) + bi              # (Bb, 3H)
                rt = jax.nn.sigmoid(s[:, 0:H] + gh[:, 0:H])
                zt = jax.nn.sigmoid(s[:, H:2 * H] + gh[:, H:2 * H])
                nt = jnp.tanh(s[:, 2 * H:3 * H] + rt * (gh[:, 2 * H:3 * H] + bhn))
                h = (1.0 - zt) * nt + zt * h
                out_ref[:, i, :] = h.astype(out_ref.dtype)
            h_ref[...] = h

        if ndir == 1:
            run_chunk(range(block_t))
        else:
            d = pl.program_id(0)

            @pl.when(d == 0)
            def _():
                run_chunk(range(block_t))                  # forward in-chunk order

            @pl.when(d == 1)
            def _():
                run_chunk(range(block_t - 1, -1, -1))      # backward in-chunk order

        # NOTE: hlast relies on Pallas revisit semantics: its index_map is constant
        # along the sequential ("arbitrary") time axis, so the block stays resident
        # in VMEM across time chunks and is only written (and flushed) on the final
        # chunk.  Do not reorder the grid or change this index_map without revisiting.
        @pl.when(t_blk == pl.num_programs(2) - 1)
        def _():
            hlast_ref[...] = h_ref[...].astype(hlast_ref.dtype)

    return kernel


def _pick_time_block(T, cap=32):
    """Largest time chunk that divides T and is (8,128)-layout-legal."""
    if T <= cap:
        return T
    for c in range(cap, 7, -1):
        if c % 8 == 0 and T % c == 0:
            return c
    # Fallback: one chunk (block == full time dim is always layout-legal).
    # NOTE: fully unrolls T steps -> long compile for large, oddly-sized T;
    # pad T to a multiple of 8 upstream in that case.
    return T


def _gru_pallas(x, params, *, compute_dtype=jnp.bfloat16, out_dtype=None,
                block_t=None, block_b=None):
    """Run ndir=len(params) GRU cells over x:(B,T,D) in one pallas_call.

    Returns (outputs (ndir,B,T,H), h_last (ndir,B,H)); direction 0 is forward,
    direction 1 (if present) processes the sequence back-to-front.
    """
    ndir = len(params)
    assert ndir in (1, 2)
    B, T, D = x.shape
    H = params[0][1].shape[1]
    for (w_ih, w_hh, b_ih, b_hh) in params:
        assert w_ih.shape == (3 * H, D) and w_hh.shape == (3 * H, H)
        assert b_ih.shape == (3 * H,) and b_hh.shape == (3 * H,)

    cd = compute_dtype
    od = out_dtype if out_dtype is not None else cd
    f32 = jnp.float32

    tc = block_t or _pick_time_block(T)
    # Single-TensorCore chips (v5e/v6e): the grid is a serial loop, so keep the
    # whole batch in one block (bigger matmul M, fewer ~0.35us grid steps).
    # On v7x pass block_b = B//2 to let megacore split the batch; for the
    # bidirectional path the direction grid axis already feeds both cores.
    bb = block_b or B
    assert T % tc == 0 and B % bb == 0
    nb, nt = B // bb, T // tc

    # TODO(synk): for production shapes, pad H to a multiple of 128 (per gate) and
    # bb to a multiple of 8 for lane/sublane-dense stores; toy H=32 stays unpadded.

    # ---- Hoisted input projection: one big MXU matmul over all directions ----
    w_ih_s = jnp.stack([p[0] for p in params]).astype(cd)            # (ndir, 3H, D)
    gi = jnp.einsum('btd,ngd->nbtg', x.astype(cd), w_ih_s,
                    preferred_element_type=f32).astype(cd)           # (ndir, B, T, 3H)

    # Recurrent weights, fused across gates: (ndir, H, 3H), compute-dtype.
    w_hh_s = jnp.stack([p[1] for p in params])
    w_cat = jnp.transpose(w_hh_s, (0, 2, 1)).astype(cd)

    # Biases (folded in-kernel as broadcast adds):
    #   r,z gates: b_i* + b_h* are purely additive  -> combined into bi.
    #   n gate:    b_in additive (bi), b_hn sits inside r*(W_hn h + b_hn) -> bhn.
    b_ih_s = jnp.stack([p[2] for p in params]).astype(f32)           # (ndir, 3H)
    b_hh_s = jnp.stack([p[3] for p in params]).astype(f32)
    bi = jnp.concatenate(
        [b_ih_s[:, :2 * H] + b_hh_s[:, :2 * H], b_ih_s[:, 2 * H:]],
        axis=1).reshape(ndir, 1, 3 * H)
    bhn = b_hh_s[:, 2 * H:].reshape(ndir, 1, H)

    # Forward (d=0): chunk t; backward (d=1): chunk nt-1-t.  Pure int arithmetic.
    t_rev = lambda d, t: t + d * (nt - 1 - 2 * t)

    # VMEM budget (double-buffered gi/out tiles + weights + biases + state).
    cd_b = jnp.dtype(cd).itemsize
    od_b = jnp.dtype(od).itemsize
    est = (2 * bb * tc * 3 * H * cd_b            # gi tile, double-buffered
           + 2 * bb * tc * H * od_b              # out tile, double-buffered
           + 2 * H * 3 * H * cd_b                # recurrent weights (<=2 buffers)
           + 2 * 4 * H * 4                       # biases
           + 3 * bb * H * 4)                     # hlast + hidden-state scratch
    vmem_limit = int(min(max(2 * est + (4 << 20), 32 << 20), 64 << 20))

    kernel = _make_gru_kernel(ndir, tc, H)
    out_shape = (jax.ShapeDtypeStruct((ndir, B, T, H), od),
                 jax.ShapeDtypeStruct((ndir, B, H), f32))

    def build(single_buffer_consts):
        # Constant-index operands (weights / biases) do not need double-buffering.
        ck = dict(pipeline_mode=pl.Buffered(1)) if single_buffer_consts else {}
        gi_spec = pl.BlockSpec((None, bb, tc, 3 * H),
                               lambda d, b, t: (d, b, t_rev(d, t), 0))
        w_spec = pl.BlockSpec((None, H, 3 * H), lambda d, b, t: (d, 0, 0), **ck)
        bi_spec = pl.BlockSpec((None, 1, 3 * H), lambda d, b, t: (d, 0, 0), **ck)
        bhn_spec = pl.BlockSpec((None, 1, H), lambda d, b, t: (d, 0, 0), **ck)
        out_spec = pl.BlockSpec((None, bb, tc, H),
                                lambda d, b, t: (d, b, t_rev(d, t), 0))
        hlast_spec = pl.BlockSpec((None, bb, H), lambda d, b, t: (d, b, 0))
        return pl.pallas_call(
            kernel,
            out_shape=out_shape,
            grid_spec=pltpu.PrefetchScalarGridSpec(
                num_scalar_prefetch=0,
                grid=(ndir, nb, nt),
                in_specs=[gi_spec, w_spec, bi_spec, bhn_spec],
                out_specs=[out_spec, hlast_spec],
                scratch_shapes=[pltpu.VMEM((bb, H), f32)],
            ),
            compiler_params=pltpu.CompilerParams(
                # Direction + batch blocks are independent -> "parallel" (v7x megacore
                # splits them); the time recurrence is sequential -> "arbitrary".
                dimension_semantics=("parallel", "parallel", "arbitrary"),
                vmem_limit_bytes=vmem_limit,
            ),
        )

    try:
        out, h_last = build(True)(gi, w_cat, bi, bhn)
    except Exception:
        # pipeline_mode=pl.Buffered(1) unsupported on this jax/libtpu combination:
        # fall back to default double-buffering of the constant operands.
        out, h_last = build(False)(gi, w_cat, bi, bhn)

    return out, h_last


def gru_forward(x, w_ih, w_hh, b_ih, b_hh, **kwargs):
    """GRU2 with bidirectional=False: returns (outputs (B,T,H), h_fw (B,H))."""
    out, h = _gru_pallas(x, [(w_ih, w_hh, b_ih, b_hh)], **kwargs)
    return out[0], h[0]


def gru_forward_bidirectional(x, fw_params, bw_params, **kwargs):
    """GRU2 with bidirectional=True: (concat(out_fw, out_bw), h_fw, h_bw).

    Both directions are fused into ONE pallas_call (direction = leading "parallel"
    grid axis) so a 2-TensorCore chip runs them concurrently.
    """
    out, h = _gru_pallas(x, [tuple(fw_params), tuple(bw_params)], **kwargs)
    return jnp.concatenate([out[0], out[1]], axis=2), h[0], h[1]


def _reference_gru(x, w_ih, w_hh, b_ih, b_hh):
    """Pure-JAX f32 reference mirroring the PyTorch GRUCellV2 loop exactly."""
    B, T, D = x.shape
    H = w_hh.shape[1]
    h = jnp.zeros((H, B), jnp.float32)
    bi = b_ih.reshape(3 * H, 1)
    bh = b_hh.reshape(3 * H, 1)
    outs = []
    for t in range(T):
        xt = x[:, t, :].T                              # (D, B)
        gi = w_ih @ xt                                 # (3H, B)
        gh = w_hh @ h                                  # (3H, B)
        i_r, i_z, i_n = gi[:H], gi[H:2 * H], gi[2 * H:]
        h_r, h_z, h_n = gh[:H], gh[H:2 * H], gh[2 * H:]
        rt = jax.nn.sigmoid(i_r + bi[:H] + h_r + bh[:H])
        zt = jax.nn.sigmoid(i_z + bi[H:2 * H] + h_z + bh[H:2 * H])
        nt = jnp.tanh(i_n + bi[2 * H:] + rt * (h_n + bh[2 * H:]))
        h = (1 - zt) * nt + zt * h
        outs.append(h.T)
    return jnp.stack(outs, axis=1), h.T


if __name__ == "__main__":
    # Small shapes consistent with the module: B=2, T=8, D=16, H=32.
    B, T, D, H = 2, 8, 16, 32

    key = jax.random.PRNGKey(0)
    kx, k1, k2, k3, k4, k5, k6, k7, k8 = jax.random.split(key, 9)
    K = 1.0 / np.sqrt(H)

    def uparam(k, shape):
        return jax.random.uniform(k, shape, jnp.float32, minval=-K, maxval=K)

    # Forward-cell parameters (uniform in [-K, K], matching torch.rand * 2K - K).
    w_ih, w_hh = uparam(k1, (3 * H, D)), uparam(k2, (3 * H, H))
    b_ih, b_hh = uparam(k3, (3 * H,)), uparam(k4, (3 * H,))
    # Backward-cell parameters (for the bidirectional path).
    w_ih_b, w_hh_b = uparam(k5, (3 * H, D)), uparam(k6, (3 * H, H))
    b_ih_b, b_hh_b = uparam(k7, (3 * H,)), uparam(k8, (3 * H,))

    x = jax.random.normal(kx, (B, T, D), jnp.float32)

    ref_out, ref_h = _reference_gru(x, w_ih, w_hh, b_ih, b_hh)

    # 1) Exact-math path (f32 on the MXU, f32 outputs) — tight tolerance.
    out32, h32 = gru_forward(x, w_ih, w_hh, b_ih, b_hh, compute_dtype=jnp.float32)
    out32 = jax.block_until_ready(out32)
    h32 = jax.block_until_ready(h32)
    np.testing.assert_allclose(np.asarray(out32), np.asarray(ref_out), rtol=1e-5, atol=1e-5)
    np.testing.assert_allclose(np.asarray(h32), np.asarray(ref_h), rtol=1e-5, atol=1e-5)

    # 2) Fast path (bf16 gi/weights/outputs, f32 state & accumulation) — looser tolerance.
    out16, h16 = gru_forward(x, w_ih, w_hh, b_ih, b_hh)   # compute_dtype=bfloat16 default
    out16 = jax.block_until_ready(out16)
    h16 = jax.block_until_ready(h16)
    np.testing.assert_allclose(np.asarray(out16.astype(jnp.float32)), np.asarray(ref_out),
                               rtol=5e-2, atol=5e-2)
    np.testing.assert_allclose(np.asarray(h16), np.asarray(ref_h), rtol=5e-2, atol=5e-2)

    # 3) Bidirectional path (single fused pallas_call), exact-math check.
    out_bi, h_fw, h_bw = gru_forward_bidirectional(
        x, (w_ih, w_hh, b_ih, b_hh), (w_ih_b, w_hh_b, b_ih_b, b_hh_b),
        compute_dtype=jnp.float32)
    out_bi = jax.block_until_ready(out_bi)
    ref_bw_rev, ref_hbw = _reference_gru(x[:, ::-1, :], w_ih_b, w_hh_b, b_ih_b, b_hh_b)
    ref_bi = jnp.concatenate([ref_out, ref_bw_rev[:, ::-1, :]], axis=2)
    np.testing.assert_allclose(np.asarray(out_bi), np.asarray(ref_bi), rtol=1e-5, atol=1e-5)
    np.testing.assert_allclose(np.asarray(h_fw), np.asarray(ref_h), rtol=1e-5, atol=1e-5)
    np.testing.assert_allclose(np.asarray(h_bw), np.asarray(ref_hbw), rtol=1e-5, atol=1e-5)

    assert out32.shape == (B, T, H) and h32.shape == (B, H)
    assert out_bi.shape == (B, T, 2 * H)
    print("KERNEL_OK")
</pallas_src>

<mosaic_0001>
module attributes {stable_mosaic.version = 11 : i64} {
  func.func @kernel(%arg0: i32, %arg1: i32, %arg2: i32, %arg3: memref<1x2x8x96xf32, #tpu.memory_space<vmem>>, %arg4: memref<1x32x96xf32, #tpu.memory_space<vmem>>, %arg5: memref<1x1x96xf32, #tpu.memory_space<vmem>>, %arg6: memref<1x1x32xf32, #tpu.memory_space<vmem>>, %arg7: memref<1x2x8x32xf32, #tpu.memory_space<vmem>>, %arg8: memref<1x2x32xf32, #tpu.memory_space<vmem>>, %arg9: memref<2x32xf32, #tpu.memory_space<vmem>>) attributes {dimension_semantics = [#tpu.dimension_semantics<parallel>, #tpu.dimension_semantics<parallel>, #tpu.dimension_semantics<arbitrary>], iteration_bounds = array<i64: 1, 1, 1>, scalar_prefetch = 0 : i64, scratch_operands = 1 : i64, tpu.core_type = #tpu.core_type<tc>, window_params = [{transform_indices = @transform_0, window_bounds = array<i64: 1, 2, 8, 96>}, {pipeline_mode = #tpu.pipeline_mode<synchronous>, transform_indices = @transform_1, window_bounds = array<i64: 1, 32, 96>}, {pipeline_mode = #tpu.pipeline_mode<synchronous>, transform_indices = @transform_2, window_bounds = array<i64: 1, 1, 96>}, {pipeline_mode = #tpu.pipeline_mode<synchronous>, transform_indices = @transform_3, window_bounds = array<i64: 1, 1, 32>}, {transform_indices = @transform_4, window_bounds = array<i64: 1, 2, 8, 32>}, {transform_indices = @transform_5, window_bounds = array<i64: 1, 2, 32>}]} {
    %c0_i32 = arith.constant 0 : i32
    %0 = arith.cmpi eq, %arg2, %c0_i32 : i32
    %1 = arith.extui %0 : i1 to i32
    %c0_i32_0 = arith.constant 0 : i32
    %2 = arith.cmpi ne, %1, %c0_i32_0 : i32
    scf.if %2 {
      %cst_103 = arith.constant 0.000000e+00 : f32
      %302 = vector.broadcast %cst_103 : f32 to vector<2x32xf32>
      %c0_104 = arith.constant 0 : index
      %c0_105 = arith.constant 0 : index
      %303 = vector.load %arg9[%c0_104, %c0_105] : memref<2x32xf32, #tpu.memory_space<vmem>>, vector<2x32xf32>
      tpu.vector_store %arg9[%c0_104, %c0_105], %302 {strides = array<i32>} : memref<2x32xf32, #tpu.memory_space<vmem>>, vector<2x32xf32>,
    } else {
    }
    %c0 = arith.constant 0 : index
    %c0_1 = arith.constant 0 : index
    %c0_2 = arith.constant 0 : index
    %3 = vector.load %arg4[%c0, %c0_1, %c0_2] : memref<1x32x96xf32, #tpu.memory_space<vmem>>, vector<1x32x96xf32>
    %4 = vector.shape_cast %3 : vector<1x32x96xf32> to vector<32x96xf32>
    %c0_3 = arith.constant 0 : index
    %c0_4 = arith.constant 0 : index
    %c0_5 = arith.constant 0 : index
    %5 = vector.load %arg5[%c0_3, %c0_4, %c0_5] : memref<1x1x96xf32, #tpu.memory_space<vmem>>, vector<1x1x96xf32>
    %6 = vector.shape_cast %5 : vector<1x1x96xf32> to vector<1x96xf32>
    %c0_6 = arith.constant 0 : index
    %c0_7 = arith.constant 0 : index
    %c0_8 = arith.constant 0 : index
    %7 = vector.load %arg6[%c0_6, %c0_7, %c0_8] : memref<1x1x32xf32, #tpu.memory_space<vmem>>, vector<1x1x32xf32>
    %8 = vector.shape_cast %7 : vector<1x1x32xf32> to vector<1x32xf32>
    %c0_9 = arith.constant 0 : index
    %c0_10 = arith.constant 0 : index
    %9 = vector.load %arg9[%c0_9, %c0_10] : memref<2x32xf32, #tpu.memory_space<vmem>>, vector<2x32xf32>
    %cst = arith.constant dense<0.000000e+00> : vector<2x96xf32>
    %10 = tpu.matmul %9, %4, %cst {dimension_numbers = #tpu.dot_dimension_numbers<[1], [0], [0], [1], [0, 0, 1, 1], [], []>} : vector<2x32xf32>, vector<32x96xf32>, vector<2x96xf32> -> vector<2x96xf32>
    %c0_11 = arith.constant 0 : index
    %c0_12 = arith.constant 0 : index
    %c0_13 = arith.constant 0 : index
    %c0_14 = arith.constant 0 : index
    %11 = vector.load %arg3[%c0_11, %c0_12, %c0_13, %c0_14] : memref<1x2x8x96xf32, #tpu.memory_space<vmem>>, vector<1x2x1x96xf32>
    %12 = vector.shape_cast %11 : vector<1x2x1x96xf32> to vector<2x96xf32>
    %13 = vector.broadcast %6 : vector<1x96xf32> to vector<2x96xf32>
    %14 = arith.addf %12, %13 : vector<2x96xf32>
    %15 = vector.extract_strided_slice %14 {offsets = [0, 0], sizes = [2, 32], strides = [1, 1]} : vector<2x96xf32> to vector<2x32xf32>
    %16 = vector.extract_strided_slice %10 {offsets = [0, 0], sizes = [2, 32], strides = [1, 1]} : vector<2x96xf32> to vector<2x32xf32>
    %17 = arith.addf %15, %16 : vector<2x32xf32>
    %18 = arith.negf %17 : vector<2x32xf32>
    %19 = math.exp %18 : vector<2x32xf32>
    %cst_15 = arith.constant 1.000000e+00 : f32
    %20 = vector.broadcast %cst_15 : f32 to vector<2x32xf32>
    %21 = arith.addf %20, %19 : vector<2x32xf32>
    %22 = arith.divf %20, %21 : vector<2x32xf32>
    %23 = vector.extract_strided_slice %14 {offsets = [0, 32], sizes = [2, 32], strides = [1, 1]} : vector<2x96xf32> to vector<2x32xf32>
    %24 = vector.extract_strided_slice %10 {offsets = [0, 32], sizes = [2, 32], strides = [1, 1]} : vector<2x96xf32> to vector<2x32xf32>
    %25 = arith.addf %23, %24 : vector<2x32xf32>
    %26 = arith.negf %25 : vector<2x32xf32>
    %27 = math.exp %26 : vector<2x32xf32>
    %cst_16 = arith.constant 1.000000e+00 : f32
    %28 = vector.broadcast %cst_16 : f32 to vector<2x32xf32>
    %29 = arith.addf %28, %27 : vector<2x32xf32>
    %30 = arith.divf %28, %29 : vector<2x32xf32>
    %31 = vector.extract_strided_slice %14 {offsets = [0, 64], sizes = [2, 32], strides = [1, 1]} : vector<2x96xf32> to vector<2x32xf32>
    %32 = vector.extract_strided_slice %10 {offsets = [0, 64], sizes = [2, 32], strides = [1, 1]} : vector<2x96xf32> to vector<2x32xf32>
    %33 = vector.broadcast %8 : vector<1x32xf32> to vector<2x32xf32>
    %34 = arith.addf %32, %33 : vector<2x32xf32>
    %35 = arith.mulf %22, %34 : vector<2x32xf32>
    %36 = arith.addf %31, %35 : vector<2x32xf32>
    %37 = math.tanh %36 : vector<2x32xf32>
    %cst_17 = arith.constant 1.000000e+00 : f32
    %38 = vector.broadcast %cst_17 : f32 to vector<2x32xf32>
    %39 = arith.subf %38, %30 : vector<2x32xf32>
    %40 = arith.mulf %39, %37 : vector<2x32xf32>
    %41 = arith.mulf %30, %9 : vector<2x32xf32>
    %42 = arith.addf %40, %41 : vector<2x32xf32>
    %c0_18 = arith.constant 0 : index
    %c0_19 = arith.constant 0 : index
    %c0_20 = arith.constant 0 : index
    %c0_21 = arith.constant 0 : index
    %43 = vector.load %arg7[%c0_18, %c0_19, %c0_20, %c0_21] : memref<1x2x8x32xf32, #tpu.memory_space<vmem>>, vector<1x2x1x32xf32>
    %44 = vector.shape_cast %43 : vector<1x2x1x32xf32> to vector<2x32xf32>
    %45 = vector.shape_cast %42 : vector<2x32xf32> to vector<1x2x1x32xf32>
    tpu.vector_store %arg7[%c0_18, %c0_19, %c0_20, %c0_21], %45 {strides = array<i32>} : memref<1x2x8x32xf32, #tpu.memory_space<vmem>>, vector<1x2x1x32xf32>,
    %cst_22 = arith.constant dense<0.000000e+00> : vector<2x96xf32>
    %46 = tpu.matmul %42, %4, %cst_22 {dimension_numbers = #tpu.dot_dimension_numbers<[1], [0], [0], [1], [0, 0, 1, 1], [], []>} : vector<2x32xf32>, vector<32x96xf32>, vector<2x96xf32> -> vector<2x96xf32>
    %c0_23 = arith.constant 0 : index
    %c0_24 = arith.constant 0 : index
    %c1 = arith.constant 1 : index
    %c0_25 = arith.constant 0 : index
    %47 = vector.load %arg3[%c0_23, %c0_24, %c1, %c0_25] : memref<1x2x8x96xf32, #tpu.memory_space<vmem>>, vector<1x2x1x96xf32>
    %48 = vector.shape_cast %47 : vector<1x2x1x96xf32> to vector<2x96xf32>
    %49 = vector.broadcast %6 : vector<1x96xf32> to vector<2x96xf32>
    %50 = arith.addf %48, %49 : vector<2x96xf32>
    %51 = vector.extract_strided_slice %50 {offsets = [0, 0], sizes = [2, 32], strides = [1, 1]} : vector<2x96xf32> to vector<2x32xf32>
    %52 = vector.extract_strided_slice %46 {offsets = [0, 0], sizes = [2, 32], strides = [1, 1]} : vector<2x96xf32> to vector<2x32xf32>
    %53 = arith.addf %51, %52 : vector<2x32xf32>
    %54 = arith.negf %53 : vector<2x32xf32>
    %55 = math.exp %54 : vector<2x32xf32>
    %cst_26 = arith.constant 1.000000e+00 : f32
    %56 = vector.broadcast %cst_26 : f32 to vector<2x32xf32>
    %57 = arith.addf %56, %55 : vector<2x32xf32>
    %58 = arith.divf %56, %57 : vector<2x32xf32>
    %59 = vector.extract_strided_slice %50 {offsets = [0, 32], sizes = [2, 32], strides = [1, 1]} : vector<2x96xf32> to vector<2x32xf32>
    %60 = vector.extract_strided_slice %46 {offsets = [0, 32], sizes = [2, 32], strides = [1, 1]} : vector<2x96xf32> to vector<2x32xf32>
    %61 = arith.addf %59, %60 : vector<2x32xf32>
    %62 = arith.negf %61 : vector<2x32xf32>
    %63 = math.exp %62 : vector<2x32xf32>
    %cst_27 = arith.constant 1.000000e+00 : f32
    %64 = vector.broadcast %cst_27 : f32 to vector<2x32xf32>
    %65 = arith.addf %64, %63 : vector<2x32xf32>
    %66 = arith.divf %64, %65 : vector<2x32xf32>
    %67 = vector.extract_strided_slice %50 {offsets = [0, 64], sizes = [2, 32], strides = [1, 1]} : vector<2x96xf32> to vector<2x32xf32>
    %68 = vector.extract_strided_slice %46 {offsets = [0, 64], sizes = [2, 32], strides = [1, 1]} : vector<2x96xf32> to vector<2x32xf32>
    %69 = vector.broadcast %8 : vector<1x32xf32> to vector<2x32xf32>
    %70 = arith.addf %68, %69 : vector<2x32xf32>
    %71 = arith.mulf %58, %70 : vector<2x32xf32>
    %72 = arith.addf %67, %71 : vector<2x32xf32>
    %73 = math.tanh %72 : vector<2x32xf32>
    %cst_28 = arith.constant 1.000000e+00 : f32
    %74 = vector.broadcast %cst_28 : f32 to vector<2x32xf32>
    %75 = arith.subf %74, %66 : vector<2x32xf32>
    %76 = arith.mulf %75, %73 : vector<2x32xf32>
    %77 = arith.mulf %66, %42 : vector<2x32xf32>
    %78 = arith.addf %76, %77 : vector<2x32xf32>
    %c0_29 = arith.constant 0 : index
    %c0_30 = arith.constant 0 : index
    %c1_31 = arith.constant 1 : index
    %c0_32 = arith.constant 0 : index
    %79 = vector.load %arg7[%c0_29, %c0_30, %c1_31, %c0_32] : memref<1x2x8x32xf32, #tpu.memory_space<vmem>>, vector<1x2x1x32xf32>
    %80 = vector.shape_cast %79 : vector<1x2x1x32xf32> to vector<2x32xf32>
    %81 = vector.shape_cast %78 : vector<2x32xf32> to vector<1x2x1x32xf32>
    tpu.vector_store %arg7[%c0_29, %c0_30, %c1_31, %c0_32], %81 {strides = array<i32>} : memref<1x2x8x32xf32, #tpu.memory_space<vmem>>, vector<1x2x1x32xf32>,
    %cst_33 = arith.constant dense<0.000000e+00> : vector<2x96xf32>
    %82 = tpu.matmul %78, %4, %cst_33 {dimension_numbers = #tpu.dot_dimension_numbers<[1], [0], [0], [1], [0, 0, 1, 1], [], []>} : vector<2x32xf32>, vector<32x96xf32>, vector<2x96xf32> -> vector<2x96xf32>
    %c0_34 = arith.constant 0 : index
    %c0_35 = arith.constant 0 : index
    %c2 = arith.constant 2 : index
    %c0_36 = arith.constant 0 : index
    %83 = vector.load %arg3[%c0_34, %c0_35, %c2, %c0_36] : memref<1x2x8x96xf32, #tpu.memory_space<vmem>>, vector<1x2x1x96xf32>
    %84 = vector.shape_cast %83 : vector<1x2x1x96xf32> to vector<2x96xf32>
    %85 = vector.broadcast %6 : vector<1x96xf32> to vector<2x96xf32>
    %86 = arith.addf %84, %85 : vector<2x96xf32>
    %87 = vector.extract_strided_slice %86 {offsets = [0, 0], sizes = [2, 32], strides = [1, 1]} : vector<2x96xf32> to vector<2x32xf32>
    %88 = vector.extract_strided_slice %82 {offsets = [0, 0], sizes = [2, 32], strides = [1, 1]} : vector<2x96xf32> to vector<2x32xf32>
    %89 = arith.addf %87, %88 : vector<2x32xf32>
    %90 = arith.negf %89 : vector<2x32xf32>
    %91 = math.exp %90 : vector<2x32xf32>
    %cst_37 = arith.constant 1.000000e+00 : f32
    %92 = vector.broadcast %cst_37 : f32 to vector<2x32xf32>
    %93 = arith.addf %92, %91 : vector<2x32xf32>
    %94 = arith.divf %92, %93 : vector<2x32xf32>
    %95 = vector.extract_strided_slice %86 {offsets = [0, 32], sizes = [2, 32], strides = [1, 1]} : vector<2x96xf32> to vector<2x32xf32>
    %96 = vector.extract_strided_slice %82 {offsets = [0, 32], sizes = [2, 32], strides = [1, 1]} : vector<2x96xf32> to vector<2x32xf32>
    %97 = arith.addf %95, %96 : vector<2x32xf32>
    %98 = arith.negf %97 : vector<2x32xf32>
    %99 = math.exp %98 : vector<2x32xf32>
    %cst_38 = arith.constant 1.000000e+00 : f32
    %100 = vector.broadcast %cst_38 : f32 to vector<2x32xf32>
    %101 = arith.addf %100, %99 : vector<2x32xf32>
    %102 = arith.divf %100, %101 : vector<2x32xf32>
    %103 = vector.extract_strided_slice %86 {offsets = [0, 64], sizes = [2, 32], strides = [1, 1]} : vector<2x96xf32> to vector<2x32xf32>
    %104 = vector.extract_strided_slice %82 {offsets = [0, 64], sizes = [2, 32], strides = [1, 1]} : vector<2x96xf32> to vector<2x32xf32>
    %105 = vector.broadcast %8 : vector<1x32xf32> to vector<2x32xf32>
    %106 = arith.addf %104, %105 : vector<2x32xf32>
    %107 = arith.mulf %94, %106 : vector<2x32xf32>
    %108 = arith.addf %103, %107 : vector<2x32xf32>
    %109 = math.tanh %108 : vector<2x32xf32>
    %cst_39 = arith.constant 1.000000e+00 : f32
    %110 = vector.broadcast %cst_39 : f32 to vector<2x32xf32>
    %111 = arith.subf %110, %102 : vector<2x32xf32>
    %112 = arith.mulf %111, %109 : vector<2x32xf32>
    %113 = arith.mulf %102, %78 : vector<2x32xf32>
    %114 = arith.addf %112, %113 : vector<2x32xf32>
    %c0_40 = arith.constant 0 : index
    %c0_41 = arith.constant 0 : index
    %c2_42 = arith.constant 2 : index
    %c0_43 = arith.constant 0 : index
    %115 = vector.load %arg7[%c0_40, %c0_41, %c2_42, %c0_43] : memref<1x2x8x32xf32, #tpu.memory_space<vmem>>, vector<1x2x1x32xf32>
    %116 = vector.shape_cast %115 : vector<1x2x1x32xf32> to vector<2x32xf32>
    %117 = vector.shape_cast %114 : vector<2x32xf32> to vector<1x2x1x32xf32>
    tpu.vector_store %arg7[%c0_40, %c0_41, %c2_42, %c0_43], %117 {strides = array<i32>} : memref<1x2x8x32xf32, #tpu.memory_space<vmem>>, vector<1x2x1x32xf32>,
    %cst_44 = arith.constant dense<0.000000e+00> : vector<2x96xf32>
    %118 = tpu.matmul %114, %4, %cst_44 {dimension_numbers = #tpu.dot_dimension_numbers<[1], [0], [0], [1], [0, 0, 1, 1], [], []>} : vector<2x32xf32>, vector<32x96xf32>, vector<2x96xf32> -> vector<2x96xf32>
    %c0_45 = arith.constant 0 : index
    %c0_46 = arith.constant 0 : index
    %c3 = arith.constant 3 : index
    %c0_47 = arith.constant 0 : index
    %119 = vector.load %arg3[%c0_45, %c0_46, %c3, %c0_47] : memref<1x2x8x96xf32, #tpu.memory_space<vmem>>, vector<1x2x1x96xf32>
    %120 = vector.shape_cast %119 : vector<1x2x1x96xf32> to vector<2x96xf32>
    %121 = vector.broadcast %6 : vector<1x96xf32> to vector<2x96xf32>
    %122 = arith.addf %120, %121 : vector<2x96xf32>
    %123 = vector.extract_strided_slice %122 {offsets = [0, 0], sizes = [2, 32], strides = [1, 1]} : vector<2x96xf32> to vector<2x32xf32>
    %124 = vector.extract_strided_slice %118 {offsets = [0, 0], sizes = [2, 32], strides = [1, 1]} : vector<2x96xf32> to vector<2x32xf32>
    %125 = arith.addf %123, %124 : vector<2x32xf32>
    %126 = arith.negf %125 : vector<2x32xf32>
    %127 = math.exp %126 : vector<2x32xf32>
    %cst_48 = arith.constant 1.000000e+00 : f32
    %128 = vector.broadcast %cst_48 : f32 to vector<2x32xf32>
    %129 = arith.addf %128, %127 : vector<2x32xf32>
    %130 = arith.divf %128, %129 : vector<2x32xf32>
    %131 = vector.extract_strided_slice %122 {offsets = [0, 32], sizes = [2, 32], strides = [1, 1]} : vector<2x96xf32> to vector<2x32xf32>
    %132 = vector.extract_strided_slice %118 {offsets = [0, 32], sizes = [2, 32], strides = [1, 1]} : vector<2x96xf32> to vector<2x32xf32>
    %133 = arith.addf %131, %132 : vector<2x32xf32>
    %134 = arith.negf %133 : vector<2x32xf32>
    %135 = math.exp %134 : vector<2x32xf32>
    %cst_49 = arith.constant 1.000000e+00 : f32
    %136 = vector.broadcast %cst_49 : f32 to vector<2x32xf32>
    %137 = arith.addf %136, %135 : vector<2x32xf32>
    %138 = arith.divf %136, %137 : vector<2x32xf32>
    %139 = vector.extract_strided_slice %122 {offsets = [0, 64], sizes = [2, 32], strides = [1, 1]} : vector<2x96xf32> to vector<2x32xf32>
    %140 = vector.extract_strided_slice %118 {offsets = [0, 64], sizes = [2, 32], strides = [1, 1]} : vector<2x96xf32> to vector<2x32xf32>
    %141 = vector.broadcast %8 : vector<1x32xf32> to vector<2x32xf32>
    %142 = arith.addf %140, %141 : vector<2x32xf32>
    %143 = arith.mulf %130, %142 : vector<2x32xf32>
    %144 = arith.addf %139, %143 : vector<2x32xf32>
    %145 = math.tanh %144 : vector<2x32xf32>
    %cst_50 = arith.constant 1.000000e+00 : f32
    %146 = vector.broadcast %cst_50 : f32 to vector<2x32xf32>
    %147 = arith.subf %146, %138 : vector<2x32xf32>
    %148 = arith.mulf %147, %145 : vector<2x32xf32>
    %149 = arith.mulf %138, %114 : vector<2x32xf32>
    %150 = arith.addf %148, %149 : vector<2x32xf32>
    %c0_51 = arith.constant 0 : index
    %c0_52 = arith.constant 0 : index
    %c3_53 = arith.constant 3 : index
    %c0_54 = arith.constant 0 : index
    %151 = vector.load %arg7[%c0_51, %c0_52, %c3_53, %c0_54] : memref<1x2x8x32xf32, #tpu.memory_space<vmem>>, vector<1x2x1x32xf32>
    %152 = vector.shape_cast %151 : vector<1x2x1x32xf32> to vector<2x32xf32>
    %153 = vector.shape_cast %150 : vector<2x32xf32> to vector<1x2x1x32xf32>
    tpu.vector_store %arg7[%c0_51, %c0_52, %c3_53, %c0_54], %153 {strides = array<i32>} : memref<1x2x8x32xf32, #tpu.memory_space<vmem>>, vector<1x2x1x32xf32>,
    %cst_55 = arith.constant dense<0.000000e+00> : vector<2x96xf32>
    %154 = tpu.matmul %150, %4, %cst_55 {dimension_numbers = #tpu.dot_dimension_numbers<[1], [0], [0], [1], [0, 0, 1, 1], [], []>} : vector<2x32xf32>, vector<32x96xf32>, vector<2x96xf32> -> vector<2x96xf32>
    %c0_56 = arith.constant 0 : index
    %c0_57 = arith.constant 0 : index
    %c4 = arith.constant 4 : index
    %c0_58 = arith.constant 0 : index
    %155 = vector.load %arg3[%c0_56, %c0_57, %c4, %c0_58] : memref<1x2x8x96xf32, #tpu.memory_space<vmem>>, vector<1x2x1x96xf32>
    %156 = vector.shape_cast %155 : vector<1x2x1x96xf32> to vector<2x96xf32>
    %157 = vector.broadcast %6 : vector<1x96xf32> to vector<2x96xf32>
    %158 = arith.addf %156, %157 : vector<2x96xf32>
    %159 = vector.extract_strided_slice %158 {offsets = [0, 0], sizes = [2, 32], strides = [1, 1]} : vector<2x96xf32> to vector<2x32xf32>
    %160 = vector.extract_strided_slice %154 {offsets = [0, 0], sizes = [2, 32], strides = [1, 1]} : vector<2x96xf32> to vector<2x32xf32>
    %161 = arith.addf %159, %160 : vector<2x32xf32>
    %162 = arith.negf %161 : vector<2x32xf32>
    %163 = math.exp %162 : vector<2x32xf32>
    %cst_59 = arith.constant 1.000000e+00 : f32
    %164 = vector.broadcast %cst_59 : f32 to vector<2x32xf32>
    %165 = arith.addf %164, %163 : vector<2x32xf32>
    %166 = arith.divf %164, %165 : vector<2x32xf32>
    %167 = vector.extract_strided_slice %158 {offsets = [0, 32], sizes = [2, 32], strides = [1, 1]} : vector<2x96xf32> to vector<2x32xf32>
    %168 = vector.extract_strided_slice %154 {offsets = [0, 32], sizes = [2, 32], strides = [1, 1]} : vector<2x96xf32> to vector<2x32xf32>
    %169 = arith.addf %167, %168 : vector<2x32xf32>
    %170 = arith.negf %169 : vector<2x32xf32>
    %171 = math.exp %170 : vector<2x32xf32>
    %cst_60 = arith.constant 1.000000e+00 : f32
    %172 = vector.broadcast %cst_60 : f32 to vector<2x32xf32>
    %173 = arith.addf %172, %171 : vector<2x32xf32>
    %174 = arith.divf %172, %173 : vector<2x32xf32>
    %175 = vector.extract_strided_slice %158 {offsets = [0, 64], sizes = [2, 32], strides = [1, 1]} : vector<2x96xf32> to vector<2x32xf32>
    %176 = vector.extract_strided_slice %154 {offsets = [0, 64], sizes = [2, 32], strides = [1, 1]} : vector<2x96xf32> to vector<2x32xf32>
    %177 = vector.broadcast %8 : vector<1x32xf32> to vector<2x32xf32>
    %178 = arith.addf %176, %177 : vector<2x32xf32>
    %179 = arith.mulf %166, %178 : vector<2x32xf32>
    %180 = arith.addf %175, %179 : vector<2x32xf32>
    %181 = math.tanh %180 : vector<2x32xf32>
    %cst_61 = arith.constant 1.000000e+00 : f32
    %182 = vector.broadcast %cst_61 : f32 to vector<2x32xf32>
    %183 = arith.subf %182, %174 : vector<2x32xf32>
    %184 = arith.mulf %183, %181 : vector<2x32xf32>
    %185 = arith.mulf %174, %150 : vector<2x32xf32>
    %186 = arith.addf %184, %185 : vector<2x32xf32>
    %c0_62 = arith.constant 0 : index
    %c0_63 = arith.constant 0 : index
    %c4_64 = arith.constant 4 : index
    %c0_65 = arith.constant 0 : index
    %187 = vector.load %arg7[%c0_62, %c0_63, %c4_64, %c0_65] : memref<1x2x8x32xf32, #tpu.memory_space<vmem>>, vector<1x2x1x32xf32>
    %188 = vector.shape_cast %187 : vector<1x2x1x32xf32> to vector<2x32xf32>
    %189 = vector.shape_cast %186 : vector<2x32xf32> to vector<1x2x1x32xf32>
    tpu.vector_store %arg7[%c0_62, %c0_63, %c4_64, %c0_65], %189 {strides = array<i32>} : memref<1x2x8x32xf32, #tpu.memory_space<vmem>>, vector<1x2x1x32xf32>,
    %cst_66 = arith.constant dense<0.000000e+00> : vector<2x96xf32>
    %190 = tpu.matmul %186, %4, %cst_66 {dimension_numbers = #tpu.dot_dimension_numbers<[1], [0], [0], [1], [0, 0, 1, 1], [], []>} : vector<2x32xf32>, vector<32x96xf32>, vector<2x96xf32> -> vector<2x96xf32>
    %c0_67 = arith.constant 0 : index
    %c0_68 = arith.constant 0 : index
    %c5 = arith.constant 5 : index
    %c0_69 = arith.constant 0 : index
    %191 = vector.load %arg3[%c0_67, %c0_68, %c5, %c0_69] : memref<1x2x8x96xf32, #tpu.memory_space<vmem>>, vector<1x2x1x96xf32>
    %192 = vector.shape_cast %191 : vector<1x2x1x96xf32> to vector<2x96xf32>
    %193 = vector.broadcast %6 : vector<1x96xf32> to vector<2x96xf32>
    %194 = arith.addf %192, %193 : vector<2x96xf32>
    %195 = vector.extract_strided_slice %194 {offsets = [0, 0], sizes = [2, 32], strides = [1, 1]} : vector<2x96xf32> to vector<2x32xf32>
    %196 = vector.extract_strided_slice %190 {offsets = [0, 0], sizes = [2, 32], strides = [1, 1]} : vector<2x96xf32> to vector<2x32xf32>
    %197 = arith.addf %195, %196 : vector<2x32xf32>
    %198 = arith.negf %197 : vector<2x32xf32>
    %199 = math.exp %198 : vector<2x32xf32>
    %cst_70 = arith.constant 1.000000e+00 : f32
    %200 = vector.broadcast %cst_70 : f32 to vector<2x32xf32>
    %201 = arith.addf %200, %199 : vector<2x32xf32>
    %202 = arith.divf %200, %201 : vector<2x32xf32>
    %203 = vector.extract_strided_slice %194 {offsets = [0, 32], sizes = [2, 32], strides = [1, 1]} : vector<2x96xf32> to vector<2x32xf32>
    %204 = vector.extract_strided_slice %190 {offsets = [0, 32], sizes = [2, 32], strides = [1, 1]} : vector<2x96xf32> to vector<2x32xf32>
    %205 = arith.addf %203, %204 : vector<2x32xf32>
    %206 = arith.negf %205 : vector<2x32xf32>
    %207 = math.exp %206 : vector<2x32xf32>
    %cst_71 = arith.constant 1.000000e+00 : f32
    %208 = vector.broadcast %cst_71 : f32 to vector<2x32xf32>
    %209 = arith.addf %208, %207 : vector<2x32xf32>
    %210 = arith.divf %208, %209 : vector<2x32xf32>
    %211 = vector.extract_strided_slice %194 {offsets = [0, 64], sizes = [2, 32], strides = [1, 1]} : vector<2x96xf32> to vector<2x32xf32>
    %212 = vector.extract_strided_slice %190 {offsets = [0, 64], sizes = [2, 32], strides = [1, 1]} : vector<2x96xf32> to vector<2x32xf32>
    %213 = vector.broadcast %8 : vector<1x32xf32> to vector<2x32xf32>
    %214 = arith.addf %212, %213 : vector<2x32xf32>
    %215 = arith.mulf %202, %214 : vector<2x32xf32>
    %216 = arith.addf %211, %215 : vector<2x32xf32>
    %217 = math.tanh %216 : vector<2x32xf32>
    %cst_72 = arith.constant 1.000000e+00 : f32
    %218 = vector.broadcast %cst_72 : f32 to vector<2x32xf32>
    %219 = arith.subf %218, %210 : vector<2x32xf32>
    %220 = arith.mulf %219, %217 : vector<2x32xf32>
    %221 = arith.mulf %210, %186 : vector<2x32xf32>
    %222 = arith.addf %220, %221 : vector<2x32xf32>
    %c0_73 = arith.constant 0 : index
    %c0_74 = arith.constant 0 : index
    %c5_75 = arith.constant 5 : index
    %c0_76 = arith.constant 0 : index
    %223 = vector.load %arg7[%c0_73, %c0_74, %c5_75, %c0_76] : memref<1x2x8x32xf32, #tpu.memory_space<vmem>>, vector<1x2x1x32xf32>
    %224 = vector.shape_cast %223 : vector<1x2x1x32xf32> to vector<2x32xf32>
    %225 = vector.shape_cast %222 : vector<2x32xf32> to vector<1x2x1x32xf32>
    tpu.vector_store %arg7[%c0_73, %c0_74, %c5_75, %c0_76], %225 {strides = array<i32>} : memref<1x2x8x32xf32, #tpu.memory_space<vmem>>, vector<1x2x1x32xf32>,
    %cst_77 = arith.constant dense<0.000000e+00> : vector<2x96xf32>
    %226 = tpu.matmul %222, %4, %cst_77 {dimension_numbers = #tpu.dot_dimension_numbers<[1], [0], [0], [1], [0, 0, 1, 1], [], []>} : vector<2x32xf32>, vector<32x96xf32>, vector<2x96xf32> -> vector<2x96xf32>
    %c0_78 = arith.constant 0 : index
    %c0_79 = arith.constant 0 : index
    %c6 = arith.constant 6 : index
    %c0_80 = arith.constant 0 : index
    %227 = vector.load %arg3[%c0_78, %c0_79, %c6, %c0_80] : memref<1x2x8x96xf32, #tpu.memory_space<vmem>>, vector<1x2x1x96xf32>
    %228 = vector.shape_cast %227 : vector<1x2x1x96xf32> to vector<2x96xf32>
    %229 = vector.broadcast %6 : vector<1x96xf32> to vector<2x96xf32>
    %230 = arith.addf %228, %229 : vector<2x96xf32>
    %231 = vector.extract_strided_slice %230 {offsets = [0, 0], sizes = [2, 32], strides = [1, 1]} : vector<2x96xf32> to vector<2x32xf32>
    %232 = vector.extract_strided_slice %226 {offsets = [0, 0], sizes = [2, 32], strides = [1, 1]} : vector<2x96xf32> to vector<2x32xf32>
    %233 = arith.addf %231, %232 : vector<2x32xf32>
    %234 = arith.negf %233 : vector<2x32xf32>
    %235 = math.exp %234 : vector<2x32xf32>
    %cst_81 = arith.constant 1.000000e+00 : f32
    %236 = vector.broadcast %cst_81 : f32 to vector<2x32xf32>
    %237 = arith.addf %236, %235 : vector<2x32xf32>
    %238 = arith.divf %236, %237 : vector<2x32xf32>
    %239 = vector.extract_strided_slice %230 {offsets = [0, 32], sizes = [2, 32], strides = [1, 1]} : vector<2x96xf32> to vector<2x32xf32>
    %240 = vector.extract_strided_slice %226 {offsets = [0, 32], sizes = [2, 32], strides = [1, 1]} : vector<2x96xf32> to vector<2x32xf32>
    %241 = arith.addf %239, %240 : vector<2x32xf32>
    %242 = arith.negf %241 : vector<2x32xf32>
    %243 = math.exp %242 : vector<2x32xf32>
    %cst_82 = arith.constant 1.000000e+00 : f32
    %244 = vector.broadcast %cst_82 : f32 to vector<2x32xf32>
    %245 = arith.addf %244, %243 : vector<2x32xf32>
    %246 = arith.divf %244, %245 : vector<2x32xf32>
    %247 = vector.extract_strided_slice %230 {offsets = [0, 64], sizes = [2, 32], strides = [1, 1]} : vector<2x96xf32> to vector<2x32xf32>
    %248 = vector.extract_strided_slice %226 {offsets = [0, 64], sizes = [2, 32], strides = [1, 1]} : vector<2x96xf32> to vector<2x32xf32>
    %249 = vector.broadcast %8 : vector<1x32xf32> to vector<2x32xf32>
    %250 = arith.addf %248, %249 : vector<2x32xf32>
    %251 = arith.mulf %238, %250 : vector<2x32xf32>
    %252 = arith.addf %247, %251 : vector<2x32xf32>
    %253 = math.tanh %252 : vector<2x32xf32>
    %cst_83 = arith.constant 1.000000e+00 : f32
    %254 = vector.broadcast %cst_83 : f32 to vector<2x32xf32>
    %255 = arith.subf %254, %246 : vector<2x32xf32>
    %256 = arith.mulf %255, %253 : vector<2x32xf32>
    %257 = arith.mulf %246, %222 : vector<2x32xf32>
    %258 = arith.addf %256, %257 : vector<2x32xf32>
    %c0_84 = arith.constant 0 : index
    %c0_85 = arith.constant 0 : index
    %c6_86 = arith.constant 6 : index
    %c0_87 = arith.constant 0 : index
    %259 = vector.load %arg7[%c0_84, %c0_85, %c6_86, %c0_87] : memref<1x2x8x32xf32, #tpu.memory_space<vmem>>, vector<1x2x1x32xf32>
    %260 = vector.shape_cast %259 : vector<1x2x1x32xf32> to vector<2x32xf32>
    %261 = vector.shape_cast %258 : vector<2x32xf32> to vector<1x2x1x32xf32>
    tpu.vector_store %arg7[%c0_84, %c0_85, %c6_86, %c0_87], %261 {strides = array<i32>} : memref<1x2x8x32xf32, #tpu.memory_space<vmem>>, vector<1x2x1x32xf32>,
    %cst_88 = arith.constant dense<0.000000e+00> : vector<2x96xf32>
    %262 = tpu.matmul %258, %4, %cst_88 {dimension_numbers = #tpu.dot_dimension_numbers<[1], [0], [0], [1], [0, 0, 1, 1], [], []>} : vector<2x32xf32>, vector<32x96xf32>, vector<2x96xf32> -> vector<2x96xf32>
    %c0_89 = arith.constant 0 : index
    %c0_90 = arith.constant 0 : index
    %c7 = arith.constant 7 : index
    %c0_91 = arith.constant 0 : index
    %263 = vector.load %arg3[%c0_89, %c0_90, %c7, %c0_91] : memref<1x2x8x96xf32, #tpu.memory_space<vmem>>, vector<1x2x1x96xf32>
    %264 = vector.shape_cast %263 : vector<1x2x1x96xf32> to vector<2x96xf32>
    %265 = vector.broadcast %6 : vector<1x96xf32> to vector<2x96xf32>
    %266 = arith.addf %264, %265 : vector<2x96xf32>
    %267 = vector.extract_strided_slice %266 {offsets = [0, 0], sizes = [2, 32], strides = [1, 1]} : vector<2x96xf32> to vector<2x32xf32>
    %268 = vector.extract_strided_slice %262 {offsets = [0, 0], sizes = [2, 32], strides = [1, 1]} : vector<2x96xf32> to vector<2x32xf32>
    %269 = arith.addf %267, %268 : vector<2x32xf32>
    %270 = arith.negf %269 : vector<2x32xf32>
    %271 = math.exp %270 : vector<2x32xf32>
    %cst_92 = arith.constant 1.000000e+00 : f32
    %272 = vector.broadcast %cst_92 : f32 to vector<2x32xf32>
    %273 = arith.addf %272, %271 : vector<2x32xf32>
    %274 = arith.divf %272, %273 : vector<2x32xf32>
    %275 = vector.extract_strided_slice %266 {offsets = [0, 32], sizes = [2, 32], strides = [1, 1]} : vector<2x96xf32> to vector<2x32xf32>
    %276 = vector.extract_strided_slice %262 {offsets = [0, 32], sizes = [2, 32], strides = [1, 1]} : vector<2x96xf32> to vector<2x32xf32>
    %277 = arith.addf %275, %276 : vector<2x32xf32>
    %278 = arith.negf %277 : vector<2x32xf32>
    %279 = math.exp %278 : vector<2x32xf32>
    %cst_93 = arith.constant 1.000000e+00 : f32
    %280 = vector.broadcast %cst_93 : f32 to vector<2x32xf32>
    %281 = arith.addf %280, %279 : vector<2x32xf32>
    %282 = arith.divf %280, %281 : vector<2x32xf32>
    %283 = vector.extract_strided_slice %266 {offsets = [0, 64], sizes = [2, 32], strides = [1, 1]} : vector<2x96xf32> to vector<2x32xf32>
    %284 = vector.extract_strided_slice %262 {offsets = [0, 64], sizes = [2, 32], strides = [1, 1]} : vector<2x96xf32> to vector<2x32xf32>
    %285 = vector.broadcast %8 : vector<1x32xf32> to vector<2x32xf32>
    %286 = arith.addf %284, %285 : vector<2x32xf32>
    %287 = arith.mulf %274, %286 : vector<2x32xf32>
    %288 = arith.addf %283, %287 : vector<2x32xf32>
    %289 = math.tanh %288 : vector<2x32xf32>
    %cst_94 = arith.constant 1.000000e+00 : f32
    %290 = vector.broadcast %cst_94 : f32 to vector<2x32xf32>
    %291 = arith.subf %290, %282 : vector<2x32xf32>
    %292 = arith.mulf %291, %289 : vector<2x32xf32>
    %293 = arith.mulf %282, %258 : vector<2x32xf32>
    %294 = arith.addf %292, %293 : vector<2x32xf32>
    %c0_95 = arith.constant 0 : index
    %c0_96 = arith.constant 0 : index
    %c7_97 = arith.constant 7 : index
    %c0_98 = arith.constant 0 : index
    %295 = vector.load %arg7[%c0_95, %c0_96, %c7_97, %c0_98] : memref<1x2x8x32xf32, #tpu.memory_space<vmem>>, vector<1x2x1x32xf32>
    %296 = vector.shape_cast %295 : vector<1x2x1x32xf32> to vector<2x32xf32>
    %297 = vector.shape_cast %294 : vector<2x32xf32> to vector<1x2x1x32xf32>
    tpu.vector_store %arg7[%c0_95, %c0_96, %c7_97, %c0_98], %297 {strides = array<i32>} : memref<1x2x8x32xf32, #tpu.memory_space<vmem>>, vector<1x2x1x32xf32>,
    %c0_99 = arith.constant 0 : index
    %c0_100 = arith.constant 0 : index
    %298 = vector.load %arg9[%c0_99, %c0_100] : memref<2x32xf32, #tpu.memory_space<vmem>>, vector<2x32xf32>
    tpu.vector_store %arg9[%c0_99, %c0_100], %294 {strides = array<i32>} : memref<2x32xf32, #tpu.memory_space<vmem>>, vector<2x32xf32>,
    %c0_i32_101 = arith.constant 0 : i32
    %299 = arith.cmpi eq, %arg2, %c0_i32_101 : i32
    %300 = arith.extui %299 : i1 to i32
    %c0_i32_102 = arith.constant 0 : i32
    %301 = arith.cmpi ne, %300, %c0_i32_102 : i32
    scf.if %301 {
      %c0_103 = arith.constant 0 : index
      %c0_104 = arith.constant 0 : index
      %302 = vector.load %arg9[%c0_103, %c0_104] : memref<2x32xf32, #tpu.memory_space<vmem>>, vector<2x32xf32>
      %c0_105 = arith.constant 0 : index
      %c0_106 = arith.constant 0 : index
      %c0_107 = arith.constant 0 : index
      %303 = vector.load %arg8[%c0_105, %c0_106, %c0_107] : memref<1x2x32xf32, #tpu.memory_space<vmem>>, vector<1x2x32xf32>
      %304 = vector.shape_cast %303 : vector<1x2x32xf32> to vector<2x32xf32>
      %305 = vector.shape_cast %302 : vector<2x32xf32> to vector<1x2x32xf32>
      tpu.vector_store %arg8[%c0_105, %c0_106, %c0_107], %305 {strides = array<i32>} : memref<1x2x32xf32, #tpu.memory_space<vmem>>, vector<1x2x32xf32>,
    } else {
    }
    return
  }
  func.func @transform_0(%arg0: i32, %arg1: i32, %arg2: i32) -> (i32, i32, i32, i32) {
    %c2_i32 = arith.constant 2 : i32
    %0 = arith.muli %c2_i32, %arg2 : i32
    %c0_i32 = arith.constant 0 : i32
    %1 = arith.subi %c0_i32, %0 : i32
    %2 = arith.muli %arg0, %1 : i32
    %3 = arith.addi %arg2, %2 : i32
    %c0_i32_0 = arith.constant 0 : i32
    %c0_i32_1 = arith.constant 0 : i32
    return %arg0, %arg1, %3, %c0_i32_0 : i32, i32, i32, i32
  }
  func.func @transform_1(%arg0: i32, %arg1: i32, %arg2: i32) -> (i32, i32, i32) {
    %c0_i32 = arith.constant 0 : i32
    %c0_i32_0 = arith.constant 0 : i32
    %c0_i32_1 = arith.constant 0 : i32
    return %arg0, %c0_i32, %c0_i32_0 : i32, i32, i32
  }
  func.func @transform_2(%arg0: i32, %arg1: i32, %arg2: i32) -> (i32, i32, i32) {
    %c0_i32 = arith.constant 0 : i32
    %c0_i32_0 = arith.constant 0 : i32
    %c0_i32_1 = arith.constant 0 : i32
    return %arg0, %c0_i32, %c0_i32_0 : i32, i32, i32
  }
  func.func @transform_3(%arg0: i32, %arg1: i32, %arg2: i32) -> (i32, i32, i32) {
    %c0_i32 = arith.constant 0 : i32
    %c0_i32_0 = arith.constant 0 : i32
    %c0_i32_1 = arith.constant 0 : i32
    return %arg0, %c0_i32, %c0_i32_0 : i32, i32, i32
  }
  func.func @transform_4(%arg0: i32, %arg1: i32, %arg2: i32) -> (i32, i32, i32, i32) {
    %c2_i32 = arith.constant 2 : i32
    %0 = arith.muli %c2_i32, %arg2 : i32
    %c0_i32 = arith.constant 0 : i32
    %1 = arith.subi %c0_i32, %0 : i32
    %2 = arith.muli %arg0, %1 : i32
    %3 = arith.addi %arg2, %2 : i32
    %c0_i32_0 = arith.constant 0 : i32
    %c0_i32_1 = arith.constant 0 : i32
    return %arg0, %arg1, %3, %c0_i32_0 : i32, i32, i32, i32
  }
  func.func @transform_5(%arg0: i32, %arg1: i32, %arg2: i32) -> (i32, i32, i32) {
    %c0_i32 = arith.constant 0 : i32
    %c0_i32_0 = arith.constant 0 : i32
    return %arg0, %arg1, %c0_i32 : i32, i32, i32
  }
}

module attributes {stable_mosaic.version = 11 : i64} {
  func.func @kernel(%arg0: i32, %arg1: i32, %arg2: i32, %arg3: memref<1x2x8x96xf32, #tpu.memory_space<vmem>>, %arg4: memref<1x32x96xf32, #tpu.memory_space<vmem>>, %arg5: memref<1x1x96xf32, #tpu.memory_space<vmem>>, %arg6: memref<1x1x32xf32, #tpu.memory_space<vmem>>, %arg7: memref<1x2x8x32xf32, #tpu.memory_space<vmem>>, %arg8: memref<1x2x32xf32, #tpu.memory_space<vmem>>, %arg9: memref<2x32xf32, #tpu.memory_space<vmem>>) attributes {dimension_semantics = [#tpu.dimension_semantics<parallel>, #tpu.dimension_semantics<parallel>, #tpu.dimension_semantics<arbitrary>], iteration_bounds = array<i64: 1, 1, 1>, scalar_prefetch = 0 : i64, scratch_operands = 1 : i64, tpu.core_type = #tpu.core_type<tc>, window_params = [{transform_indices = @transform_0, window_bounds = array<i64: 1, 2, 8, 96>}, {transform_indices = @transform_1, window_bounds = array<i64: 1, 32, 96>}, {transform_indices = @transform_2, window_bounds = array<i64: 1, 1, 96>}, {transform_indices = @transform_3, window_bounds = array<i64: 1, 1, 32>}, {transform_indices = @transform_4, window_bounds = array<i64: 1, 2, 8, 32>}, {transform_indices = @transform_5, window_bounds = array<i64: 1, 2, 32>}]} {
    %c0_i32 = arith.constant 0 : i32
    %0 = arith.cmpi eq, %arg2, %c0_i32 : i32
    %1 = arith.extui %0 : i1 to i32
    %c0_i32_0 = arith.constant 0 : i32
    %2 = arith.cmpi ne, %1, %c0_i32_0 : i32
    scf.if %2 {
      %cst_103 = arith.constant 0.000000e+00 : f32
      %302 = vector.broadcast %cst_103 : f32 to vector<2x32xf32>
      %c0_104 = arith.constant 0 : index
      %c0_105 = arith.constant 0 : index
      %303 = vector.load %arg9[%c0_104, %c0_105] : memref<2x32xf32, #tpu.memory_space<vmem>>, vector<2x32xf32>
      tpu.vector_store %arg9[%c0_104, %c0_105], %302 {strides = array<i32>} : memref<2x32xf32, #tpu.memory_space<vmem>>, vector<2x32xf32>,
    } else {
    }
    %c0 = arith.constant 0 : index
    %c0_1 = arith.constant 0 : index
    %c0_2 = arith.constant 0 : index
    %3 = vector.load %arg4[%c0, %c0_1, %c0_2] : memref<1x32x96xf32, #tpu.memory_space<vmem>>, vector<1x32x96xf32>
    %4 = vector.shape_cast %3 : vector<1x32x96xf32> to vector<32x96xf32>
    %c0_3 = arith.constant 0 : index
    %c0_4 = arith.constant 0 : index
    %c0_5 = arith.constant 0 : index
    %5 = vector.load %arg5[%c0_3, %c0_4, %c0_5] : memref<1x1x96xf32, #tpu.memory_space<vmem>>, vector<1x1x96xf32>
    %6 = vector.shape_cast %5 : vector<1x1x96xf32> to vector<1x96xf32>
    %c0_6 = arith.constant 0 : index
    %c0_7 = arith.constant 0 : index
    %c0_8 = arith.constant 0 : index
    %7 = vector.load %arg6[%c0_6, %c0_7, %c0_8] : memref<1x1x32xf32, #tpu.memory_space<vmem>>, vector<1x1x32xf32>
    %8 = vector.shape_cast %7 : vector<1x1x32xf32> to vector<1x32xf32>
    %c0_9 = arith.constant 0 : index
    %c0_10 = arith.constant 0 : index
    %9 = vector.load %arg9[%c0_9, %c0_10] : memref<2x32xf32, #tpu.memory_space<vmem>>, vector<2x32xf32>
    %cst = arith.constant dense<0.000000e+00> : vector<2x96xf32>
    %10 = tpu.matmul %9, %4, %cst {dimension_numbers = #tpu.dot_dimension_numbers<[1], [0], [0], [1], [0, 0, 1, 1], [], []>} : vector<2x32xf32>, vector<32x96xf32>, vector<2x96xf32> -> vector<2x96xf32>
    %c0_11 = arith.constant 0 : index
    %c0_12 = arith.constant 0 : index
    %c0_13 = arith.constant 0 : index
    %c0_14 = arith.constant 0 : index
    %11 = vector.load %arg3[%c0_11, %c0_12, %c0_13, %c0_14] : memref<1x2x8x96xf32, #tpu.memory_space<vmem>>, vector<1x2x1x96xf32>
    %12 = vector.shape_cast %11 : vector<1x2x1x96xf32> to vector<2x96xf32>
    %13 = vector.broadcast %6 : vector<1x96xf32> to vector<2x96xf32>
    %14 = arith.addf %12, %13 : vector<2x96xf32>
    %15 = vector.extract_strided_slice %14 {offsets = [0, 0], sizes = [2, 32], strides = [1, 1]} : vector<2x96xf32> to vector<2x32xf32>
    %16 = vector.extract_strided_slice %10 {offsets = [0, 0], sizes = [2, 32], strides = [1, 1]} : vector<2x96xf32> to vector<2x32xf32>
    %17 = arith.addf %15, %16 : vector<2x32xf32>
    %18 = arith.negf %17 : vector<2x32xf32>
    %19 = math.exp %18 : vector<2x32xf32>
    %cst_15 = arith.constant 1.000000e+00 : f32
    %20 = vector.broadcast %cst_15 : f32 to vector<2x32xf32>
    %21 = arith.addf %20, %19 : vector<2x32xf32>
    %22 = arith.divf %20, %21 : vector<2x32xf32>
    %23 = vector.extract_strided_slice %14 {offsets = [0, 32], sizes = [2, 32], strides = [1, 1]} : vector<2x96xf32> to vector<2x32xf32>
    %24 = vector.extract_strided_slice %10 {offsets = [0, 32], sizes = [2, 32], strides = [1, 1]} : vector<2x96xf32> to vector<2x32xf32>
    %25 = arith.addf %23, %24 : vector<2x32xf32>
    %26 = arith.negf %25 : vector<2x32xf32>
    %27 = math.exp %26 : vector<2x32xf32>
    %cst_16 = arith.constant 1.000000e+00 : f32
    %28 = vector.broadcast %cst_16 : f32 to vector<2x32xf32>
    %29 = arith.addf %28, %27 : vector<2x32xf32>
    %30 = arith.divf %28, %29 : vector<2x32xf32>
    %31 = vector.extract_strided_slice %14 {offsets = [0, 64], sizes = [2, 32], strides = [1, 1]} : vector<2x96xf32> to vector<2x32xf32>
    %32 = vector.extract_strided_slice %10 {offsets = [0, 64], sizes = [2, 32], strides = [1, 1]} : vector<2x96xf32> to vector<2x32xf32>
    %33 = vector.broadcast %8 : vector<1x32xf32> to vector<2x32xf32>
    %34 = arith.addf %32, %33 : vector<2x32xf32>
    %35 = arith.mulf %22, %34 : vector<2x32xf32>
    %36 = arith.addf %31, %35 : vector<2x32xf32>
    %37 = math.tanh %36 : vector<2x32xf32>
    %cst_17 = arith.constant 1.000000e+00 : f32
    %38 = vector.broadcast %cst_17 : f32 to vector<2x32xf32>
    %39 = arith.subf %38, %30 : vector<2x32xf32>
    %40 = arith.mulf %39, %37 : vector<2x32xf32>
    %41 = arith.mulf %30, %9 : vector<2x32xf32>
    %42 = arith.addf %40, %41 : vector<2x32xf32>
    %c0_18 = arith.constant 0 : index
    %c0_19 = arith.constant 0 : index
    %c0_20 = arith.constant 0 : index
    %c0_21 = arith.constant 0 : index
    %43 = vector.load %arg7[%c0_18, %c0_19, %c0_20, %c0_21] : memref<1x2x8x32xf32, #tpu.memory_space<vmem>>, vector<1x2x1x32xf32>
    %44 = vector.shape_cast %43 : vector<1x2x1x32xf32> to vector<2x32xf32>
    %45 = vector.shape_cast %42 : vector<2x32xf32> to vector<1x2x1x32xf32>
    tpu.vector_store %arg7[%c0_18, %c0_19, %c0_20, %c0_21], %45 {strides = array<i32>} : memref<1x2x8x32xf32, #tpu.memory_space<vmem>>, vector<1x2x1x32xf32>,
    %cst_22 = arith.constant dense<0.000000e+00> : vector<2x96xf32>
    %46 = tpu.matmul %42, %4, %cst_22 {dimension_numbers = #tpu.dot_dimension_numbers<[1], [0], [0], [1], [0, 0, 1, 1], [], []>} : vector<2x32xf32>, vector<32x96xf32>, vector<2x96xf32> -> vector<2x96xf32>
    %c0_23 = arith.constant 0 : index
    %c0_24 = arith.constant 0 : index
    %c1 = arith.constant 1 : index
    %c0_25 = arith.constant 0 : index
    %47 = vector.load %arg3[%c0_23, %c0_24, %c1, %c0_25] : memref<1x2x8x96xf32, #tpu.memory_space<vmem>>, vector<1x2x1x96xf32>
    %48 = vector.shape_cast %47 : vector<1x2x1x96xf32> to vector<2x96xf32>
    %49 = vector.broadcast %6 : vector<1x96xf32> to vector<2x96xf32>
    %50 = arith.addf %48, %49 : vector<2x96xf32>
    %51 = vector.extract_strided_slice %50 {offsets = [0, 0], sizes = [2, 32], strides = [1, 1]} : vector<2x96xf32> to vector<2x32xf32>
    %52 = vector.extract_strided_slice %46 {offsets = [0, 0], sizes = [2, 32], strides = [1, 1]} : vector<2x96xf32> to vector<2x32xf32>
    %53 = arith.addf %51, %52 : vector<2x32xf32>
    %54 = arith.negf %53 : vector<2x32xf32>
    %55 = math.exp %54 : vector<2x32xf32>
    %cst_26 = arith.constant 1.000000e+00 : f32
    %56 = vector.broadcast %cst_26 : f32 to vector<2x32xf32>
    %57 = arith.addf %56, %55 : vector<2x32xf32>
    %58 = arith.divf %56, %57 : vector<2x32xf32>
    %59 = vector.extract_strided_slice %50 {offsets = [0, 32], sizes = [2, 32], strides = [1, 1]} : vector<2x96xf32> to vector<2x32xf32>
    %60 = vector.extract_strided_slice %46 {offsets = [0, 32], sizes = [2, 32], strides = [1, 1]} : vector<2x96xf32> to vector<2x32xf32>
    %61 = arith.addf %59, %60 : vector<2x32xf32>
    %62 = arith.negf %61 : vector<2x32xf32>
    %63 = math.exp %62 : vector<2x32xf32>
    %cst_27 = arith.constant 1.000000e+00 : f32
    %64 = vector.broadcast %cst_27 : f32 to vector<2x32xf32>
    %65 = arith.addf %64, %63 : vector<2x32xf32>
    %66 = arith.divf %64, %65 : vector<2x32xf32>
    %67 = vector.extract_strided_slice %50 {offsets = [0, 64], sizes = [2, 32], strides = [1, 1]} : vector<2x96xf32> to vector<2x32xf32>
    %68 = vector.extract_strided_slice %46 {offsets = [0, 64], sizes = [2, 32], strides = [1, 1]} : vector<2x96xf32> to vector<2x32xf32>
    %69 = vector.broadcast %8 : vector<1x32xf32> to vector<2x32xf32>
    %70 = arith.addf %68, %69 : vector<2x32xf32>
    %71 = arith.mulf %58, %70 : vector<2x32xf32>
    %72 = arith.addf %67, %71 : vector<2x32xf32>
    %73 = math.tanh %72 : vector<2x32xf32>
    %cst_28 = arith.constant 1.000000e+00 : f32
    %74 = vector.broadcast %cst_28 : f32 to vector<2x32xf32>
    %75 = arith.subf %74, %66 : vector<2x32xf32>
    %76 = arith.mulf %75, %73 : vector<2x32xf32>
    %77 = arith.mulf %66, %42 : vector<2x32xf32>
    %78 = arith.addf %76, %77 : vector<2x32xf32>
    %c0_29 = arith.constant 0 : index
    %c0_30 = arith.constant 0 : index
    %c1_31 = arith.constant 1 : index
    %c0_32 = arith.constant 0 : index
    %79 = vector.load %arg7[%c0_29, %c0_30, %c1_31, %c0_32] : memref<1x2x8x32xf32, #tpu.memory_space<vmem>>, vector<1x2x1x32xf32>
    %80 = vector.shape_cast %79 : vector<1x2x1x32xf32> to vector<2x32xf32>
    %81 = vector.shape_cast %78 : vector<2x32xf32> to vector<1x2x1x32xf32>
    tpu.vector_store %arg7[%c0_29, %c0_30, %c1_31, %c0_32], %81 {strides = array<i32>} : memref<1x2x8x32xf32, #tpu.memory_space<vmem>>, vector<1x2x1x32xf32>,
    %cst_33 = arith.constant dense<0.000000e+00> : vector<2x96xf32>
    %82 = tpu.matmul %78, %4, %cst_33 {dimension_numbers = #tpu.dot_dimension_numbers<[1], [0], [0], [1], [0, 0, 1, 1], [], []>} : vector<2x32xf32>, vector<32x96xf32>, vector<2x96xf32> -> vector<2x96xf32>
    %c0_34 = arith.constant 0 : index
    %c0_35 = arith.constant 0 : index
    %c2 = arith.constant 2 : index
    %c0_36 = arith.constant 0 : index
    %83 = vector.load %arg3[%c0_34, %c0_35, %c2, %c0_36] : memref<1x2x8x96xf32, #tpu.memory_space<vmem>>, vector<1x2x1x96xf32>
    %84 = vector.shape_cast %83 : vector<1x2x1x96xf32> to vector<2x96xf32>
    %85 = vector.broadcast %6 : vector<1x96xf32> to vector<2x96xf32>
    %86 = arith.addf %84, %85 : vector<2x96xf32>
    %87 = vector.extract_strided_slice %86 {offsets = [0, 0], sizes = [2, 32], strides = [1, 1]} : vector<2x96xf32> to vector<2x32xf32>
    %88 = vector.extract_strided_slice %82 {offsets = [0, 0], sizes = [2, 32], strides = [1, 1]} : vector<2x96xf32> to vector<2x32xf32>
    %89 = arith.addf %87, %88 : vector<2x32xf32>
    %90 = arith.negf %89 : vector<2x32xf32>
    %91 = math.exp %90 : vector<2x32xf32>
    %cst_37 = arith.constant 1.000000e+00 : f32
    %92 = vector.broadcast %cst_37 : f32 to vector<2x32xf32>
    %93 = arith.addf %92, %91 : vector<2x32xf32>
    %94 = arith.divf %92, %93 : vector<2x32xf32>
    %95 = vector.extract_strided_slice %86 {offsets = [0, 32], sizes = [2, 32], strides = [1, 1]} : vector<2x96xf32> to vector<2x32xf32>
    %96 = vector.extract_strided_slice %82 {offsets = [0, 32], sizes = [2, 32], strides = [1, 1]} : vector<2x96xf32> to vector<2x32xf32>
    %97 = arith.addf %95, %96 : vector<2x32xf32>
    %98 = arith.negf %97 : vector<2x32xf32>
    %99 = math.exp %98 : vector<2x32xf32>
    %cst_38 = arith.constant 1.000000e+00 : f32
    %100 = vector.broadcast %cst_38 : f32 to vector<2x32xf32>
    %101 = arith.addf %100, %99 : vector<2x32xf32>
    %102 = arith.divf %100, %101 : vector<2x32xf32>
    %103 = vector.extract_strided_slice %86 {offsets = [0, 64], sizes = [2, 32], strides = [1, 1]} : vector<2x96xf32> to vector<2x32xf32>
    %104 = vector.extract_strided_slice %82 {offsets = [0, 64], sizes = [2, 32], strides = [1, 1]} : vector<2x96xf32> to vector<2x32xf32>
    %105 = vector.broadcast %8 : vector<1x32xf32> to vector<2x32xf32>
    %106 = arith.addf %104, %105 : vector<2x32xf32>
    %107 = arith.mulf %94, %106 : vector<2x32xf32>
    %108 = arith.addf %103, %107 : vector<2x32xf32>
    %109 = math.tanh %108 : vector<2x32xf32>
    %cst_39 = arith.constant 1.000000e+00 : f32
    %110 = vector.broadcast %cst_39 : f32 to vector<2x32xf32>
    %111 = arith.subf %110, %102 : vector<2x32xf32>
    %112 = arith.mulf %111, %109 : vector<2x32xf32>
    %113 = arith.mulf %102, %78 : vector<2x32xf32>
    %114 = arith.addf %112, %113 : vector<2x32xf32>
    %c0_40 = arith.constant 0 : index
    %c0_41 = arith.constant 0 : index
    %c2_42 = arith.constant 2 : index
    %c0_43 = arith.constant 0 : index
    %115 = vector.load %arg7[%c0_40, %c0_41, %c2_42, %c0_43] : memref<1x2x8x32xf32, #tpu.memory_space<vmem>>, vector<1x2x1x32xf32>
    %116 = vector.shape_cast %115 : vector<1x2x1x32xf32> to vector<2x32xf32>
    %117 = vector.shape_cast %114 : vector<2x32xf32> to vector<1x2x1x32xf32>
    tpu.vector_store %arg7[%c0_40, %c0_41, %c2_42, %c0_43], %117 {strides = array<i32>} : memref<1x2x8x32xf32, #tpu.memory_space<vmem>>, vector<1x2x1x32xf32>,
    %cst_44 = arith.constant dense<0.000000e+00> : vector<2x96xf32>
    %118 = tpu.matmul %114, %4, %cst_44 {dimension_numbers = #tpu.dot_dimension_numbers<[1], [0], [0], [1], [0, 0, 1, 1], [], []>} : vector<2x32xf32>, vector<32x96xf32>, vector<2x96xf32> -> vector<2x96xf32>
    %c0_45 = arith.constant 0 : index
    %c0_46 = arith.constant 0 : index
    %c3 = arith.constant 3 : index
    %c0_47 = arith.constant 0 : index
    %119 = vector.load %arg3[%c0_45, %c0_46, %c3, %c0_47] : memref<1x2x8x96xf32, #tpu.memory_space<vmem>>, vector<1x2x1x96xf32>
    %120 = vector.shape_cast %119 : vector<1x2x1x96xf32> to vector<2x96xf32>
    %121 = vector.broadcast %6 : vector<1x96xf32> to vector<2x96xf32>
    %122 = arith.addf %120, %121 : vector<2x96xf32>
    %123 = vector.extract_strided_slice %122 {offsets = [0, 0], sizes = [2, 32], strides = [1, 1]} : vector<2x96xf32> to vector<2x32xf32>
    %124 = vector.extract_strided_slice %118 {offsets = [0, 0], sizes = [2, 32], strides = [1, 1]} : vector<2x96xf32> to vector<2x32xf32>
    %125 = arith.addf %123, %124 : vector<2x32xf32>
    %126 = arith.negf %125 : vector<2x32xf32>
    %127 = math.exp %126 : vector<2x32xf32>
    %cst_48 = arith.constant 1.000000e+00 : f32
    %128 = vector.broadcast %cst_48 : f32 to vector<2x32xf32>
    %129 = arith.addf %128, %127 : vector<2x32xf32>
    %130 = arith.divf %128, %129 : vector<2x32xf32>
    %131 = vector.extract_strided_slice %122 {offsets = [0, 32], sizes = [2, 32], strides = [1, 1]} : vector<2x96xf32> to vector<2x32xf32>
    %132 = vector.extract_strided_slice %118 {offsets = [0, 32], sizes = [2, 32], strides = [1, 1]} : vector<2x96xf32> to vector<2x32xf32>
    %133 = arith.addf %131, %132 : vector<2x32xf32>
    %134 = arith.negf %133 : vector<2x32xf32>
    %135 = math.exp %134 : vector<2x32xf32>
    %cst_49 = arith.constant 1.000000e+00 : f32
    %136 = vector.broadcast %cst_49 : f32 to vector<2x32xf32>
    %137 = arith.addf %136, %135 : vector<2x32xf32>
    %138 = arith.divf %136, %137 : vector<2x32xf32>
    %139 = vector.extract_strided_slice %122 {offsets = [0, 64], sizes = [2, 32], strides = [1, 1]} : vector<2x96xf32> to vector<2x32xf32>
    %140 = vector.extract_strided_slice %118 {offsets = [0, 64], sizes = [2, 32], strides = [1, 1]} : vector<2x96xf32> to vector<2x32xf32>
    %141 = vector.broadcast %8 : vector<1x32xf32> to vector<2x32xf32>
    %142 = arith.addf %140, %141 : vector<2x32xf32>
    %143 = arith.mulf %130, %142 : vector<2x32xf32>
    %144 = arith.addf %139, %143 : vector<2x32xf32>
    %145 = math.tanh %144 : vector<2x32xf32>
    %cst_50 = arith.constant 1.000000e+00 : f32
    %146 = vector.broadcast %cst_50 : f32 to vector<2x32xf32>
    %147 = arith.subf %146, %138 : vector<2x32xf32>
    %148 = arith.mulf %147, %145 : vector<2x32xf32>
    %149 = arith.mulf %138, %114 : vector<2x32xf32>
    %150 = arith.addf %148, %149 : vector<2x32xf32>
    %c0_51 = arith.constant 0 : index
    %c0_52 = arith.constant 0 : index
    %c3_53 = arith.constant 3 : index
    %c0_54 = arith.constant 0 : index
    %151 = vector.load %arg7[%c0_51, %c0_52, %c3_53, %c0_54] : memref<1x2x8x32xf32, #tpu.memory_space<vmem>>, vector<1x2x1x32xf32>
    %152 = vector.shape_cast %151 : vector<1x2x1x32xf32> to vector<2x32xf32>
    %153 = vector.shape_cast %150 : vector<2x32xf32> to vector<1x2x1x32xf32>
    tpu.vector_store %arg7[%c0_51, %c0_52, %c3_53, %c0_54], %153 {strides = array<i32>} : memref<1x2x8x32xf32, #tpu.memory_space<vmem>>, vector<1x2x1x32xf32>,
    %cst_55 = arith.constant dense<0.000000e+00> : vector<2x96xf32>
    %154 = tpu.matmul %150, %4, %cst_55 {dimension_numbers = #tpu.dot_dimension_numbers<[1], [0], [0], [1], [0, 0, 1, 1], [], []>} : vector<2x32xf32>, vector<32x96xf32>, vector<2x96xf32> -> vector<2x96xf32>
    %c0_56 = arith.constant 0 : index
    %c0_57 = arith.constant 0 : index
    %c4 = arith.constant 4 : index
    %c0_58 = arith.constant 0 : index
    %155 = vector.load %arg3[%c0_56, %c0_57, %c4, %c0_58] : memref<1x2x8x96xf32, #tpu.memory_space<vmem>>, vector<1x2x1x96xf32>
    %156 = vector.shape_cast %155 : vector<1x2x1x96xf32> to vector<2x96xf32>
    %157 = vector.broadcast %6 : vector<1x96xf32> to vector<2x96xf32>
    %158 = arith.addf %156, %157 : vector<2x96xf32>
    %159 = vector.extract_strided_slice %158 {offsets = [0, 0], sizes = [2, 32], strides = [1, 1]} : vector<2x96xf32> to vector<2x32xf32>
    %160 = vector.extract_strided_slice %154 {offsets = [0, 0], sizes = [2, 32], strides = [1, 1]} : vector<2x96xf32> to vector<2x32xf32>
    %161 = arith.addf %159, %160 : vector<2x32xf32>
    %162 = arith.negf %161 : vector<2x32xf32>
    %163 = math.exp %162 : vector<2x32xf32>
    %cst_59 = arith.constant 1.000000e+00 : f32
    %164 = vector.broadcast %cst_59 : f32 to vector<2x32xf32>
    %165 = arith.addf %164, %163 : vector<2x32xf32>
    %166 = arith.divf %164, %165 : vector<2x32xf32>
    %167 = vector.extract_strided_slice %158 {offsets = [0, 32], sizes = [2, 32], strides = [1, 1]} : vector<2x96xf32> to vector<2x32xf32>
    %168 = vector.extract_strided_slice %154 {offsets = [0, 32], sizes = [2, 32], strides = [1, 1]} : vector<2x96xf32> to vector<2x32xf32>
    %169 = arith.addf %167, %168 : vector<2x32xf32>
    %170 = arith.negf %169 : vector<2x32xf32>
    %171 = math.exp %170 : vector<2x32xf32>
    %cst_60 = arith.constant 1.000000e+00 : f32
    %172 = vector.broadcast %cst_60 : f32 to vector<2x32xf32>
    %173 = arith.addf %172, %171 : vector<2x32xf32>
    %174 = arith.divf %172, %173 : vector<2x32xf32>
    %175 = vector.extract_strided_slice %158 {offsets = [0, 64], sizes = [2, 32], strides = [1, 1]} : vector<2x96xf32> to vector<2x32xf32>
    %176 = vector.extract_strided_slice %154 {offsets = [0, 64], sizes = [2, 32], strides = [1, 1]} : vector<2x96xf32> to vector<2x32xf32>
    %177 = vector.broadcast %8 : vector<1x32xf32> to vector<2x32xf32>
    %178 = arith.addf %176, %177 : vector<2x32xf32>
    %179 = arith.mulf %166, %178 : vector<2x32xf32>
    %180 = arith.addf %175, %179 : vector<2x32xf32>
    %181 = math.tanh %180 : vector<2x32xf32>
    %cst_61 = arith.constant 1.000000e+00 : f32
    %182 = vector.broadcast %cst_61 : f32 to vector<2x32xf32>
    %183 = arith.subf %182, %174 : vector<2x32xf32>
    %184 = arith.mulf %183, %181 : vector<2x32xf32>
    %185 = arith.mulf %174, %150 : vector<2x32xf32>
    %186 = arith.addf %184, %185 : vector<2x32xf32>
    %c0_62 = arith.constant 0 : index
    %c0_63 = arith.constant 0 : index
    %c4_64 = arith.constant 4 : index
    %c0_65 = arith.constant 0 : index
    %187 = vector.load %arg7[%c0_62, %c0_63, %c4_64, %c0_65] : memref<1x2x8x32xf32, #tpu.memory_space<vmem>>, vector<1x2x1x32xf32>
    %188 = vector.shape_cast %187 : vector<1x2x1x32xf32> to vector<2x32xf32>
    %189 = vector.shape_cast %186 : vector<2x32xf32> to vector<1x2x1x32xf32>
    tpu.vector_store %arg7[%c0_62, %c0_63, %c4_64, %c0_65], %189 {strides = array<i32>} : memref<1x2x8x32xf32, #tpu.memory_space<vmem>>, vector<1x2x1x32xf32>,
    %cst_66 = arith.constant dense<0.000000e+00> : vector<2x96xf32>
    %190 = tpu.matmul %186, %4, %cst_66 {dimension_numbers = #tpu.dot_dimension_numbers<[1], [0], [0], [1], [0, 0, 1, 1], [], []>} : vector<2x32xf32>, vector<32x96xf32>, vector<2x96xf32> -> vector<2x96xf32>
    %c0_67 = arith.constant 0 : index
    %c0_68 = arith.constant 0 : index
    %c5 = arith.constant 5 : index
    %c0_69 = arith.constant 0 : index
    %191 = vector.load %arg3[%c0_67, %c0_68, %c5, %c0_69] : memref<1x2x8x96xf32, #tpu.memory_space<vmem>>, vector<1x2x1x96xf32>
    %192 = vector.shape_cast %191 : vector<1x2x1x96xf32> to vector<2x96xf32>
    %193 = vector.broadcast %6 : vector<1x96xf32> to vector<2x96xf32>
    %194 = arith.addf %192, %193 : vector<2x96xf32>
    %195 = vector.extract_strided_slice %194 {offsets = [0, 0], sizes = [2, 32], strides = [1, 1]} : vector<2x96xf32> to vector<2x32xf32>
    %196 = vector.extract_strided_slice %190 {offsets = [0, 0], sizes = [2, 32], strides = [1, 1]} : vector<2x96xf32> to vector<2x32xf32>
    %197 = arith.addf %195, %196 : vector<2x32xf32>
    %198 = arith.negf %197 : vector<2x32xf32>
    %199 = math.exp %198 : vector<2x32xf32>
    %cst_70 = arith.constant 1.000000e+00 : f32
    %200 = vector.broadcast %cst_70 : f32 to vector<2x32xf32>
    %201 = arith.addf %200, %199 : vector<2x32xf32>
    %202 = arith.divf %200, %201 : vector<2x32xf32>
    %203 = vector.extract_strided_slice %194 {offsets = [0, 32], sizes = [2, 32], strides = [1, 1]} : vector<2x96xf32> to vector<2x32xf32>
    %204 = vector.extract_strided_slice %190 {offsets = [0, 32], sizes = [2, 32], strides = [1, 1]} : vector<2x96xf32> to vector<2x32xf32>
    %205 = arith.addf %203, %204 : vector<2x32xf32>
    %206 = arith.negf %205 : vector<2x32xf32>
    %207 = math.exp %206 : vector<2x32xf32>
    %cst_71 = arith.constant 1.000000e+00 : f32
    %208 = vector.broadcast %cst_71 : f32 to vector<2x32xf32>
    %209 = arith.addf %208, %207 : vector<2x32xf32>
    %210 = arith.divf %208, %209 : vector<2x32xf32>
    %211 = vector.extract_strided_slice %194 {offsets = [0, 64], sizes = [2, 32], strides = [1, 1]} : vector<2x96xf32> to vector<2x32xf32>
    %212 = vector.extract_strided_slice %190 {offsets = [0, 64], sizes = [2, 32], strides = [1, 1]} : vector<2x96xf32> to vector<2x32xf32>
    %213 = vector.broadcast %8 : vector<1x32xf32> to vector<2x32xf32>
    %214 = arith.addf %212, %213 : vector<2x32xf32>
    %215 = arith.mulf %202, %214 : vector<2x32xf32>
    %216 = arith.addf %211, %215 : vector<2x32xf32>
    %217 = math.tanh %216 : vector<2x32xf32>
    %cst_72 = arith.constant 1.000000e+00 : f32
    %218 = vector.broadcast %cst_72 : f32 to vector<2x32xf32>
    %219 = arith.subf %218, %210 : vector<2x32xf32>
    %220 = arith.mulf %219, %217 : vector<2x32xf32>
    %221 = arith.mulf %210, %186 : vector<2x32xf32>
    %222 = arith.addf %220, %221 : vector<2x32xf32>
    %c0_73 = arith.constant 0 : index
    %c0_74 = arith.constant 0 : index
    %c5_75 = arith.constant 5 : index
    %c0_76 = arith.constant 0 : index
    %223 = vector.load %arg7[%c0_73, %c0_74, %c5_75, %c0_76] : memref<1x2x8x32xf32, #tpu.memory_space<vmem>>, vector<1x2x1x32xf32>
    %224 = vector.shape_cast %223 : vector<1x2x1x32xf32> to vector<2x32xf32>
    %225 = vector.shape_cast %222 : vector<2x32xf32> to vector<1x2x1x32xf32>
    tpu.vector_store %arg7[%c0_73, %c0_74, %c5_75, %c0_76], %225 {strides = array<i32>} : memref<1x2x8x32xf32, #tpu.memory_space<vmem>>, vector<1x2x1x32xf32>,
    %cst_77 = arith.constant dense<0.000000e+00> : vector<2x96xf32>
    %226 = tpu.matmul %222, %4, %cst_77 {dimension_numbers = #tpu.dot_dimension_numbers<[1], [0], [0], [1], [0, 0, 1, 1], [], []>} : vector<2x32xf32>, vector<32x96xf32>, vector<2x96xf32> -> vector<2x96xf32>
    %c0_78 = arith.constant 0 : index
    %c0_79 = arith.constant 0 : index
    %c6 = arith.constant 6 : index
    %c0_80 = arith.constant 0 : index
    %227 = vector.load %arg3[%c0_78, %c0_79, %c6, %c0_80] : memref<1x2x8x96xf32, #tpu.memory_space<vmem>>, vector<1x2x1x96xf32>
    %228 = vector.shape_cast %227 : vector<1x2x1x96xf32> to vector<2x96xf32>
    %229 = vector.broadcast %6 : vector<1x96xf32> to vector<2x96xf32>
    %230 = arith.addf %228, %229 : vector<2x96xf32>
    %231 = vector.extract_strided_slice %230 {offsets = [0, 0], sizes = [2, 32], strides = [1, 1]} : vector<2x96xf32> to vector<2x32xf32>
    %232 = vector.extract_strided_slice %226 {offsets = [0, 0], sizes = [2, 32], strides = [1, 1]} : vector<2x96xf32> to vector<2x32xf32>
    %233 = arith.addf %231, %232 : vector<2x32xf32>
    %234 = arith.negf %233 : vector<2x32xf32>
    %235 = math.exp %234 : vector<2x32xf32>
    %cst_81 = arith.constant 1.000000e+00 : f32
    %236 = vector.broadcast %cst_81 : f32 to vector<2x32xf32>
    %237 = arith.addf %236, %235 : vector<2x32xf32>
    %238 = arith.divf %236, %237 : vector<2x32xf32>
    %239 = vector.extract_strided_slice %230 {offsets = [0, 32], sizes = [2, 32], strides = [1, 1]} : vector<2x96xf32> to vector<2x32xf32>
    %240 = vector.extract_strided_slice %226 {offsets = [0, 32], sizes = [2, 32], strides = [1, 1]} : vector<2x96xf32> to vector<2x32xf32>
    %241 = arith.addf %239, %240 : vector<2x32xf32>
    %242 = arith.negf %241 : vector<2x32xf32>
    %243 = math.exp %242 : vector<2x32xf32>
    %cst_82 = arith.constant 1.000000e+00 : f32
    %244 = vector.broadcast %cst_82 : f32 to vector<2x32xf32>
    %245 = arith.addf %244, %243 : vector<2x32xf32>
    %246 = arith.divf %244, %245 : vector<2x32xf32>
    %247 = vector.extract_strided_slice %230 {offsets = [0, 64], sizes = [2, 32], strides = [1, 1]} : vector<2x96xf32> to vector<2x32xf32>
    %248 = vector.extract_strided_slice %226 {offsets = [0, 64], sizes = [2, 32], strides = [1, 1]} : vector<2x96xf32> to vector<2x32xf32>
    %249 = vector.broadcast %8 : vector<1x32xf32> to vector<2x32xf32>
    %250 = arith.addf %248, %249 : vector<2x32xf32>
    %251 = arith.mulf %238, %250 : vector<2x32xf32>
    %252 = arith.addf %247, %251 : vector<2x32xf32>
    %253 = math.tanh %252 : vector<2x32xf32>
    %cst_83 = arith.constant 1.000000e+00 : f32
    %254 = vector.broadcast %cst_83 : f32 to vector<2x32xf32>
    %255 = arith.subf %254, %246 : vector<2x32xf32>
    %256 = arith.mulf %255, %253 : vector<2x32xf32>
    %257 = arith.mulf %246, %222 : vector<2x32xf32>
    %258 = arith.addf %256, %257 : vector<2x32xf32>
    %c0_84 = arith.constant 0 : index
    %c0_85 = arith.constant 0 : index
    %c6_86 = arith.constant 6 : index
    %c0_87 = arith.constant 0 : index
    %259 = vector.load %arg7[%c0_84, %c0_85, %c6_86, %c0_87] : memref<1x2x8x32xf32, #tpu.memory_space<vmem>>, vector<1x2x1x32xf32>
    %260 = vector.shape_cast %259 : vector<1x2x1x32xf32> to vector<2x32xf32>
    %261 = vector.shape_cast %258 : vector<2x32xf32> to vector<1x2x1x32xf32>
    tpu.vector_store %arg7[%c0_84, %c0_85, %c6_86, %c0_87], %261 {strides = array<i32>} : memref<1x2x8x32xf32, #tpu.memory_space<vmem>>, vector<1x2x1x32xf32>,
    %cst_88 = arith.constant dense<0.000000e+00> : vector<2x96xf32>
    %262 = tpu.matmul %258, %4, %cst_88 {dimension_numbers = #tpu.dot_dimension_numbers<[1], [0], [0], [1], [0, 0, 1, 1], [], []>} : vector<2x32xf32>, vector<32x96xf32>, vector<2x96xf32> -> vector<2x96xf32>
    %c0_89 = arith.constant 0 : index
    %c0_90 = arith.constant 0 : index
    %c7 = arith.constant 7 : index
    %c0_91 = arith.constant 0 : index
    %263 = vector.load %arg3[%c0_89, %c0_90, %c7, %c0_91] : memref<1x2x8x96xf32, #tpu.memory_space<vmem>>, vector<1x2x1x96xf32>
    %264 = vector.shape_cast %263 : vector<1x2x1x96xf32> to vector<2x96xf32>
    %265 = vector.broadcast %6 : vector<1x96xf32> to vector<2x96xf32>
    %266 = arith.addf %264, %265 : vector<2x96xf32>
    %267 = vector.extract_strided_slice %266 {offsets = [0, 0], sizes = [2, 32], strides = [1, 1]} : vector<2x96xf32> to vector<2x32xf32>
    %268 = vector.extract_strided_slice %262 {offsets = [0, 0], sizes = [2, 32], strides = [1, 1]} : vector<2x96xf32> to vector<2x32xf32>
    %269 = arith.addf %267, %268 : vector<2x32xf32>
    %270 = arith.negf %269 : vector<2x32xf32>
    %271 = math.exp %270 : vector<2x32xf32>
    %cst_92 = arith.constant 1.000000e+00 : f32
    %272 = vector.broadcast %cst_92 : f32 to vector<2x32xf32>
    %273 = arith.addf %272, %271 : vector<2x32xf32>
    %274 = arith.divf %272, %273 : vector<2x32xf32>
    %275 = vector.extract_strided_slice %266 {offsets = [0, 32], sizes = [2, 32], strides = [1, 1]} : vector<2x96xf32> to vector<2x32xf32>
    %276 = vector.extract_strided_slice %262 {offsets = [0, 32], sizes = [2, 32], strides = [1, 1]} : vector<2x96xf32> to vector<2x32xf32>
    %277 = arith.addf %275, %276 : vector<2x32xf32>
    %278 = arith.negf %277 : vector<2x32xf32>
    %279 = math.exp %278 : vector<2x32xf32>
    %cst_93 = arith.constant 1.000000e+00 : f32
    %280 = vector.broadcast %cst_93 : f32 to vector<2x32xf32>
    %281 = arith.addf %280, %279 : vector<2x32xf32>
    %282 = arith.divf %280, %281 : vector<2x32xf32>
    %283 = vector.extract_strided_slice %266 {offsets = [0, 64], sizes = [2, 32], strides = [1, 1]} : vector<2x96xf32> to vector<2x32xf32>
    %284 = vector.extract_strided_slice %262 {offsets = [0, 64], sizes = [2, 32], strides = [1, 1]} : vector<2x96xf32> to vector<2x32xf32>
    %285 = vector.broadcast %8 : vector<1x32xf32> to vector<2x32xf32>
    %286 = arith.addf %284, %285 : vector<2x32xf32>
    %287 = arith.mulf %274, %286 : vector<2x32xf32>
    %288 = arith.addf %283, %287 : vector<2x32xf32>
    %289 = math.tanh %288 : vector<2x32xf32>
    %cst_94 = arith.constant 1.000000e+00 : f32
    %290 = vector.broadcast %cst_94 : f32 to vector<2x32xf32>
    %291 = arith.subf %290, %282 : vector<2x32xf32>
    %292 = arith.mulf %291, %289 : vector<2x32xf32>
    %293 = arith.mulf %282, %258 : vector<2x32xf32>
    %294 = arith.addf %292, %293 : vector<2x32xf32>
    %c0_95 = arith.constant 0 : index
    %c0_96 = arith.constant 0 : index
    %c7_97 = arith.constant 7 : index
    %c0_98 = arith.constant 0 : index
    %295 = vector.load %arg7[%c0_95, %c0_96, %c7_97, %c0_98] : memref<1x2x8x32xf32, #tpu.memory_space<vmem>>, vector<1x2x1x32xf32>
    %296 = vector.shape_cast %295 : vector<1x2x1x32xf32> to vector<2x32xf32>
    %297 = vector.shape_cast %294 : vector<2x32xf32> to vector<1x2x1x32xf32>
    tpu.vector_store %arg7[%c0_95, %c0_96, %c7_97, %c0_98], %297 {strides = array<i32>} : memref<1x2x8x32xf32, #tpu.memory_space<vmem>>, vector<1x2x1x32xf32>,
    %c0_99 = arith.constant 0 : index
    %c0_100 = arith.constant 0 : index
    %298 = vector.load %arg9[%c0_99, %c0_100] : memref<2x32xf32, #tpu.memory_space<vmem>>, vector<2x32xf32>
    tpu.vector_store %arg9[%c0_99, %c0_100], %294 {strides = array<i32>} : memref<2x32xf32, #tpu.memory_space<vmem>>, vector<2x32xf32>,
    %c0_i32_101 = arith.constant 0 : i32
    %299 = arith.cmpi eq, %arg2, %c0_i32_101 : i32
    %300 = arith.extui %299 : i1 to i32
    %c0_i32_102 = arith.constant 0 : i32
    %301 = arith.cmpi ne, %300, %c0_i32_102 : i32
    scf.if %301 {
      %c0_103 = arith.constant 0 : index
      %c0_104 = arith.constant 0 : index
      %302 = vector.load %arg9[%c0_103, %c0_104] : memref<2x32xf32, #tpu.memory_space<vmem>>, vector<2x32xf32>
      %c0_105 = arith.constant 0 : index
      %c0_106 = arith.constant 0 : index
      %c0_107 = arith.constant 0 : index
      %303 = vector.load %arg8[%c0_105, %c0_106, %c0_107] : memref<1x2x32xf32, #tpu.memory_space<vmem>>, vector<1x2x32xf32>
      %304 = vector.shape_cast %303 : vector<1x2x32xf32> to vector<2x32xf32>
      %305 = vector.shape_cast %302 : vector<2x32xf32> to vector<1x2x32xf32>
      tpu.vector_store %arg8[%c0_105, %c0_106, %c0_107], %305 {strides = array<i32>} : memref<1x2x32xf32, #tpu.memory_space<vmem>>, vector<1x2x32xf32>,
    } else {
    }
    return
  }
  func.func @transform_0(%arg0: i32, %arg1: i32, %arg2: i32) -> (i32, i32, i32, i32) {
    %c2_i32 = arith.constant 2 : i32
    %0 = arith.muli %c2_i32, %arg2 : i32
    %c0_i32 = arith.constant 0 : i32
    %1 = arith.subi %c0_i32, %0 : i32
    %2 = arith.muli %arg0, %1 : i32
    %3 = arith.addi %arg2, %2 : i32
    %c0_i32_0 = arith.constant 0 : i32
    %c0_i32_1 = arith.constant 0 : i32
    return %arg0, %arg1, %3, %c0_i32_0 : i32, i32, i32, i32
  }
  func.func @transform_1(%arg0: i32, %arg1: i32, %arg2: i32) -> (i32, i32, i32) {
    %c0_i32 = arith.constant 0 : i32
    %c0_i32_0 = arith.constant 0 : i32
    %c0_i32_1 = arith.constant 0 : i32
    return %arg0, %c0_i32, %c0_i32_0 : i32, i32, i32
  }
  func.func @transform_2(%arg0: i32, %arg1: i32, %arg2: i32) -> (i32, i32, i32) {
    %c0_i32 = arith.constant 0 : i32
    %c0_i32_0 = arith.constant 0 : i32
    %c0_i32_1 = arith.constant 0 : i32
    return %arg0, %c0_i32, %c0_i32_0 : i32, i32, i32
  }
  func.func @transform_3(%arg0: i32, %arg1: i32, %arg2: i32) -> (i32, i32, i32) {
    %c0_i32 = arith.constant 0 : i32
    %c0_i32_0 = arith.constant 0 : i32
    %c0_i32_1 = arith.constant 0 : i32
    return %arg0, %c0_i32, %c0_i32_0 : i32, i32, i32
  }
  func.func @transform_4(%arg0: i32, %arg1: i32, %arg2: i32) -> (i32, i32, i32, i32) {
    %c2_i32 = arith.constant 2 : i32
    %0 = arith.muli %c2_i32, %arg2 : i32
    %c0_i32 = arith.constant 0 : i32
    %1 = arith.subi %c0_i32, %0 : i32
    %2 = arith.muli %arg0, %1 : i32
    %3 = arith.addi %arg2, %2 : i32
    %c0_i32_0 = arith.constant 0 : i32
    %c0_i32_1 = arith.constant 0 : i32
    return %arg0, %arg1, %3, %c0_i32_0 : i32, i32, i32, i32
  }
  func.func @transform_5(%arg0: i32, %arg1: i32, %arg2: i32) -> (i32, i32, i32) {
    %c0_i32 = arith.constant 0 : i32
    %c0_i32_0 = arith.constant 0 : i32
    return %arg0, %arg1, %c0_i32 : i32, i32, i32
  }
}

</mosaic_0001>

<llo_original>
// kernel: tpu_custom_call.1
$region0: #{tpu_custom_call.1}
  #allocation0 [shape = 'u32[]', space=smem, size = 0x4, offset = 0x4, fixed_abs, tag = 'smem constant byte address 0x4 - core index']
  #allocation1 [shape = 'u32[144,128]{1,0:T(1,128)}', space=vmem, size = 0x12000, scoped, tag = 'internal scratch']
  #allocation2 [shape = 'f32[2,32]{1,0:T(2,128)}', space=vmem, size = 0x400, scoped, tag = 'scratch operand']
  %s0 = inlined_call_operand.hbm [shape: f32[1,2,8,96], index: 0, kind: input, shape index: {}]
  %s1 = inlined_call_operand.hbm [shape: f32[1,32,96], index: 1, kind: input, shape index: {}]
  %s2 = inlined_call_operand.vmem [shape: f32[1,1,96], index: 2, kind: input, shape index: {}]
  %s3 = inlined_call_operand.vmem [shape: f32[1,1,32], index: 3, kind: input, shape index: {}]
  %s4 = inlined_call_operand.hbm [shape: f32[1,2,8,32], index: 4, kind: output, shape index: {0}]
  %s5 = inlined_call_operand.hbm [shape: f32[1,2,32], index: 5, kind: output, shape index: {1}]
  %6 = xla_tuple %s4, %s5
  %s7 = sld [smem:[#allocation0]]
  $region50: #{tpu_custom_call.1} parent=0
    _
  %s9 = ssub.s32 1, %s7
  %s10 = scalar_select 0, %s9, %s7
  $region1: #{tpu_custom_call.1} parent=0
    #allocation3 [shape = 'u8[8192]{0}', space=vmem, size = 0x2000, scoped, tag = 'input window, operand 0, single buffered']
    #allocation4 [shape = 's32[1]{0}', space=sflag, size = 0x4, scoped, tag = 'scoped memory for tpu_custom_call.1']
    #allocation5 [shape = 's32[1]{0}', space=sflag, size = 0x4, scoped, tag = 'scoped memory for tpu_custom_call.1']
    #allocation6 [shape = 'u8[16384]{0}', space=vmem, size = 0x4000, scoped, tag = 'input window, operand 1, single buffered']
    #allocation7 [shape = 's32[1]{0}', space=sflag, size = 0x4, scoped, tag = 'scoped memory for tpu_custom_call.1']
    #allocation8 [shape = 'u8[8192]{0}', space=vmem, size = 0x2000, scoped, tag = 'output window, operand 0, single buffered']
    #allocation9 [shape = 'u8[1024]{0}', space=vmem, size = 0x400, scoped, tag = 'output window, operand 1, single buffered']
    #allocation10 [shape = 's32[1]{0}', space=sflag, size = 0x4, scoped, tag = 'scoped memory for tpu_custom_call.1']
    %11 = vsyncpa [#allocation4], 0
    %12 = vsyncpa [#allocation7], 0
    %13 = vsyncpa [#allocation5], 0
    %14 = vsyncpa [#allocation10], 0
    // Predicated region
    $region2: #{tpu_custom_call.1} parent=1 // pred_check
      _
    $region3: #{tpu_custom_call.1} parent=1 // pred_check_branch
      %16 = sbr.rel (0) target = $region5
    $region4: #{tpu_custom_call.1} parent=1 // pred_region
      %s17 = smul.u32 0, 2
      %s18 = ssub.s32 0, %s17
      %s19 = smul.u32 0, %s18
      %s20 = sadd.s32 0, %s19
      %s22 = ssub.s32 256, 256
      %23 = vsyncadd [#allocation4], %s22
      %s24 = smul.addr %s20, 128
      %s25 = scalar_lea.hbm %s0, %s24
      %s26 = sshll.u32 [#allocation3], 4
      %s27 = int_to_ptr.vmem [resolvable:$true] %s26
      %32 = dma.hbm_to_vmem [thread:$0]  %s25, 256, %s27, [#allocation4], 128, 128, 8
    $region5: #{tpu_custom_call.1} parent=1 // pred_fallthru
      _
    // Predicated region
    $region6: #{tpu_custom_call.1} parent=1 // pred_check
      _
    $region7: #{tpu_custom_call.1} parent=1 // pred_check_branch
      %34 = sbr.rel (0) target = $region9
    $region8: #{tpu_custom_call.1} parent=1 // pred_region
      %s36 = ssub.s32 512, 512
      %37 = vsyncadd [#allocation7], %s36
      %s38 = sshll.u32 [#allocation6], 4
      %s39 = int_to_ptr.vmem [resolvable:$true] %s38
      %44 = dma.hbm_to_vmem [thread:$0]  %s1, 512, %s39, [#allocation7], 128, 128, 8
    $region9: #{tpu_custom_call.1} parent=1 // pred_fallthru
      _
    // Predicated region
    $region10: #{tpu_custom_call.1} parent=1 // pred_check
      _
    $region11: #{tpu_custom_call.1} parent=1 // pred_check_branch
      %46 = sbr.rel (0) target = $region13
    $region12: #{tpu_custom_call.1} parent=1 // pred_region
      _
    $region13: #{tpu_custom_call.1} parent=1 // pred_fallthru
      _
    // Predicated region
    $region14: #{tpu_custom_call.1} parent=1 // pred_check
      _
    $region15: #{tpu_custom_call.1} parent=1 // pred_check_branch
      %48 = sbr.rel (0) target = $region17
    $region16: #{tpu_custom_call.1} parent=1 // pred_region
      _
    $region17: #{tpu_custom_call.1} parent=1 // pred_fallthru
      _
    // Predicated region
    $region18: #{tpu_custom_call.1} parent=1 // pred_check
      _
    $region19: #{tpu_custom_call.1} parent=1 // pred_check_branch
      %50 = sbr.rel (0) target = $region21
    $region20: #{tpu_custom_call.1} parent=1 // pred_region
      %51 = dma.done [#allocation4], 256
    $region21: #{tpu_custom_call.1} parent=1 // pred_fallthru
      _
    // Predicated region
    $region22: #{tpu_custom_call.1} parent=1 // pred_check
      _
    $region23: #{tpu_custom_call.1} parent=1 // pred_check_branch
      %53 = sbr.rel (0) target = $region25
    $region24: #{tpu_custom_call.1} parent=1 // pred_region
      %54 = dma.done [#allocation7], 512
    $region25: #{tpu_custom_call.1} parent=1 // pred_fallthru
      _
    %s55 = smul.u32 0, 2
    %s56 = ssub.s32 0, %s55
    %s57 = smul.u32 0, %s56
    %s58 = sadd.s32 0, %s57
    %s59 = smul.u32 0, 2
    %s60 = ssub.s32 0, %s59
    %s61 = smul.u32 0, %s60
    %s62 = sadd.s32 0, %s61
    %p63 = scmp.eq.s32.totalorder 0, 0
    // Predicated region
    $region26: #{tpu_custom_call.1} parent=1 // pred_check
      %p64 = pneg %p63
    $region27: #{tpu_custom_call.1} parent=1 // pred_check_branch
      %66 = sbr.rel (%p64) target = $region29
    $region28: #{tpu_custom_call.1} parent=1 // pred_region
      %vm67 = vcmask 254976
      %68 = vst.msk [vmem:[#allocation2] sm:$0x3] %vm67, 0.0
    $region29: #{tpu_custom_call.1} parent=1 // pred_fallthru
      _
    %v69 = vld [vmem:[#allocation6] sm:$0xff]
    %v70 = vld [vmem:[#allocation6 + $0x8] sm:$0xff]
    %v71 = vld [vmem:[#allocation6 + $0x10] sm:$0xff]
    %v72 = vld [vmem:[#allocation6 + $0x18] sm:$0xff]
    %v73 = vld [vmem:[%s2] sm:$0x1]
    %v74 = vld [vmem:[%s3] sm:$0x1]
    %v75 = vld [vmem:[#allocation2] sm:$0x3]
    %vm76 = vcmask 261120
    %v78 = vsel %vm76, %v75, 0
    %80 = vmatprep.subr.mxu0 0.0
    %81 = vmatpush1.msra.mxu0 0.0
    %82 = vmatprep.subr.mxu0 0.0
    %83 = vmatpush1.msra.mxu0 0.0
    %84 = vmatprep.subr.mxu0 0.0
    %85 = vmatpush1.msra.mxu0 0.0
    %86 = vmatprep.subr.mxu0 0.0
    %87 = vmatpush1.msra.mxu0 0.0
    %88 = vmatprep.subr.mxu0 0.0
    %89 = vmatpush1.msra.mxu0 0.0
    %90 = vmatprep.subr.mxu0 0.0
    %91 = vmatpush1.msra.mxu0 0.0
    %92 = vmatprep.subr.mxu0 0.0
    %93 = vmatpush1.msra.mxu0 0.0
    %94 = vmatprep.subr.mxu0 0.0
    %95 = vmatpush1.msra.mxu0 0.0
    %96 = vmatprep.subr.mxu0 0.0
    %97 = vmatpush1.msra.mxu0 0.0
    %98 = vmatprep.subr.mxu0 0.0
    %99 = vmatpush1.msra.mxu0 0.0
    %100 = vmatprep.subr.mxu0 0.0
    %101 = vmatpush1.msra.mxu0 0.0
    %102 = vmatprep.subr.mxu0 0.0
    %103 = vmatpush1.msra.mxu0 0.0
    %104 = vmatprep.subr.mxu0 0.0
    %105 = vmatpush1.msra.mxu0 %v72
    %106 = vmatprep.subr.mxu0 0.0
    %107 = vmatpush1.msra.mxu0 %v71
    %108 = vmatprep.subr.mxu0 0.0
    %109 = vmatpush1.msra.mxu0 %v70
    %110 = vmatprep.subr.mxu0 0.0
    %111 = vmatpush1.msra.mxu0 %v69
    %112 = vmatprep.subr.mxu0 0.0
    %113 = vmatpush2.msra.mxu0 0.0
    %114 = vmatprep.subr.mxu0 0.0
    %115 = vmatpush2.msra.mxu0 0.0
    %116 = vmatprep.subr.mxu0 0.0
    %117 = vmatpush2.msra.mxu0 0.0
    %118 = vmatprep.subr.mxu0 0.0
    %119 = vmatpush2.msra.mxu0 0.0
    %120 = vmatprep.subr.mxu0 0.0
    %121 = vmatpush2.msra.mxu0 0.0
    %122 = vmatprep.subr.mxu0 0.0
    %123 = vmatpush2.msra.mxu0 0.0
    %124 = vmatprep.subr.mxu0 0.0
    %125 = vmatpush2.msra.mxu0 0.0
    %126 = vmatprep.subr.mxu0 0.0
    %127 = vmatpush2.msra.mxu0 0.0
    %128 = vmatprep.subr.mxu0 0.0
    %129 = vmatpush2.msra.mxu0 0.0
    %130 = vmatprep.subr.mxu0 0.0
    %131 = vmatpush2.msra.mxu0 0.0
    %132 = vmatprep.subr.mxu0 0.0
    %133 = vmatpush2.msra.mxu0 0.0
    %134 = vmatprep.subr.mxu0 0.0
    %135 = vmatpush2.msra.mxu0 0.0
    %136 = vmatprep.subr.mxu0 0.0
    %137 = vmatpush2.msra.mxu0 0.0
    %138 = vmatprep.subr.mxu0 0.0
    %139 = vmatpush2.msra.mxu0 0.0
    %140 = vmatprep.subr.mxu0 0.0
    %141 = vmatpush2.msra.mxu0 0.0
    %142 = vmatprep.subr.mxu0 0.0
    %143 = vmatpush2.msra.mxu0 0.0
    %144 = vmatprep.mubr.f32.mxu0 0.0
    %145 = vmatmul.mubr.f32.gmra.mxu0 %v78
    %v146 = vpop.f32.mrf.mxu0
    %v147 = vadd.f32 0.0, %v146
    %v148 = vpop.f32.mrf.mxu0
    %149 = vdwg.mxu0
    %v150 = vld [vmem:[#allocation3] sm:$0x1]
    %v151 = vld [vmem:[#allocation3 + $0x8] sm:$0x1]
    %v153 = vlaneseq
    %v154 = vshrl.u32 %v153, 7
    %v155 = vsub.s32 0, %v154
    %v156 = vrot.slane %v73, %v155
    %v158 = vadd.f32 %v150, %v156
    %v159 = vadd.f32 %v151, %v156
    %v161 = vrot.slane %v147, 1
    %v164 = vadd.f32 %v158, %v147
    %v165 = vadd.f32 %v159, %v161
    %v166 = vxor.u32 %v164, 2147483648
    %v167 = vxor.u32 %v165, 2147483648
    %v168 = vmul.f32 %v166, 1.442695
    %v169 = vpow.pop %v168
    %v170 = vmul.f32 %v167, 1.442695
    %v171 = vpow.pop %v170
    %v172 = vadd.f32 %v169, 1.0
    %v173 = vadd.f32 %v171, 1.0
    %v174 = vrcp.pop %v172
    %v175 = vmul.f32 1.0, %v174
    %v176 = vrcp.pop %v173
    %v177 = vmul.f32 1.0, %v176
    %v179 = vlaneseq
    %v180 = vshrl.u32 %v179, 7
    %v181 = vsub.s32 0, %v180
    %v182 = vrot.slane %v74, %v181
    %183 = vrot.lane.b32.xlu0 %v182, 64
    %v184 = vpop.permute.xlu0 %183
    %v186 = vadd.f32 %v147, %v184
    %v188 = vrot.slane %v186, 1
    %189 = vrot.lane.b32.xlu0 %v186, 64
    %v190 = vpop.permute.xlu0 %189
    %191 = vrot.lane.b32.xlu0 %v188, 64
    %v192 = vpop.permute.xlu0 %191
    %v195 = vmul.f32 %v175, %v190
    %v196 = vmul.f32 %v177, %v192
    %199 = vrot.lane.b32.xlu0 %v195, 64
    %v200 = vpop.permute.xlu0 %199
    %201 = vrot.lane.b32.xlu0 %v196, 64
    %v202 = vpop.permute.xlu0 %201
    %v205 = vadd.f32 %v158, %v200
    %v206 = vadd.f32 %v159, %v202
    %v207 = vtanh.pop %v205
    %v208 = vtanh.pop %v206
    %v209 = vsub.f32 1.0, %v175
    %v210 = vsub.f32 1.0, %v177
    %213 = vrot.lane.b32.xlu0 %v207, 96
    %v214 = vpop.permute.xlu0 %213
    %215 = vrot.lane.b32.xlu0 %v208, 96
    %v216 = vpop.permute.xlu0 %215
    %v219 = vmul.f32 %v209, %v214
    %v220 = vmul.f32 %v210, %v216
    %v221 = vrot.slane %v75, 1
    %222 = vrot.lane.b32.xlu0 %v75, 32
    %v223 = vpop.permute.xlu0 %222
    %224 = vrot.lane.b32.xlu0 %v221, 32
    %v225 = vpop.permute.xlu0 %224
    %v228 = vmul.f32 %v175, %v223
    %v229 = vmul.f32 %v177, %v225
    %v230 = vadd.f32 %v219, %v228
    %v231 = vadd.f32 %v220, %v229
    %234 = vrot.lane.b32.xlu0 %v230, 96
    %v235 = vpop.permute.xlu0 %234
    %236 = vrot.lane.b32.xlu0 %v231, 96
    %v237 = vpop.permute.xlu0 %236
    %vm240 = vcmask 253952
    %241 = vst.msk [vmem:[#allocation8] sm:$0x1] %vm240, %v235
    %242 = vst.msk [vmem:[#allocation8 + $0x8] sm:$0x1] %vm240, %v237
    %v243 = vrot.slane %v231, 7
    %vm244 = vcmask 1041409
    %v245 = vsel %vm244, %v243, %v230
    %246 = vrot.lane.b32.xlu0 %v245, 96
    %v247 = vpop.permute.xlu0 %246
    %v248 = vsel %vm76, %v247, 0
    %250 = vmatprep.subr.mxu0 0.0
    %251 = vmatpush1.msra.mxu0 0.0
    %252 = vmatprep.subr.mxu0 0.0
    %253 = vmatpush1.msra.mxu0 0.0
    %254 = vmatprep.subr.mxu0 0.0
    %255 = vmatpush1.msra.mxu0 0.0
    %256 = vmatprep.subr.mxu0 0.0
    %257 = vmatpush1.msra.mxu0 0.0
    %258 = vmatprep.subr.mxu0 0.0
    %259 = vmatpush1.msra.mxu0 0.0
    %260 = vmatprep.subr.mxu0 0.0
    %261 = vmatpush1.msra.mxu0 0.0
    %262 = vmatprep.subr.mxu0 0.0
    %263 = vmatpush1.msra.mxu0 0.0
    %264 = vmatprep.subr.mxu0 0.0
    %265 = vmatpush1.msra.mxu0 0.0
    %266 = vmatprep.subr.mxu0 0.0
    %267 = vmatpush1.msra.mxu0 0.0
    %268 = vmatprep.subr.mxu0 0.0
    %269 = vmatpush1.msra.mxu0 0.0
    %270 = vmatprep.subr.mxu0 0.0
    %271 = vmatpush1.msra.mxu0 0.0
    %272 = vmatprep.subr.mxu0 0.0
    %273 = vmatpush1.msra.mxu0 0.0
    %274 = vmatprep.subr.mxu0 0.0
    %275 = vmatpush1.msra.mxu0 %v72
    %276 = vmatprep.subr.mxu0 0.0
    %277 = vmatpush1.msra.mxu0 %v71
    %278 = vmatprep.subr.mxu0 0.0
    %279 = vmatpush1.msra.mxu0 %v70
    %280 = vmatprep.subr.mxu0 0.0
    %281 = vmatpush1.msra.mxu0 %v69
    %282 = vmatprep.subr.mxu0 0.0
    %283 = vmatpush2.msra.mxu0 0.0
    %284 = vmatprep.subr.mxu0 0.0
    %285 = vmatpush2.msra.mxu0 0.0
    %286 = vmatprep.subr.mxu0 0.0
    %287 = vmatpush2.msra.mxu0 0.0
    %288 = vmatprep.subr.mxu0 0.0
    %289 = vmatpush2.msra.mxu0 0.0
    %290 = vmatprep.subr.mxu0 0.0
    %291 = vmatpush2.msra.mxu0 0.0
    %292 = vmatprep.subr.mxu0 0.0
    %293 = vmatpush2.msra.mxu0 0.0
    %294 = vmatprep.subr.mxu0 0.0
    %295 = vmatpush2.msra.mxu0 0.0
    %296 = vmatprep.subr.mxu0 0.0
    %297 = vmatpush2.msra.mxu0 0.0
    %298 = vmatprep.subr.mxu0 0.0
    %299 = vmatpush2.msra.mxu0 0.0
    %300 = vmatprep.subr.mxu0 0.0
    %301 = vmatpush2.msra.mxu0 0.0
    %302 = vmatprep.subr.mxu0 0.0
    %303 = vmatpush2.msra.mxu0 0.0
    %304 = vmatprep.subr.mxu0 0.0
    %305 = vmatpush2.msra.mxu0 0.0
    %306 = vmatprep.subr.mxu0 0.0
    %307 = vmatpush2.msra.mxu0 0.0
    %308 = vmatprep.subr.mxu0 0.0
    %309 = vmatpush2.msra.mxu0 0.0
    %310 = vmatprep.subr.mxu0 0.0
    %311 = vmatpush2.msra.mxu0 0.0
    %312 = vmatprep.subr.mxu0 0.0
    %313 = vmatpush2.msra.mxu0 0.0
    %314 = vmatprep.mubr.f32.mxu0 0.0
    %315 = vmatmul.mubr.f32.gmra.mxu0 %v248
    %v316 = vpop.f32.mrf.mxu0
    %v317 = vadd.f32 0.0, %v316
    %v318 = vpop.f32.mrf.mxu0
    %319 = vdwg.mxu0
    %v320 = vld [vmem:[#allocation3 + $0x1] sm:$0x1]
    %v321 = vld [vmem:[#allocation3 + $0x9] sm:$0x1]
    %v322 = vadd.f32 %v320, %v156
    %v323 = vadd.f32 %v321, %v156
    %v325 = vrot.slane %v317, 1
    %v328 = vadd.f32 %v322, %v317
    %v329 = vadd.f32 %v323, %v325
    %v330 = vxor.u32 %v328, 2147483648
    %v331 = vxor.u32 %v329, 2147483648
    %v332 = vmul.f32 %v330, 1.442695
    %v333 = vpow.pop %v332
    %v334 = vmul.f32 %v331, 1.442695
    %v335 = vpow.pop %v334
    %v336 = vadd.f32 %v333, 1.0
    %v337 = vadd.f32 %v335, 1.0
    %v338 = vrcp.pop %v336
    %v339 = vmul.f32 1.0, %v338
    %v340 = vrcp.pop %v337
    %v341 = vmul.f32 1.0, %v340
    %v342 = vadd.f32 %v317, %v184
    %v344 = vrot.slane %v342, 1
    %345 = vrot.lane.b32.xlu0 %v342, 64
    %v346 = vpop.permute.xlu0 %345
    %347 = vrot.lane.b32.xlu0 %v344, 64
    %v348 = vpop.permute.xlu0 %347
    %v351 = vmul.f32 %v339, %v346
    %v352 = vmul.f32 %v341, %v348
    %355 = vrot.lane.b32.xlu0 %v351, 64
    %v356 = vpop.permute.xlu0 %355
    %357 = vrot.lane.b32.xlu0 %v352, 64
    %v358 = vpop.permute.xlu0 %357
    %v361 = vadd.f32 %v322, %v356
    %v362 = vadd.f32 %v323, %v358
    %v363 = vtanh.pop %v361
    %v364 = vtanh.pop %v362
    %v365 = vsub.f32 1.0, %v339
    %v366 = vsub.f32 1.0, %v341
    %369 = vrot.lane.b32.xlu0 %v363, 96
    %v370 = vpop.permute.xlu0 %369
    %371 = vrot.lane.b32.xlu0 %v364, 96
    %v372 = vpop.permute.xlu0 %371
    %v375 = vmul.f32 %v365, %v370
    %v376 = vmul.f32 %v366, %v372
    %v377 = vmul.f32 %v339, %v230
    %v378 = vmul.f32 %v341, %v231
    %v379 = vadd.f32 %v375, %v377
    %v380 = vadd.f32 %v376, %v378
    %383 = vrot.lane.b32.xlu0 %v379, 96
    %v384 = vpop.permute.xlu0 %383
    %385 = vrot.lane.b32.xlu0 %v380, 96
    %v386 = vpop.permute.xlu0 %385
    %389 = vst.msk [vmem:[#allocation8 + $0x1] sm:$0x1] %vm240, %v384
    %390 = vst.msk [vmem:[#allocation8 + $0x9] sm:$0x1] %vm240, %v386
    %v391 = vrot.slane %v380, 7
    %v392 = vsel %vm244, %v391, %v379
    %393 = vrot.lane.b32.xlu0 %v392, 96
    %v394 = vpop.permute.xlu0 %393
    %v395 = vsel %vm76, %v394, 0
    %397 = vmatprep.subr.mxu0 0.0
    %398 = vmatpush1.msra.mxu0 0.0
    %399 = vmatprep.subr.mxu0 0.0
    %400 = vmatpush1.msra.mxu0 0.0
    %401 = vmatprep.subr.mxu0 0.0
    %402 = vmatpush1.msra.mxu0 0.0
    %403 = vmatprep.subr.mxu0 0.0
    %404 = vmatpush1.msra.mxu0 0.0
    %405 = vmatprep.subr.mxu0 0.0
    %406 = vmatpush1.msra.mxu0 0.0
    %407 = vmatprep.subr.mxu0 0.0
    %408 = vmatpush1.msra.mxu0 0.0
    %409 = vmatprep.subr.mxu0 0.0
    %410 = vmatpush1.msra.mxu0 0.0
    %411 = vmatprep.subr.mxu0 0.0
    %412 = vmatpush1.msra.mxu0 0.0
    %413 = vmatprep.subr.mxu0 0.0
    %414 = vmatpush1.msra.mxu0 0.0
    %415 = vmatprep.subr.mxu0 0.0
    %416 = vmatpush1.msra.mxu0 0.0
    %417 = vmatprep.subr.mxu0 0.0
    %418 = vmatpush1.msra.mxu0 0.0
    %419 = vmatprep.subr.mxu0 0.0
    %420 = vmatpush1.msra.mxu0 0.0
    %421 = vmatprep.subr.mxu0 0.0
    %422 = vmatpush1.msra.mxu0 %v72
    %423 = vmatprep.subr.mxu0 0.0
    %424 = vmatpush1.msra.mxu0 %v71
    %425 = vmatprep.subr.mxu0 0.0
    %426 = vmatpush1.msra.mxu0 %v70
    %427 = vmatprep.subr.mxu0 0.0
    %428 = vmatpush1.msra.mxu0 %v69
    %429 = vmatprep.subr.mxu0 0.0
    %430 = vmatpush2.msra.mxu0 0.0
    %431 = vmatprep.subr.mxu0 0.0
    %432 = vmatpush2.msra.mxu0 0.0
    %433 = vmatprep.subr.mxu0 0.0
    %434 = vmatpush2.msra.mxu0 0.0
    %435 = vmatprep.subr.mxu0 0.0
    %436 = vmatpush2.msra.mxu0 0.0
    %437 = vmatprep.subr.mxu0 0.0
    %438 = vmatpush2.msra.mxu0 0.0
    %439 = vmatprep.subr.mxu0 0.0
    %440 = vmatpush2.msra.mxu0 0.0
    %441 = vmatprep.subr.mxu0 0.0
    %442 = vmatpush2.msra.mxu0 0.0
    %443 = vmatprep.subr.mxu0 0.0
    %444 = vmatpush2.msra.mxu0 0.0
    %445 = vmatprep.subr.mxu0 0.0
    %446 = vmatpush2.msra.mxu0 0.0
    %447 = vmatprep.subr.mxu0 0.0
    %448 = vmatpush2.msra.mxu0 0.0
    %449 = vmatprep.subr.mxu0 0.0
    %450 = vmatpush2.msra.mxu0 0.0
    %451 = vmatprep.subr.mxu0 0.0
    %452 = vmatpush2.msra.mxu0 0.0
    %453 = vmatprep.subr.mxu0 0.0
    %454 = vmatpush2.msra.mxu0 0.0
    %455 = vmatprep.subr.mxu0 0.0
    %456 = vmatpush2.msra.mxu0 0.0
    %457 = vmatprep.subr.mxu0 0.0
    %458 = vmatpush2.msra.mxu0 0.0
    %459 = vmatprep.subr.mxu0 0.0
    %460 = vmatpush2.msra.mxu0 0.0
    %461 = vmatprep.mubr.f32.mxu0 0.0
    %462 = vmatmul.mubr.f32.gmra.mxu0 %v395
    %v463 = vpop.f32.mrf.mxu0
    %v464 = vadd.f32 0.0, %v463
    %v465 = vpop.f32.mrf.mxu0
    %466 = vdwg.mxu0
    %v467 = vld [vmem:[#allocation3 + $0x2] sm:$0x1]
    %v468 = vld [vmem:[#allocation3 + $0xa] sm:$0x1]
    %v469 = vadd.f32 %v467, %v156
    %v470 = vadd.f32 %v468, %v156
    %v472 = vrot.slane %v464, 1
    %v475 = vadd.f32 %v469, %v464
    %v476 = vadd.f32 %v470, %v472
    %v477 = vxor.u32 %v475, 2147483648
    %v478 = vxor.u32 %v476, 2147483648
    %v479 = vmul.f32 %v477, 1.442695
    %v480 = vpow.pop %v479
    %v481 = vmul.f32 %v478, 1.442695
    %v482 = vpow.pop %v481
    %v483 = vadd.f32 %v480, 1.0
    %v484 = vadd.f32 %v482, 1.0
    %v485 = vrcp.pop %v483
    %v486 = vmul.f32 1.0, %v485
    %v487 = vrcp.pop %v484
    %v488 = vmul.f32 1.0, %v487
    %v489 = vadd.f32 %v464, %v184
    %v491 = vrot.slane %v489, 1
    %492 = vrot.lane.b32.xlu0 %v489, 64
    %v493 = vpop.permute.xlu0 %492
    %494 = vrot.lane.b32.xlu0 %v491, 64
    %v495 = vpop.permute.xlu0 %494
    %v498 = vmul.f32 %v486, %v493
    %v499 = vmul.f32 %v488, %v495
    %502 = vrot.lane.b32.xlu0 %v498, 64
    %v503 = vpop.permute.xlu0 %502
    %504 = vrot.lane.b32.xlu0 %v499, 64
    %v505 = vpop.permute.xlu0 %504
    %v508 = vadd.f32 %v469, %v503
    %v509 = vadd.f32 %v470, %v505
    %v510 = vtanh.pop %v508
    %v511 = vtanh.pop %v509
    %v512 = vsub.f32 1.0, %v486
    %v513 = vsub.f32 1.0, %v488
    %516 = vrot.lane.b32.xlu0 %v510, 96
    %v517 = vpop.permute.xlu0 %516
    %518 = vrot.lane.b32.xlu0 %v511, 96
    %v519 = vpop.permute.xlu0 %518
    %v522 = vmul.f32 %v512, %v517
    %v523 = vmul.f32 %v513, %v519
    %v524 = vmul.f32 %v486, %v379
    %v525 = vmul.f32 %v488, %v380
    %v526 = vadd.f32 %v522, %v524
    %v527 = vadd.f32 %v523, %v525
    %530 = vrot.lane.b32.xlu0 %v526, 96
    %v531 = vpop.permute.xlu0 %530
    %532 = vrot.lane.b32.xlu0 %v527, 96
    %v533 = vpop.permute.xlu0 %532
    %536 = vst.msk [vmem:[#allocation8 + $0x2] sm:$0x1] %vm240, %v531
    %537 = vst.msk [vmem:[#allocation8 + $0xa] sm:$0x1] %vm240, %v533
    %v538 = vrot.slane %v527, 7
    %v539 = vsel %vm244, %v538, %v526
    %540 = vrot.lane.b32.xlu0 %v539, 96
    %v541 = vpop.permute.xlu0 %540
    %v542 = vsel %vm76, %v541, 0
    %544 = vmatprep.subr.mxu0 0.0
    %545 = vmatpush1.msra.mxu0 0.0
    %546 = vmatprep.subr.mxu0 0.0
    %547 = vmatpush1.msra.mxu0 0.0
    %548 = vmatprep.subr.mxu0 0.0
    %549 = vmatpush1.msra.mxu0 0.0
    %550 = vmatprep.subr.mxu0 0.0
    %551 = vmatpush1.msra.mxu0 0.0
    %552 = vmatprep.subr.mxu0 0.0
    %553 = vmatpush1.msra.mxu0 0.0
    %554 = vmatprep.subr.mxu0 0.0
    %555 = vmatpush1.msra.mxu0 0.0
    %556 = vmatprep.subr.mxu0 0.0
    %557 = vmatpush1.msra.mxu0 0.0
    %558 = vmatprep.subr.mxu0 0.0
    %559 = vmatpush1.msra.mxu0 0.0
    %560 = vmatprep.subr.mxu0 0.0
    %561 = vmatpush1.msra.mxu0 0.0
    %562 = vmatprep.subr.mxu0 0.0
    %563 = vmatpush1.msra.mxu0 0.0
    %564 = vmatprep.subr.mxu0 0.0
    %565 = vmatpush1.msra.mxu0 0.0
    %566 = vmatprep.subr.mxu0 0.0
    %567 = vmatpush1.msra.mxu0 0.0
    %568 = vmatprep.subr.mxu0 0.0
    %569 = vmatpush1.msra.mxu0 %v72
    %570 = vmatprep.subr.mxu0 0.0
    %571 = vmatpush1.msra.mxu0 %v71
    %572 = vmatprep.subr.mxu0 0.0
    %573 = vmatpush1.msra.mxu0 %v70
    %574 = vmatprep.subr.mxu0 0.0
    %575 = vmatpush1.msra.mxu0 %v69
    %576 = vmatprep.subr.mxu0 0.0
    %577 = vmatpush2.msra.mxu0 0.0
    %578 = vmatprep.subr.mxu0 0.0
    %579 = vmatpush2.msra.mxu0 0.0
    %580 = vmatprep.subr.mxu0 0.0
    %581 = vmatpush2.msra.mxu0 0.0
    %582 = vmatprep.subr.mxu0 0.0
    %583 = vmatpush2.msra.mxu0 0.0
    %584 = vmatprep.subr.mxu0 0.0
    %585 = vmatpush2.msra.mxu0 0.0
    %586 = vmatprep.subr.mxu0 0.0
    %587 = vmatpush2.msra.mxu0 0.0
    %588 = vmatprep.subr.mxu0 0.0
    %589 = vmatpush2.msra.mxu0 0.0
    %590 = vmatprep.subr.mxu0 0.0
    %591 = vmatpush2.msra.mxu0 0.0
    %592 = vmatprep.subr.mxu0 0.0
    %593 = vmatpush2.msra.mxu0 0.0
    %594 = vmatprep.subr.mxu0 0.0
    %595 = vmatpush2.msra.mxu0 0.0
    %596 = vmatprep.subr.mxu0 0.0
    %597 = vmatpush2.msra.mxu0 0.0
    %598 = vmatprep.subr.mxu0 0.0
    %599 = vmatpush2.msra.mxu0 0.0
    %600 = vmatprep.subr.mxu0 0.0
    %601 = vmatpush2.msra.mxu0 0.0
    %602 = vmatprep.subr.mxu0 0.0
    %603 = vmatpush2.msra.mxu0 0.0
    %604 = vmatprep.subr.mxu0 0.0
    %605 = vmatpush2.msra.mxu0 0.0
    %606 = vmatprep.subr.mxu0 0.0
    %607 = vmatpush2.msra.mxu0 0.0
    %608 = vmatprep.mubr.f32.mxu0 0.0
    %609 = vmatmul.mubr.f32.gmra.mxu0 %v542
    %v610 = vpop.f32.mrf.mxu0
    %v611 = vadd.f32 0.0, %v610
    %v612 = vpop.f32.mrf.mxu0
    %613 = vdwg.mxu0
    %v614 = vld [vmem:[#allocation3 + $0x3] sm:$0x1]
    %v615 = vld [vmem:[#allocation3 + $0xb] sm:$0x1]
    %v616 = vadd.f32 %v614, %v156
    %v617 = vadd.f32 %v615, %v156
    %v619 = vrot.slane %v611, 1
    %v622 = vadd.f32 %v616, %v611
    %v623 = vadd.f32 %v617, %v619
    %v624 = vxor.u32 %v622, 2147483648
    %v625 = vxor.u32 %v623, 2147483648
    %v626 = vmul.f32 %v624, 1.442695
    %v627 = vpow.pop %v626
    %v628 = vmul.f32 %v625, 1.442695
    %v629 = vpow.pop %v628
    %v630 = vadd.f32 %v627, 1.0
    %v631 = vadd.f32 %v629, 1.0
    %v632 = vrcp.pop %v630
    %v633 = vmul.f32 1.0, %v632
    %v634 = vrcp.pop %v631
    %v635 = vmul.f32 1.0, %v634
    %v636 = vadd.f32 %v611, %v184
    %v638 = vrot.slane %v636, 1
    %639 = vrot.lane.b32.xlu0 %v636, 64
    %v640 = vpop.permute.xlu0 %639
    %641 = vrot.lane.b32.xlu0 %v638, 64
    %v642 = vpop.permute.xlu0 %641
    %v645 = vmul.f32 %v633, %v640
    %v646 = vmul.f32 %v635, %v642
    %649 = vrot.lane.b32.xlu0 %v645, 64
    %v650 = vpop.permute.xlu0 %649
    %651 = vrot.lane.b32.xlu0 %v646, 64
    %v652 = vpop.permute.xlu0 %651
    %v655 = vadd.f32 %v616, %v650
    %v656 = vadd.f32 %v617, %v652
    %v657 = vtanh.pop %v655
    %v658 = vtanh.pop %v656
    %v659 = vsub.f32 1.0, %v633
    %v660 = vsub.f32 1.0, %v635
    %663 = vrot.lane.b32.xlu0 %v657, 96
    %v664 = vpop.permute.xlu0 %663
    %665 = vrot.lane.b32.xlu0 %v658, 96
    %v666 = vpop.permute.xlu0 %665
    %v669 = vmul.f32 %v659, %v664
    %v670 = vmul.f32 %v660, %v666
    %v671 = vmul.f32 %v633, %v526
    %v672 = vmul.f32 %v635, %v527
    %v673 = vadd.f32 %v669, %v671
    %v674 = vadd.f32 %v670, %v672
    %677 = vrot.lane.b32.xlu0 %v673, 96
    %v678 = vpop.permute.xlu0 %677
    %679 = vrot.lane.b32.xlu0 %v674, 96
    %v680 = vpop.permute.xlu0 %679
    %683 = vst.msk [vmem:[#allocation8 + $0x3] sm:$0x1] %vm240, %v678
    %684 = vst.msk [vmem:[#allocation8 + $0xb] sm:$0x1] %vm240, %v680
    %v685 = vrot.slane %v674, 7
    %v686 = vsel %vm244, %v685, %v673
    %687 = vrot.lane.b32.xlu0 %v686, 96
    %v688 = vpop.permute.xlu0 %687
    %v689 = vsel %vm76, %v688, 0
    %691 = vmatprep.subr.mxu0 0.0
    %692 = vmatpush1.msra.mxu0 0.0
    %693 = vmatprep.subr.mxu0 0.0
    %694 = vmatpush1.msra.mxu0 0.0
    %695 = vmatprep.subr.mxu0 0.0
    %696 = vmatpush1.msra.mxu0 0.0
    %697 = vmatprep.subr.mxu0 0.0
    %698 = vmatpush1.msra.mxu0 0.0
    %699 = vmatprep.subr.mxu0 0.0
    %700 = vmatpush1.msra.mxu0 0.0
    %701 = vmatprep.subr.mxu0 0.0
    %702 = vmatpush1.msra.mxu0 0.0
    %703 = vmatprep.subr.mxu0 0.0
    %704 = vmatpush1.msra.mxu0 0.0
    %705 = vmatprep.subr.mxu0 0.0
    %706 = vmatpush1.msra.mxu0 0.0
    %707 = vmatprep.subr.mxu0 0.0
    %708 = vmatpush1.msra.mxu0 0.0
    %709 = vmatprep.subr.mxu0 0.0
    %710 = vmatpush1.msra.mxu0 0.0
    %711 = vmatprep.subr.mxu0 0.0
    %712 = vmatpush1.msra.mxu0 0.0
    %713 = vmatprep.subr.mxu0 0.0
    %714 = vmatpush1.msra.mxu0 0.0
    %715 = vmatprep.subr.mxu0 0.0
    %716 = vmatpush1.msra.mxu0 %v72
    %717 = vmatprep.subr.mxu0 0.0
    %718 = vmatpush1.msra.mxu0 %v71
    %719 = vmatprep.subr.mxu0 0.0
    %720 = vmatpush1.msra.mxu0 %v70
    %721 = vmatprep.subr.mxu0 0.0
    %722 = vmatpush1.msra.mxu0 %v69
    %723 = vmatprep.subr.mxu0 0.0
    %724 = vmatpush2.msra.mxu0 0.0
    %725 = vmatprep.subr.mxu0 0.0
    %726 = vmatpush2.msra.mxu0 0.0
    %727 = vmatprep.subr.mxu0 0.0
    %728 = vmatpush2.msra.mxu0 0.0
    %729 = vmatprep.subr.mxu0 0.0
    %730 = vmatpush2.msra.mxu0 0.0
    %731 = vmatprep.subr.mxu0 0.0
    %732 = vmatpush2.msra.mxu0 0.0
    %733 = vmatprep.subr.mxu0 0.0
    %734 = vmatpush2.msra.mxu0 0.0
    %735 = vmatprep.subr.mxu0 0.0
    %736 = vmatpush2.msra.mxu0 0.0
    %737 = vmatprep.subr.mxu0 0.0
    %738 = vmatpush2.msra.mxu0 0.0
    %739 = vmatprep.subr.mxu0 0.0
    %740 = vmatpush2.msra.mxu0 0.0
    %741 = vmatprep.subr.mxu0 0.0
    %742 = vmatpush2.msra.mxu0 0.0
    %743 = vmatprep.subr.mxu0 0.0
    %744 = vmatpush2.msra.mxu0 0.0
    %745 = vmatprep.subr.mxu0 0.0
    %746 = vmatpush2.msra.mxu0 0.0
    %747 = vmatprep.subr.mxu0 0.0
    %748 = vmatpush2.msra.mxu0 0.0
    %749 = vmatprep.subr.mxu0 0.0
    %750 = vmatpush2.msra.mxu0 0.0
    %751 = vmatprep.subr.mxu0 0.0
    %752 = vmatpush2.msra.mxu0 0.0
    %753 = vmatprep.subr.mxu0 0.0
    %754 = vmatpush2.msra.mxu0 0.0
    %755 = vmatprep.mubr.f32.mxu0 0.0
    %756 = vmatmul.mubr.f32.gmra.mxu0 %v689
    %v757 = vpop.f32.mrf.mxu0
    %v758 = vadd.f32 0.0, %v757
    %v759 = vpop.f32.mrf.mxu0
    %760 = vdwg.mxu0
    %v761 = vld [vmem:[#allocation3 + $0x4] sm:$0x1]
    %v762 = vld [vmem:[#allocation3 + $0xc] sm:$0x1]
    %v763 = vadd.f32 %v761, %v156
    %v764 = vadd.f32 %v762, %v156
    %v766 = vrot.slane %v758, 1
    %v769 = vadd.f32 %v763, %v758
    %v770 = vadd.f32 %v764, %v766
    %v771 = vxor.u32 %v769, 2147483648
    %v772 = vxor.u32 %v770, 2147483648
    %v773 = vmul.f32 %v771, 1.442695
    %v774 = vpow.pop %v773
    %v775 = vmul.f32 %v772, 1.442695
    %v776 = vpow.pop %v775
    %v777 = vadd.f32 %v774, 1.0
    %v778 = vadd.f32 %v776, 1.0
    %v779 = vrcp.pop %v777
    %v780 = vmul.f32 1.0, %v779
    %v781 = vrcp.pop %v778
    %v782 = vmul.f32 1.0, %v781
    %v783 = vadd.f32 %v758, %v184
    %v785 = vrot.slane %v783, 1
    %786 = vrot.lane.b32.xlu0 %v783, 64
    %v787 = vpop.permute.xlu0 %786
    %788 = vrot.lane.b32.xlu0 %v785, 64
    %v789 = vpop.permute.xlu0 %788
    %v792 = vmul.f32 %v780, %v787
    %v793 = vmul.f32 %v782, %v789
    %796 = vrot.lane.b32.xlu0 %v792, 64
    %v797 = vpop.permute.xlu0 %796
    %798 = vrot.lane.b32.xlu0 %v793, 64
    %v799 = vpop.permute.xlu0 %798
    %v802 = vadd.f32 %v763, %v797
    %v803 = vadd.f32 %v764, %v799
    %v804 = vtanh.pop %v802
    %v805 = vtanh.pop %v803
    %v806 = vsub.f32 1.0, %v780
    %v807 = vsub.f32 1.0, %v782
    %810 = vrot.lane.b32.xlu0 %v804, 96
    %v811 = vpop.permute.xlu0 %810
    %812 = vrot.lane.b32.xlu0 %v805, 96
    %v813 = vpop.permute.xlu0 %812
    %v816 = vmul.f32 %v806, %v811
    %v817 = vmul.f32 %v807, %v813
    %v818 = vmul.f32 %v780, %v673
    %v819 = vmul.f32 %v782, %v674
    %v820 = vadd.f32 %v816, %v818
    %v821 = vadd.f32 %v817, %v819
    %824 = vrot.lane.b32.xlu0 %v820, 96
    %v825 = vpop.permute.xlu0 %824
    %826 = vrot.lane.b32.xlu0 %v821, 96
    %v827 = vpop.permute.xlu0 %826
    %830 = vst.msk [vmem:[#allocation8 + $0x4] sm:$0x1] %vm240, %v825
    %831 = vst.msk [vmem:[#allocation8 + $0xc] sm:$0x1] %vm240, %v827
    %v832 = vrot.slane %v821, 7
    %v833 = vsel %vm244, %v832, %v820
    %834 = vrot.lane.b32.xlu0 %v833, 96
    %v835 = vpop.permute.xlu0 %834
    %v836 = vsel %vm76, %v835, 0
    %838 = vmatprep.subr.mxu0 0.0
    %839 = vmatpush1.msra.mxu0 0.0
    %840 = vmatprep.subr.mxu0 0.0
    %841 = vmatpush1.msra.mxu0 0.0
    %842 = vmatprep.subr.mxu0 0.0
    %843 = vmatpush1.msra.mxu0 0.0
    %844 = vmatprep.subr.mxu0 0.0
    %845 = vmatpush1.msra.mxu0 0.0
    %846 = vmatprep.subr.mxu0 0.0
    %847 = vmatpush1.msra.mxu0 0.0
    %848 = vmatprep.subr.mxu0 0.0
    %849 = vmatpush1.msra.mxu0 0.0
    %850 = vmatprep.subr.mxu0 0.0
    %851 = vmatpush1.msra.mxu0 0.0
    %852 = vmatprep.subr.mxu0 0.0
    %853 = vmatpush1.msra.mxu0 0.0
    %854 = vmatprep.subr.mxu0 0.0
    %855 = vmatpush1.msra.mxu0 0.0
    %856 = vmatprep.subr.mxu0 0.0
    %857 = vmatpush1.msra.mxu0 0.0
    %858 = vmatprep.subr.mxu0 0.0
    %859 = vmatpush1.msra.mxu0 0.0
    %860 = vmatprep.subr.mxu0 0.0
    %861 = vmatpush1.msra.mxu0 0.0
    %862 = vmatprep.subr.mxu0 0.0
    %863 = vmatpush1.msra.mxu0 %v72
    %864 = vmatprep.subr.mxu0 0.0
    %865 = vmatpush1.msra.mxu0 %v71
    %866 = vmatprep.subr.mxu0 0.0
    %867 = vmatpush1.msra.mxu0 %v70
    %868 = vmatprep.subr.mxu0 0.0
    %869 = vmatpush1.msra.mxu0 %v69
    %870 = vmatprep.subr.mxu0 0.0
    %871 = vmatpush2.msra.mxu0 0.0
    %872 = vmatprep.subr.mxu0 0.0
    %873 = vmatpush2.msra.mxu0 0.0
    %874 = vmatprep.subr.mxu0 0.0
    %875 = vmatpush2.msra.mxu0 0.0
    %876 = vmatprep.subr.mxu0 0.0
    %877 = vmatpush2.msra.mxu0 0.0
    %878 = vmatprep.subr.mxu0 0.0
    %879 = vmatpush2.msra.mxu0 0.0
    %880 = vmatprep.subr.mxu0 0.0
    %881 = vmatpush2.msra.mxu0 0.0
    %882 = vmatprep.subr.mxu0 0.0
    %883 = vmatpush2.msra.mxu0 0.0
    %884 = vmatprep.subr.mxu0 0.0
    %885 = vmatpush2.msra.mxu0 0.0
    %886 = vmatprep.subr.mxu0 0.0
    %887 = vmatpush2.msra.mxu0 0.0
    %888 = vmatprep.subr.mxu0 0.0
    %889 = vmatpush2.msra.mxu0 0.0
    %890 = vmatprep.subr.mxu0 0.0
    %891 = vmatpush2.msra.mxu0 0.0
    %892 = vmatprep.subr.mxu0 0.0
    %893 = vmatpush2.msra.mxu0 0.0
    %894 = vmatprep.subr.mxu0 0.0
    %895 = vmatpush2.msra.mxu0 0.0
    %896 = vmatprep.subr.mxu0 0.0
    %897 = vmatpush2.msra.mxu0 0.0
    %898 = vmatprep.subr.mxu0 0.0
    %899 = vmatpush2.msra.mxu0 0.0
    %900 = vmatprep.subr.mxu0 0.0
    %901 = vmatpush2.msra.mxu0 0.0
    %902 = vmatprep.mubr.f32.mxu0 0.0
    %903 = vmatmul.mubr.f32.gmra.mxu0 %v836
    %v904 = vpop.f32.mrf.mxu0
    %v905 = vadd.f32 0.0, %v904
    %v906 = vpop.f32.mrf.mxu0
    %907 = vdwg.mxu0
    %v908 = vld [vmem:[#allocation3 + $0x5] sm:$0x1]
    %v909 = vld [vmem:[#allocation3 + $0xd] sm:$0x1]
    %v910 = vadd.f32 %v908, %v156
    %v911 = vadd.f32 %v909, %v156
    %v913 = vrot.slane %v905, 1
    %v916 = vadd.f32 %v910, %v905
    %v917 = vadd.f32 %v911, %v913
    %v918 = vxor.u32 %v916, 2147483648
    %v919 = vxor.u32 %v917, 2147483648
    %v920 = vmul.f32 %v918, 1.442695
    %v921 = vpow.pop %v920
    %v922 = vmul.f32 %v919, 1.442695
    %v923 = vpow.pop %v922
    %v924 = vadd.f32 %v921, 1.0
    %v925 = vadd.f32 %v923, 1.0
    %v926 = vrcp.pop %v924
    %v927 = vmul.f32 1.0, %v926
    %v928 = vrcp.pop %v925
    %v929 = vmul.f32 1.0, %v928
    %v930 = vadd.f32 %v905, %v184
    %v932 = vrot.slane %v930, 1
    %933 = vrot.lane.b32.xlu0 %v930, 64
    %v934 = vpop.permute.xlu0 %933
    %935 = vrot.lane.b32.xlu0 %v932, 64
    %v936 = vpop.permute.xlu0 %935
    %v939 = vmul.f32 %v927, %v934
    %v940 = vmul.f32 %v929, %v936
    %943 = vrot.lane.b32.xlu0 %v939, 64
    %v944 = vpop.permute.xlu0 %943
    %945 = vrot.lane.b32.xlu0 %v940, 64
    %v946 = vpop.permute.xlu0 %945
    %v949 = vadd.f32 %v910, %v944
    %v950 = vadd.f32 %v911, %v946
    %v951 = vtanh.pop %v949
    %v952 = vtanh.pop %v950
    %v953 = vsub.f32 1.0, %v927
    %v954 = vsub.f32 1.0, %v929
    %957 = vrot.lane.b32.xlu0 %v951, 96
    %v958 = vpop.permute.xlu0 %957
    %959 = vrot.lane.b32.xlu0 %v952, 96
    %v960 = vpop.permute.xlu0 %959
    %v963 = vmul.f32 %v953, %v958
    %v964 = vmul.f32 %v954, %v960
    %v965 = vmul.f32 %v927, %v820
    %v966 = vmul.f32 %v929, %v821
    %v967 = vadd.f32 %v963, %v965
    %v968 = vadd.f32 %v964, %v966
    %971 = vrot.lane.b32.xlu0 %v967, 96
    %v972 = vpop.permute.xlu0 %971
    %973 = vrot.lane.b32.xlu0 %v968, 96
    %v974 = vpop.permute.xlu0 %973
    %977 = vst.msk [vmem:[#allocation8 + $0x5] sm:$0x1] %vm240, %v972
    %978 = vst.msk [vmem:[#allocation8 + $0xd] sm:$0x1] %vm240, %v974
    %v979 = vrot.slane %v968, 7
    %v980 = vsel %vm244, %v979, %v967
    %981 = vrot.lane.b32.xlu0 %v980, 96
    %v982 = vpop.permute.xlu0 %981
    %v983 = vsel %vm76, %v982, 0
    %985 = vmatprep.subr.mxu0 0.0
    %986 = vmatpush1.msra.mxu0 0.0
    %987 = vmatprep.subr.mxu0 0.0
    %988 = vmatpush1.msra.mxu0 0.0
    %989 = vmatprep.subr.mxu0 0.0
    %990 = vmatpush1.msra.mxu0 0.0
    %991 = vmatprep.subr.mxu0 0.0
    %992 = vmatpush1.msra.mxu0 0.0
    %993 = vmatprep.subr.mxu0 0.0
    %994 = vmatpush1.msra.mxu0 0.0
    %995 = vmatprep.subr.mxu0 0.0
    %996 = vmatpush1.msra.mxu0 0.0
    %997 = vmatprep.subr.mxu0 0.0
    %998 = vmatpush1.msra.mxu0 0.0
    %999 = vmatprep.subr.mxu0 0.0
    %1000 = vmatpush1.msra.mxu0 0.0
    %1001 = vmatprep.subr.mxu0 0.0
    %1002 = vmatpush1.msra.mxu0 0.0
    %1003 = vmatprep.subr.mxu0 0.0
    %1004 = vmatpush1.msra.mxu0 0.0
    %1005 = vmatprep.subr.mxu0 0.0
    %1006 = vmatpush1.msra.mxu0 0.0
    %1007 = vmatprep.subr.mxu0 0.0
    %1008 = vmatpush1.msra.mxu0 0.0
    %1009 = vmatprep.subr.mxu0 0.0
    %1010 = vmatpush1.msra.mxu0 %v72
    %1011 = vmatprep.subr.mxu0 0.0
    %1012 = vmatpush1.msra.mxu0 %v71
    %1013 = vmatprep.subr.mxu0 0.0
    %1014 = vmatpush1.msra.mxu0 %v70
    %1015 = vmatprep.subr.mxu0 0.0
    %1016 = vmatpush1.msra.mxu0 %v69
    %1017 = vmatprep.subr.mxu0 0.0
    %1018 = vmatpush2.msra.mxu0 0.0
    %1019 = vmatprep.subr.mxu0 0.0
    %1020 = vmatpush2.msra.mxu0 0.0
    %1021 = vmatprep.subr.mxu0 0.0
    %1022 = vmatpush2.msra.mxu0 0.0
    %1023 = vmatprep.subr.mxu0 0.0
    %1024 = vmatpush2.msra.mxu0 0.0
    %1025 = vmatprep.subr.mxu0 0.0
    %1026 = vmatpush2.msra.mxu0 0.0
    %1027 = vmatprep.subr.mxu0 0.0
    %1028 = vmatpush2.msra.mxu0 0.0
    %1029 = vmatprep.subr.mxu0 0.0
    %1030 = vmatpush2.msra.mxu0 0.0
    %1031 = vmatprep.subr.mxu0 0.0
    %1032 = vmatpush2.msra.mxu0 0.0
    %1033 = vmatprep.subr.mxu0 0.0
    %1034 = vmatpush2.msra.mxu0 0.0
    %1035 = vmatprep.subr.mxu0 0.0
    %1036 = vmatpush2.msra.mxu0 0.0
    %1037 = vmatprep.subr.mxu0 0.0
    %1038 = vmatpush2.msra.mxu0 0.0
    %1039 = vmatprep.subr.mxu0 0.0
    %1040 = vmatpush2.msra.mxu0 0.0
    %1041 = vmatprep.subr.mxu0 0.0
    %1042 = vmatpush2.msra.mxu0 0.0
    %1043 = vmatprep.subr.mxu0 0.0
    %1044 = vmatpush2.msra.mxu0 0.0
    %1045 = vmatprep.subr.mxu0 0.0
    %1046 = vmatpush2.msra.mxu0 0.0
    %1047 = vmatprep.subr.mxu0 0.0
    %1048 = vmatpush2.msra.mxu0 0.0
    %1049 = vmatprep.mubr.f32.mxu0 0.0
    %1050 = vmatmul.mubr.f32.gmra.mxu0 %v983
    %v1051 = vpop.f32.mrf.mxu0
    %v1052 = vadd.f32 0.0, %v1051
    %v1053 = vpop.f32.mrf.mxu0
    %1054 = vdwg.mxu0
    %v1055 = vld [vmem:[#allocation3 + $0x6] sm:$0x1]
    %v1056 = vld [vmem:[#allocation3 + $0xe] sm:$0x1]
    %v1057 = vadd.f32 %v1055, %v156
    %v1058 = vadd.f32 %v1056, %v156
    %v1060 = vrot.slane %v1052, 1
    %v1063 = vadd.f32 %v1057, %v1052
    %v1064 = vadd.f32 %v1058, %v1060
    %v1065 = vxor.u32 %v1063, 2147483648
    %v1066 = vxor.u32 %v1064, 2147483648
    %v1067 = vmul.f32 %v1065, 1.442695
    %v1068 = vpow.pop %v1067
    %v1069 = vmul.f32 %v1066, 1.442695
    %v1070 = vpow.pop %v1069
    %v1071 = vadd.f32 %v1068, 1.0
    %v1072 = vadd.f32 %v1070, 1.0
    %v1073 = vrcp.pop %v1071
    %v1074 = vmul.f32 1.0, %v1073
    %v1075 = vrcp.pop %v1072
    %v1076 = vmul.f32 1.0, %v1075
    %v1077 = vadd.f32 %v1052, %v184
    %v1079 = vrot.slane %v1077, 1
    %1080 = vrot.lane.b32.xlu0 %v1077, 64
    %v1081 = vpop.permute.xlu0 %1080
    %1082 = vrot.lane.b32.xlu0 %v1079, 64
    %v1083 = vpop.permute.xlu0 %1082
    %v1086 = vmul.f32 %v1074, %v1081
    %v1087 = vmul.f32 %v1076, %v1083
    %1090 = vrot.lane.b32.xlu0 %v1086, 64
    %v1091 = vpop.permute.xlu0 %1090
    %1092 = vrot.lane.b32.xlu0 %v1087, 64
    %v1093 = vpop.permute.xlu0 %1092
    %v1096 = vadd.f32 %v1057, %v1091
    %v1097 = vadd.f32 %v1058, %v1093
    %v1098 = vtanh.pop %v1096
    %v1099 = vtanh.pop %v1097
    %v1100 = vsub.f32 1.0, %v1074
    %v1101 = vsub.f32 1.0, %v1076
    %1104 = vrot.lane.b32.xlu0 %v1098, 96
    %v1105 = vpop.permute.xlu0 %1104
    %1106 = vrot.lane.b32.xlu0 %v1099, 96
    %v1107 = vpop.permute.xlu0 %1106
    %v1110 = vmul.f32 %v1100, %v1105
    %v1111 = vmul.f32 %v1101, %v1107
    %v1112 = vmul.f32 %v1074, %v967
    %v1113 = vmul.f32 %v1076, %v968
    %v1114 = vadd.f32 %v1110, %v1112
    %v1115 = vadd.f32 %v1111, %v1113
    %1118 = vrot.lane.b32.xlu0 %v1114, 96
    %v1119 = vpop.permute.xlu0 %1118
    %1120 = vrot.lane.b32.xlu0 %v1115, 96
    %v1121 = vpop.permute.xlu0 %1120
    %1124 = vst.msk [vmem:[#allocation8 + $0x6] sm:$0x1] %vm240, %v1119
    %1125 = vst.msk [vmem:[#allocation8 + $0xe] sm:$0x1] %vm240, %v1121
    %v1126 = vrot.slane %v1115, 7
    %v1127 = vsel %vm244, %v1126, %v1114
    %1128 = vrot.lane.b32.xlu0 %v1127, 96
    %v1129 = vpop.permute.xlu0 %1128
    %v1130 = vsel %vm76, %v1129, 0
    %1132 = vmatprep.subr.mxu0 0.0
    %1133 = vmatpush1.msra.mxu0 0.0
    %1134 = vmatprep.subr.mxu0 0.0
    %1135 = vmatpush1.msra.mxu0 0.0
    %1136 = vmatprep.subr.mxu0 0.0
    %1137 = vmatpush1.msra.mxu0 0.0
    %1138 = vmatprep.subr.mxu0 0.0
    %1139 = vmatpush1.msra.mxu0 0.0
    %1140 = vmatprep.subr.mxu0 0.0
    %1141 = vmatpush1.msra.mxu0 0.0
    %1142 = vmatprep.subr.mxu0 0.0
    %1143 = vmatpush1.msra.mxu0 0.0
    %1144 = vmatprep.subr.mxu0 0.0
    %1145 = vmatpush1.msra.mxu0 0.0
    %1146 = vmatprep.subr.mxu0 0.0
    %1147 = vmatpush1.msra.mxu0 0.0
    %1148 = vmatprep.subr.mxu0 0.0
    %1149 = vmatpush1.msra.mxu0 0.0
    %1150 = vmatprep.subr.mxu0 0.0
    %1151 = vmatpush1.msra.mxu0 0.0
    %1152 = vmatprep.subr.mxu0 0.0
    %1153 = vmatpush1.msra.mxu0 0.0
    %1154 = vmatprep.subr.mxu0 0.0
    %1155 = vmatpush1.msra.mxu0 0.0
    %1156 = vmatprep.subr.mxu0 0.0
    %1157 = vmatpush1.msra.mxu0 %v72
    %1158 = vmatprep.subr.mxu0 0.0
    %1159 = vmatpush1.msra.mxu0 %v71
    %1160 = vmatprep.subr.mxu0 0.0
    %1161 = vmatpush1.msra.mxu0 %v70
    %1162 = vmatprep.subr.mxu0 0.0
    %1163 = vmatpush1.msra.mxu0 %v69
    %1164 = vmatprep.subr.mxu0 0.0
    %1165 = vmatpush2.msra.mxu0 0.0
    %1166 = vmatprep.subr.mxu0 0.0
    %1167 = vmatpush2.msra.mxu0 0.0
    %1168 = vmatprep.subr.mxu0 0.0
    %1169 = vmatpush2.msra.mxu0 0.0
    %1170 = vmatprep.subr.mxu0 0.0
    %1171 = vmatpush2.msra.mxu0 0.0
    %1172 = vmatprep.subr.mxu0 0.0
    %1173 = vmatpush2.msra.mxu0 0.0
    %1174 = vmatprep.subr.mxu0 0.0
    %1175 = vmatpush2.msra.mxu0 0.0
    %1176 = vmatprep.subr.mxu0 0.0
    %1177 = vmatpush2.msra.mxu0 0.0
    %1178 = vmatprep.subr.mxu0 0.0
    %1179 = vmatpush2.msra.mxu0 0.0
    %1180 = vmatprep.subr.mxu0 0.0
    %1181 = vmatpush2.msra.mxu0 0.0
    %1182 = vmatprep.subr.mxu0 0.0
    %1183 = vmatpush2.msra.mxu0 0.0
    %1184 = vmatprep.subr.mxu0 0.0
    %1185 = vmatpush2.msra.mxu0 0.0
    %1186 = vmatprep.subr.mxu0 0.0
    %1187 = vmatpush2.msra.mxu0 0.0
    %1188 = vmatprep.subr.mxu0 0.0
    %1189 = vmatpush2.msra.mxu0 0.0
    %1190 = vmatprep.subr.mxu0 0.0
    %1191 = vmatpush2.msra.mxu0 0.0
    %1192 = vmatprep.subr.mxu0 0.0
    %1193 = vmatpush2.msra.mxu0 0.0
    %1194 = vmatprep.subr.mxu0 0.0
    %1195 = vmatpush2.msra.mxu0 0.0
    %1196 = vmatprep.mubr.f32.mxu0 0.0
    %1197 = vmatmul.mubr.f32.gmra.mxu0 %v1130
    %v1198 = vpop.f32.mrf.mxu0
    %v1199 = vadd.f32 0.0, %v1198
    %v1200 = vpop.f32.mrf.mxu0
    %1201 = vdwg.mxu0
    %v1202 = vld [vmem:[#allocation3 + $0x7] sm:$0x1]
    %v1203 = vld [vmem:[#allocation3 + $0xf] sm:$0x1]
    %v1204 = vadd.f32 %v1202, %v156
    %v1205 = vadd.f32 %v1203, %v156
    %v1207 = vrot.slane %v1199, 1
    %v1210 = vadd.f32 %v1204, %v1199
    %v1211 = vadd.f32 %v1205, %v1207
    %v1212 = vxor.u32 %v1210, 2147483648
    %v1213 = vxor.u32 %v1211, 2147483648
    %v1214 = vmul.f32 %v1212, 1.442695
    %v1215 = vpow.pop %v1214
    %v1216 = vmul.f32 %v1213, 1.442695
    %v1217 = vpow.pop %v1216
    %v1218 = vadd.f32 %v1215, 1.0
    %v1219 = vadd.f32 %v1217, 1.0
    %v1220 = vrcp.pop %v1218
    %v1221 = vmul.f32 1.0, %v1220
    %v1222 = vrcp.pop %v1219
    %v1223 = vmul.f32 1.0, %v1222
    %v1224 = vadd.f32 %v1199, %v184
    %v1226 = vrot.slane %v1224, 1
    %1227 = vrot.lane.b32.xlu0 %v1224, 64
    %v1228 = vpop.permute.xlu0 %1227
    %1229 = vrot.lane.b32.xlu0 %v1226, 64
    %v1230 = vpop.permute.xlu0 %1229
    %v1233 = vmul.f32 %v1221, %v1228
    %v1234 = vmul.f32 %v1223, %v1230
    %1237 = vrot.lane.b32.xlu0 %v1233, 64
    %v1238 = vpop.permute.xlu0 %1237
    %1239 = vrot.lane.b32.xlu0 %v1234, 64
    %v1240 = vpop.permute.xlu0 %1239
    %v1243 = vadd.f32 %v1204, %v1238
    %v1244 = vadd.f32 %v1205, %v1240
    %v1245 = vtanh.pop %v1243
    %v1246 = vtanh.pop %v1244
    %v1247 = vsub.f32 1.0, %v1221
    %v1248 = vsub.f32 1.0, %v1223
    %1251 = vrot.lane.b32.xlu0 %v1245, 96
    %v1252 = vpop.permute.xlu0 %1251
    %1253 = vrot.lane.b32.xlu0 %v1246, 96
    %v1254 = vpop.permute.xlu0 %1253
    %v1257 = vmul.f32 %v1247, %v1252
    %v1258 = vmul.f32 %v1248, %v1254
    %v1259 = vmul.f32 %v1221, %v1114
    %v1260 = vmul.f32 %v1223, %v1115
    %v1261 = vadd.f32 %v1257, %v1259
    %v1262 = vadd.f32 %v1258, %v1260
    %1265 = vrot.lane.b32.xlu0 %v1261, 96
    %v1266 = vpop.permute.xlu0 %1265
    %1267 = vrot.lane.b32.xlu0 %v1262, 96
    %v1268 = vpop.permute.xlu0 %1267
    %1271 = vst.msk [vmem:[#allocation8 + $0x7] sm:$0x1] %vm240, %v1266
    %1272 = vst.msk [vmem:[#allocation8 + $0xf] sm:$0x1] %vm240, %v1268
    %v1273 = vrot.slane %v1262, 7
    %v1274 = vsel %vm244, %v1273, %v1261
    %1275 = vrot.lane.b32.xlu0 %v1274, 96
    %v1276 = vpop.permute.xlu0 %1275
    %vm1278 = vcmask 254976
    %1279 = vst.msk [vmem:[#allocation2] sm:$0x3] %vm1278, %v1276
    // Predicated region
    $region30: #{tpu_custom_call.1} parent=1 // pred_check
      %p1280 = pneg %p63
    $region31: #{tpu_custom_call.1} parent=1 // pred_check_branch
      %1282 = sbr.rel (%p1280) target = $region33
    $region32: #{tpu_custom_call.1} parent=1 // pred_region
      %v1283 = vld [vmem:[#allocation2] sm:$0x3]
      %1284 = vst.msk [vmem:[#allocation9] sm:$0x3] %vm1278, %v1283
    $region33: #{tpu_custom_call.1} parent=1 // pred_fallthru
      _
    // Predicated region
    $region34: #{tpu_custom_call.1} parent=1 // pred_check
      _
    $region35: #{tpu_custom_call.1} parent=1 // pred_check_branch
      %1286 = sbr.rel (0) target = $region37
    $region36: #{tpu_custom_call.1} parent=1 // pred_region
      %s1287 = smul.u32 0, 2
      %s1288 = ssub.s32 0, %s1287
      %s1289 = smul.u32 0, %s1288
      %s1290 = sadd.s32 0, %s1289
      %s1292 = ssub.s32 256, 256
      %1293 = vsyncadd [#allocation5], %s1292
      %s1294 = smul.addr %s1290, 128
      %s1295 = scalar_lea.hbm %s4, %s1294
      %s1296 = sshll.u32 [#allocation8], 4
      %s1297 = int_to_ptr.vmem [resolvable:$true] %s1296
      %1302 = dma.vmem_to_hbm [thread:$0]  %s1297, 256, %s1295, [#allocation5], 128, 128, 8
    $region37: #{tpu_custom_call.1} parent=1 // pred_fallthru
      _
    // Predicated region
    $region38: #{tpu_custom_call.1} parent=1 // pred_check
      _
    $region39: #{tpu_custom_call.1} parent=1 // pred_check_branch
      %1304 = sbr.rel (0) target = $region41
    $region40: #{tpu_custom_call.1} parent=1 // pred_region
      %s1306 = ssub.s32 32, 32
      %1307 = vsyncadd [#allocation10], %s1306
      %s1309 = sshll.u32 [#allocation9], 4
      %s1310 = int_to_ptr.vmem [resolvable:$true] %s1309
      %1312 = dma.vmem_to_hbm [thread:$0]  %s1310, 32, %s5, [#allocation10]
    $region41: #{tpu_custom_call.1} parent=1 // pred_fallthru
      _
    // Predicated region
    $region42: #{tpu_custom_call.1} parent=1 // pred_check
      _
    $region43: #{tpu_custom_call.1} parent=1 // pred_check_branch
      %1314 = sbr.rel (0) target = $region45
    $region44: #{tpu_custom_call.1} parent=1 // pred_region
      %1315 = dma.done [#allocation5], 256
    $region45: #{tpu_custom_call.1} parent=1 // pred_fallthru
      _
    // Predicated region
    $region46: #{tpu_custom_call.1} parent=1 // pred_check
      _
    $region47: #{tpu_custom_call.1} parent=1 // pred_check_branch
      %1317 = sbr.rel (0) target = $region49
    $region48: #{tpu_custom_call.1} parent=1 // pred_region
      %1318 = dma.done [#allocation10], 32
    $region49: #{tpu_custom_call.1} parent=1 // pred_fallthru
      _
    %1319 = vsyncpa [#allocation4], 1
    %1320 = vsyncpa [#allocation7], 1
    %1321 = vsyncpa [#allocation5], 1
    %1322 = vsyncpa [#allocation10], 1

// kernel: tpu_custom_call.1
$region0: #{tpu_custom_call.1}
  #allocation0 [shape = 'u32[]', space=smem, size = 0x4, offset = 0x4, fixed_abs, tag = 'smem constant byte address 0x4 - core index']
  #allocation1 [shape = 'u32[144,128]{1,0:T(1,128)}', space=vmem, size = 0x12000, scoped, tag = 'internal scratch']
  #allocation2 [shape = 'f32[2,32]{1,0:T(2,128)}', space=vmem, size = 0x400, scoped, tag = 'scratch operand']
  %s0 = inlined_call_operand.hbm [shape: f32[1,2,8,96], index: 0, kind: input, shape index: {}]
  %s1 = inlined_call_operand.hbm [shape: f32[1,32,96], index: 1, kind: input, shape index: {}]
  %s2 = inlined_call_operand.vmem [shape: f32[1,1,96], index: 2, kind: input, shape index: {}]
  %s3 = inlined_call_operand.vmem [shape: f32[1,1,32], index: 3, kind: input, shape index: {}]
  %s4 = inlined_call_operand.hbm [shape: f32[1,2,8,32], index: 4, kind: output, shape index: {0}]
  %s5 = inlined_call_operand.hbm [shape: f32[1,2,32], index: 5, kind: output, shape index: {1}]
  %6 = xla_tuple %s4, %s5
  %s7 = sld [smem:[#allocation0]]
  $region50: #{tpu_custom_call.1} parent=0
    _
  %s9 = ssub.s32 1, %s7
  %s10 = scalar_select 0, %s9, %s7
  $region1: #{tpu_custom_call.1} parent=0
    #allocation3 [shape = 'u8[8192]{0}', space=vmem, size = 0x2000, scoped, tag = 'input window, operand 0, single buffered']
    #allocation4 [shape = 's32[1]{0}', space=sflag, size = 0x4, scoped, tag = 'scoped memory for tpu_custom_call.1']
    #allocation5 [shape = 's32[1]{0}', space=sflag, size = 0x4, scoped, tag = 'scoped memory for tpu_custom_call.1']
    #allocation6 [shape = 'u8[16384]{0}', space=vmem, size = 0x4000, scoped, tag = 'input window, operand 1, single buffered']
    #allocation7 [shape = 's32[1]{0}', space=sflag, size = 0x4, scoped, tag = 'scoped memory for tpu_custom_call.1']
    #allocation8 [shape = 'u8[8192]{0}', space=vmem, size = 0x2000, scoped, tag = 'output window, operand 0, single buffered']
    #allocation9 [shape = 'u8[1024]{0}', space=vmem, size = 0x400, scoped, tag = 'output window, operand 1, single buffered']
    #allocation10 [shape = 's32[1]{0}', space=sflag, size = 0x4, scoped, tag = 'scoped memory for tpu_custom_call.1']
    %11 = vsyncpa [#allocation4], 0
    %12 = vsyncpa [#allocation7], 0
    %13 = vsyncpa [#allocation5], 0
    %14 = vsyncpa [#allocation10], 0
    // Predicated region
    $region2: #{tpu_custom_call.1} parent=1 // pred_check
      _
    $region3: #{tpu_custom_call.1} parent=1 // pred_check_branch
      %16 = sbr.rel (0) target = $region5
    $region4: #{tpu_custom_call.1} parent=1 // pred_region
      %s17 = smul.u32 0, 2
      %s18 = ssub.s32 0, %s17
      %s19 = smul.u32 0, %s18
      %s20 = sadd.s32 0, %s19
      %s22 = ssub.s32 256, 256
      %23 = vsyncadd [#allocation4], %s22
      %s24 = smul.addr %s20, 128
      %s25 = scalar_lea.hbm %s0, %s24
      %s26 = sshll.u32 [#allocation3], 4
      %s27 = int_to_ptr.vmem [resolvable:$true] %s26
      %32 = dma.hbm_to_vmem [thread:$0]  %s25, 256, %s27, [#allocation4], 128, 128, 8
    $region5: #{tpu_custom_call.1} parent=1 // pred_fallthru
      _
    // Predicated region
    $region6: #{tpu_custom_call.1} parent=1 // pred_check
      _
    $region7: #{tpu_custom_call.1} parent=1 // pred_check_branch
      %34 = sbr.rel (0) target = $region9
    $region8: #{tpu_custom_call.1} parent=1 // pred_region
      %s36 = ssub.s32 512, 512
      %37 = vsyncadd [#allocation7], %s36
      %s38 = sshll.u32 [#allocation6], 4
      %s39 = int_to_ptr.vmem [resolvable:$true] %s38
      %44 = dma.hbm_to_vmem [thread:$0]  %s1, 512, %s39, [#allocation7], 128, 128, 8
    $region9: #{tpu_custom_call.1} parent=1 // pred_fallthru
      _
    // Predicated region
    $region10: #{tpu_custom_call.1} parent=1 // pred_check
      _
    $region11: #{tpu_custom_call.1} parent=1 // pred_check_branch
      %46 = sbr.rel (0) target = $region13
    $region12: #{tpu_custom_call.1} parent=1 // pred_region
      _
    $region13: #{tpu_custom_call.1} parent=1 // pred_fallthru
      _
    // Predicated region
    $region14: #{tpu_custom_call.1} parent=1 // pred_check
      _
    $region15: #{tpu_custom_call.1} parent=1 // pred_check_branch
      %48 = sbr.rel (0) target = $region17
    $region16: #{tpu_custom_call.1} parent=1 // pred_region
      _
    $region17: #{tpu_custom_call.1} parent=1 // pred_fallthru
      _
    // Predicated region
    $region18: #{tpu_custom_call.1} parent=1 // pred_check
      _
    $region19: #{tpu_custom_call.1} parent=1 // pred_check_branch
      %50 = sbr.rel (0) target = $region21
    $region20: #{tpu_custom_call.1} parent=1 // pred_region
      %51 = dma.done [#allocation4], 256
    $region21: #{tpu_custom_call.1} parent=1 // pred_fallthru
      _
    // Predicated region
    $region22: #{tpu_custom_call.1} parent=1 // pred_check
      _
    $region23: #{tpu_custom_call.1} parent=1 // pred_check_branch
      %53 = sbr.rel (0) target = $region25
    $region24: #{tpu_custom_call.1} parent=1 // pred_region
      %54 = dma.done [#allocation7], 512
    $region25: #{tpu_custom_call.1} parent=1 // pred_fallthru
      _
    %s55 = smul.u32 0, 2
    %s56 = ssub.s32 0, %s55
    %s57 = smul.u32 0, %s56
    %s58 = sadd.s32 0, %s57
    %s59 = smul.u32 0, 2
    %s60 = ssub.s32 0, %s59
    %s61 = smul.u32 0, %s60
    %s62 = sadd.s32 0, %s61
    %p63 = scmp.eq.s32.totalorder 0, 0
    // Predicated region
    $region26: #{tpu_custom_call.1} parent=1 // pred_check
      %p64 = pneg %p63
    $region27: #{tpu_custom_call.1} parent=1 // pred_check_branch
      %66 = sbr.rel (%p64) target = $region29
    $region28: #{tpu_custom_call.1} parent=1 // pred_region
      %vm67 = vcmask 254976
      %68 = vst.msk [vmem:[#allocation2] sm:$0x3] %vm67, 0.0
    $region29: #{tpu_custom_call.1} parent=1 // pred_fallthru
      _
    %v69 = vld [vmem:[#allocation6] sm:$0xff]
    %v70 = vld [vmem:[#allocation6 + $0x8] sm:$0xff]
    %v71 = vld [vmem:[#allocation6 + $0x10] sm:$0xff]
    %v72 = vld [vmem:[#allocation6 + $0x18] sm:$0xff]
    %v73 = vld [vmem:[%s2] sm:$0x1]
    %v74 = vld [vmem:[%s3] sm:$0x1]
    %v75 = vld [vmem:[#allocation2] sm:$0x3]
    %vm76 = vcmask 261120
    %v78 = vsel %vm76, %v75, 0
    %80 = vmatprep.subr.mxu0 0.0
    %81 = vmatpush1.msra.mxu0 0.0
    %82 = vmatprep.subr.mxu0 0.0
    %83 = vmatpush1.msra.mxu0 0.0
    %84 = vmatprep.subr.mxu0 0.0
    %85 = vmatpush1.msra.mxu0 0.0
    %86 = vmatprep.subr.mxu0 0.0
    %87 = vmatpush1.msra.mxu0 0.0
    %88 = vmatprep.subr.mxu0 0.0
    %89 = vmatpush1.msra.mxu0 0.0
    %90 = vmatprep.subr.mxu0 0.0
    %91 = vmatpush1.msra.mxu0 0.0
    %92 = vmatprep.subr.mxu0 0.0
    %93 = vmatpush1.msra.mxu0 0.0
    %94 = vmatprep.subr.mxu0 0.0
    %95 = vmatpush1.msra.mxu0 0.0
    %96 = vmatprep.subr.mxu0 0.0
    %97 = vmatpush1.msra.mxu0 0.0
    %98 = vmatprep.subr.mxu0 0.0
    %99 = vmatpush1.msra.mxu0 0.0
    %100 = vmatprep.subr.mxu0 0.0
    %101 = vmatpush1.msra.mxu0 0.0
    %102 = vmatprep.subr.mxu0 0.0
    %103 = vmatpush1.msra.mxu0 0.0
    %104 = vmatprep.subr.mxu0 0.0
    %105 = vmatpush1.msra.mxu0 %v72
    %106 = vmatprep.subr.mxu0 0.0
    %107 = vmatpush1.msra.mxu0 %v71
    %108 = vmatprep.subr.mxu0 0.0
    %109 = vmatpush1.msra.mxu0 %v70
    %110 = vmatprep.subr.mxu0 0.0
    %111 = vmatpush1.msra.mxu0 %v69
    %112 = vmatprep.subr.mxu0 0.0
    %113 = vmatpush2.msra.mxu0 0.0
    %114 = vmatprep.subr.mxu0 0.0
    %115 = vmatpush2.msra.mxu0 0.0
    %116 = vmatprep.subr.mxu0 0.0
    %117 = vmatpush2.msra.mxu0 0.0
    %118 = vmatprep.subr.mxu0 0.0
    %119 = vmatpush2.msra.mxu0 0.0
    %120 = vmatprep.subr.mxu0 0.0
    %121 = vmatpush2.msra.mxu0 0.0
    %122 = vmatprep.subr.mxu0 0.0
    %123 = vmatpush2.msra.mxu0 0.0
    %124 = vmatprep.subr.mxu0 0.0
    %125 = vmatpush2.msra.mxu0 0.0
    %126 = vmatprep.subr.mxu0 0.0
    %127 = vmatpush2.msra.mxu0 0.0
    %128 = vmatprep.subr.mxu0 0.0
    %129 = vmatpush2.msra.mxu0 0.0
    %130 = vmatprep.subr.mxu0 0.0
    %131 = vmatpush2.msra.mxu0 0.0
    %132 = vmatprep.subr.mxu0 0.0
    %133 = vmatpush2.msra.mxu0 0.0
    %134 = vmatprep.subr.mxu0 0.0
    %135 = vmatpush2.msra.mxu0 0.0
    %136 = vmatprep.subr.mxu0 0.0
    %137 = vmatpush2.msra.mxu0 0.0
    %138 = vmatprep.subr.mxu0 0.0
    %139 = vmatpush2.msra.mxu0 0.0
    %140 = vmatprep.subr.mxu0 0.0
    %141 = vmatpush2.msra.mxu0 0.0
    %142 = vmatprep.subr.mxu0 0.0
    %143 = vmatpush2.msra.mxu0 0.0
    %144 = vmatprep.mubr.f32.mxu0 0.0
    %145 = vmatmul.mubr.f32.gmra.mxu0 %v78
    %v146 = vpop.f32.mrf.mxu0
    %v147 = vadd.f32 0.0, %v146
    %v148 = vpop.f32.mrf.mxu0
    %149 = vdwg.mxu0
    %v150 = vld [vmem:[#allocation3] sm:$0x1]
    %v151 = vld [vmem:[#allocation3 + $0x8] sm:$0x1]
    %v153 = vlaneseq
    %v154 = vshrl.u32 %v153, 7
    %v155 = vsub.s32 0, %v154
    %v156 = vrot.slane %v73, %v155
    %v158 = vadd.f32 %v150, %v156
    %v159 = vadd.f32 %v151, %v156
    %v161 = vrot.slane %v147, 1
    %v164 = vadd.f32 %v158, %v147
    %v165 = vadd.f32 %v159, %v161
    %v166 = vxor.u32 %v164, 2147483648
    %v167 = vxor.u32 %v165, 2147483648
    %v168 = vmul.f32 %v166, 1.442695
    %v169 = vpow.pop %v168
    %v170 = vmul.f32 %v167, 1.442695
    %v171 = vpow.pop %v170
    %v172 = vadd.f32 %v169, 1.0
    %v173 = vadd.f32 %v171, 1.0
    %v174 = vrcp.pop %v172
    %v175 = vmul.f32 1.0, %v174
    %v176 = vrcp.pop %v173
    %v177 = vmul.f32 1.0, %v176
    %v179 = vlaneseq
    %v180 = vshrl.u32 %v179, 7
    %v181 = vsub.s32 0, %v180
    %v182 = vrot.slane %v74, %v181
    %183 = vrot.lane.b32.xlu0 %v182, 64
    %v184 = vpop.permute.xlu0 %183
    %v186 = vadd.f32 %v147, %v184
    %v188 = vrot.slane %v186, 1
    %189 = vrot.lane.b32.xlu0 %v186, 64
    %v190 = vpop.permute.xlu0 %189
    %191 = vrot.lane.b32.xlu0 %v188, 64
    %v192 = vpop.permute.xlu0 %191
    %v195 = vmul.f32 %v175, %v190
    %v196 = vmul.f32 %v177, %v192
    %199 = vrot.lane.b32.xlu0 %v195, 64
    %v200 = vpop.permute.xlu0 %199
    %201 = vrot.lane.b32.xlu0 %v196, 64
    %v202 = vpop.permute.xlu0 %201
    %v205 = vadd.f32 %v158, %v200
    %v206 = vadd.f32 %v159, %v202
    %v207 = vtanh.pop %v205
    %v208 = vtanh.pop %v206
    %v209 = vsub.f32 1.0, %v175
    %v210 = vsub.f32 1.0, %v177
    %213 = vrot.lane.b32.xlu0 %v207, 96
    %v214 = vpop.permute.xlu0 %213
    %215 = vrot.lane.b32.xlu0 %v208, 96
    %v216 = vpop.permute.xlu0 %215
    %v219 = vmul.f32 %v209, %v214
    %v220 = vmul.f32 %v210, %v216
    %v221 = vrot.slane %v75, 1
    %222 = vrot.lane.b32.xlu0 %v75, 32
    %v223 = vpop.permute.xlu0 %222
    %224 = vrot.lane.b32.xlu0 %v221, 32
    %v225 = vpop.permute.xlu0 %224
    %v228 = vmul.f32 %v175, %v223
    %v229 = vmul.f32 %v177, %v225
    %v230 = vadd.f32 %v219, %v228
    %v231 = vadd.f32 %v220, %v229
    %234 = vrot.lane.b32.xlu0 %v230, 96
    %v235 = vpop.permute.xlu0 %234
    %236 = vrot.lane.b32.xlu0 %v231, 96
    %v237 = vpop.permute.xlu0 %236
    %vm240 = vcmask 253952
    %241 = vst.msk [vmem:[#allocation8] sm:$0x1] %vm240, %v235
    %242 = vst.msk [vmem:[#allocation8 + $0x8] sm:$0x1] %vm240, %v237
    %v243 = vrot.slane %v231, 7
    %vm244 = vcmask 1041409
    %v245 = vsel %vm244, %v243, %v230
    %246 = vrot.lane.b32.xlu0 %v245, 96
    %v247 = vpop.permute.xlu0 %246
    %v248 = vsel %vm76, %v247, 0
    %250 = vmatprep.subr.mxu0 0.0
    %251 = vmatpush1.msra.mxu0 0.0
    %252 = vmatprep.subr.mxu0 0.0
    %253 = vmatpush1.msra.mxu0 0.0
    %254 = vmatprep.subr.mxu0 0.0
    %255 = vmatpush1.msra.mxu0 0.0
    %256 = vmatprep.subr.mxu0 0.0
    %257 = vmatpush1.msra.mxu0 0.0
    %258 = vmatprep.subr.mxu0 0.0
    %259 = vmatpush1.msra.mxu0 0.0
    %260 = vmatprep.subr.mxu0 0.0
    %261 = vmatpush1.msra.mxu0 0.0
    %262 = vmatprep.subr.mxu0 0.0
    %263 = vmatpush1.msra.mxu0 0.0
    %264 = vmatprep.subr.mxu0 0.0
    %265 = vmatpush1.msra.mxu0 0.0
    %266 = vmatprep.subr.mxu0 0.0
    %267 = vmatpush1.msra.mxu0 0.0
    %268 = vmatprep.subr.mxu0 0.0
    %269 = vmatpush1.msra.mxu0 0.0
    %270 = vmatprep.subr.mxu0 0.0
    %271 = vmatpush1.msra.mxu0 0.0
    %272 = vmatprep.subr.mxu0 0.0
    %273 = vmatpush1.msra.mxu0 0.0
    %274 = vmatprep.subr.mxu0 0.0
    %275 = vmatpush1.msra.mxu0 %v72
    %276 = vmatprep.subr.mxu0 0.0
    %277 = vmatpush1.msra.mxu0 %v71
    %278 = vmatprep.subr.mxu0 0.0
    %279 = vmatpush1.msra.mxu0 %v70
    %280 = vmatprep.subr.mxu0 0.0
    %281 = vmatpush1.msra.mxu0 %v69
    %282 = vmatprep.subr.mxu0 0.0
    %283 = vmatpush2.msra.mxu0 0.0
    %284 = vmatprep.subr.mxu0 0.0
    %285 = vmatpush2.msra.mxu0 0.0
    %286 = vmatprep.subr.mxu0 0.0
    %287 = vmatpush2.msra.mxu0 0.0
    %288 = vmatprep.subr.mxu0 0.0
    %289 = vmatpush2.msra.mxu0 0.0
    %290 = vmatprep.subr.mxu0 0.0
    %291 = vmatpush2.msra.mxu0 0.0
    %292 = vmatprep.subr.mxu0 0.0
    %293 = vmatpush2.msra.mxu0 0.0
    %294 = vmatprep.subr.mxu0 0.0
    %295 = vmatpush2.msra.mxu0 0.0
    %296 = vmatprep.subr.mxu0 0.0
    %297 = vmatpush2.msra.mxu0 0.0
    %298 = vmatprep.subr.mxu0 0.0
    %299 = vmatpush2.msra.mxu0 0.0
    %300 = vmatprep.subr.mxu0 0.0
    %301 = vmatpush2.msra.mxu0 0.0
    %302 = vmatprep.subr.mxu0 0.0
    %303 = vmatpush2.msra.mxu0 0.0
    %304 = vmatprep.subr.mxu0 0.0
    %305 = vmatpush2.msra.mxu0 0.0
    %306 = vmatprep.subr.mxu0 0.0
    %307 = vmatpush2.msra.mxu0 0.0
    %308 = vmatprep.subr.mxu0 0.0
    %309 = vmatpush2.msra.mxu0 0.0
    %310 = vmatprep.subr.mxu0 0.0
    %311 = vmatpush2.msra.mxu0 0.0
    %312 = vmatprep.subr.mxu0 0.0
    %313 = vmatpush2.msra.mxu0 0.0
    %314 = vmatprep.mubr.f32.mxu0 0.0
    %315 = vmatmul.mubr.f32.gmra.mxu0 %v248
    %v316 = vpop.f32.mrf.mxu0
    %v317 = vadd.f32 0.0, %v316
    %v318 = vpop.f32.mrf.mxu0
    %319 = vdwg.mxu0
    %v320 = vld [vmem:[#allocation3 + $0x1] sm:$0x1]
    %v321 = vld [vmem:[#allocation3 + $0x9] sm:$0x1]
    %v322 = vadd.f32 %v320, %v156
    %v323 = vadd.f32 %v321, %v156
    %v325 = vrot.slane %v317, 1
    %v328 = vadd.f32 %v322, %v317
    %v329 = vadd.f32 %v323, %v325
    %v330 = vxor.u32 %v328, 2147483648
    %v331 = vxor.u32 %v329, 2147483648
    %v332 = vmul.f32 %v330, 1.442695
    %v333 = vpow.pop %v332
    %v334 = vmul.f32 %v331, 1.442695
    %v335 = vpow.pop %v334
    %v336 = vadd.f32 %v333, 1.0
    %v337 = vadd.f32 %v335, 1.0
    %v338 = vrcp.pop %v336
    %v339 = vmul.f32 1.0, %v338
    %v340 = vrcp.pop %v337
    %v341 = vmul.f32 1.0, %v340
    %v342 = vadd.f32 %v317, %v184
    %v344 = vrot.slane %v342, 1
    %345 = vrot.lane.b32.xlu0 %v342, 64
    %v346 = vpop.permute.xlu0 %345
    %347 = vrot.lane.b32.xlu0 %v344, 64
    %v348 = vpop.permute.xlu0 %347
    %v351 = vmul.f32 %v339, %v346
    %v352 = vmul.f32 %v341, %v348
    %355 = vrot.lane.b32.xlu0 %v351, 64
    %v356 = vpop.permute.xlu0 %355
    %357 = vrot.lane.b32.xlu0 %v352, 64
    %v358 = vpop.permute.xlu0 %357
    %v361 = vadd.f32 %v322, %v356
    %v362 = vadd.f32 %v323, %v358
    %v363 = vtanh.pop %v361
    %v364 = vtanh.pop %v362
    %v365 = vsub.f32 1.0, %v339
    %v366 = vsub.f32 1.0, %v341
    %369 = vrot.lane.b32.xlu0 %v363, 96
    %v370 = vpop.permute.xlu0 %369
    %371 = vrot.lane.b32.xlu0 %v364, 96
    %v372 = vpop.permute.xlu0 %371
    %v375 = vmul.f32 %v365, %v370
    %v376 = vmul.f32 %v366, %v372
    %v377 = vmul.f32 %v339, %v230
    %v378 = vmul.f32 %v341, %v231
    %v379 = vadd.f32 %v375, %v377
    %v380 = vadd.f32 %v376, %v378
    %383 = vrot.lane.b32.xlu0 %v379, 96
    %v384 = vpop.permute.xlu0 %383
    %385 = vrot.lane.b32.xlu0 %v380, 96
    %v386 = vpop.permute.xlu0 %385
    %389 = vst.msk [vmem:[#allocation8 + $0x1] sm:$0x1] %vm240, %v384
    %390 = vst.msk [vmem:[#allocation8 + $0x9] sm:$0x1] %vm240, %v386
    %v391 = vrot.slane %v380, 7
    %v392 = vsel %vm244, %v391, %v379
    %393 = vrot.lane.b32.xlu0 %v392, 96
    %v394 = vpop.permute.xlu0 %393
    %v395 = vsel %vm76, %v394, 0
    %397 = vmatprep.subr.mxu0 0.0
    %398 = vmatpush1.msra.mxu0 0.0
    %399 = vmatprep.subr.mxu0 0.0
    %400 = vmatpush1.msra.mxu0 0.0
    %401 = vmatprep.subr.mxu0 0.0
    %402 = vmatpush1.msra.mxu0 0.0
    %403 = vmatprep.subr.mxu0 0.0
    %404 = vmatpush1.msra.mxu0 0.0
    %405 = vmatprep.subr.mxu0 0.0
    %406 = vmatpush1.msra.mxu0 0.0
    %407 = vmatprep.subr.mxu0 0.0
    %408 = vmatpush1.msra.mxu0 0.0
    %409 = vmatprep.subr.mxu0 0.0
    %410 = vmatpush1.msra.mxu0 0.0
    %411 = vmatprep.subr.mxu0 0.0
    %412 = vmatpush1.msra.mxu0 0.0
    %413 = vmatprep.subr.mxu0 0.0
    %414 = vmatpush1.msra.mxu0 0.0
    %415 = vmatprep.subr.mxu0 0.0
    %416 = vmatpush1.msra.mxu0 0.0
    %417 = vmatprep.subr.mxu0 0.0
    %418 = vmatpush1.msra.mxu0 0.0
    %419 = vmatprep.subr.mxu0 0.0
    %420 = vmatpush1.msra.mxu0 0.0
    %421 = vmatprep.subr.mxu0 0.0
    %422 = vmatpush1.msra.mxu0 %v72
    %423 = vmatprep.subr.mxu0 0.0
    %424 = vmatpush1.msra.mxu0 %v71
    %425 = vmatprep.subr.mxu0 0.0
    %426 = vmatpush1.msra.mxu0 %v70
    %427 = vmatprep.subr.mxu0 0.0
    %428 = vmatpush1.msra.mxu0 %v69
    %429 = vmatprep.subr.mxu0 0.0
    %430 = vmatpush2.msra.mxu0 0.0
    %431 = vmatprep.subr.mxu0 0.0
    %432 = vmatpush2.msra.mxu0 0.0
    %433 = vmatprep.subr.mxu0 0.0
    %434 = vmatpush2.msra.mxu0 0.0
    %435 = vmatprep.subr.mxu0 0.0
    %436 = vmatpush2.msra.mxu0 0.0
    %437 = vmatprep.subr.mxu0 0.0
    %438 = vmatpush2.msra.mxu0 0.0
    %439 = vmatprep.subr.mxu0 0.0
    %440 = vmatpush2.msra.mxu0 0.0
    %441 = vmatprep.subr.mxu0 0.0
    %442 = vmatpush2.msra.mxu0 0.0
    %443 = vmatprep.subr.mxu0 0.0
    %444 = vmatpush2.msra.mxu0 0.0
    %445 = vmatprep.subr.mxu0 0.0
    %446 = vmatpush2.msra.mxu0 0.0
    %447 = vmatprep.subr.mxu0 0.0
    %448 = vmatpush2.msra.mxu0 0.0
    %449 = vmatprep.subr.mxu0 0.0
    %450 = vmatpush2.msra.mxu0 0.0
    %451 = vmatprep.subr.mxu0 0.0
    %452 = vmatpush2.msra.mxu0 0.0
    %453 = vmatprep.subr.mxu0 0.0
    %454 = vmatpush2.msra.mxu0 0.0
    %455 = vmatprep.subr.mxu0 0.0
    %456 = vmatpush2.msra.mxu0 0.0
    %457 = vmatprep.subr.mxu0 0.0
    %458 = vmatpush2.msra.mxu0 0.0
    %459 = vmatprep.subr.mxu0 0.0
    %460 = vmatpush2.msra.mxu0 0.0
    %461 = vmatprep.mubr.f32.mxu0 0.0
    %462 = vmatmul.mubr.f32.gmra.mxu0 %v395
    %v463 = vpop.f32.mrf.mxu0
    %v464 = vadd.f32 0.0, %v463
    %v465 = vpop.f32.mrf.mxu0
    %466 = vdwg.mxu0
    %v467 = vld [vmem:[#allocation3 + $0x2] sm:$0x1]
    %v468 = vld [vmem:[#allocation3 + $0xa] sm:$0x1]
    %v469 = vadd.f32 %v467, %v156
    %v470 = vadd.f32 %v468, %v156
    %v472 = vrot.slane %v464, 1
    %v475 = vadd.f32 %v469, %v464
    %v476 = vadd.f32 %v470, %v472
    %v477 = vxor.u32 %v475, 2147483648
    %v478 = vxor.u32 %v476, 2147483648
    %v479 = vmul.f32 %v477, 1.442695
    %v480 = vpow.pop %v479
    %v481 = vmul.f32 %v478, 1.442695
    %v482 = vpow.pop %v481
    %v483 = vadd.f32 %v480, 1.0
    %v484 = vadd.f32 %v482, 1.0
    %v485 = vrcp.pop %v483
    %v486 = vmul.f32 1.0, %v485
    %v487 = vrcp.pop %v484
    %v488 = vmul.f32 1.0, %v487
    %v489 = vadd.f32 %v464, %v184
    %v491 = vrot.slane %v489, 1
    %492 = vrot.lane.b32.xlu0 %v489, 64
    %v493 = vpop.permute.xlu0 %492
    %494 = vrot.lane.b32.xlu0 %v491, 64
    %v495 = vpop.permute.xlu0 %494
    %v498 = vmul.f32 %v486, %v493
    %v499 = vmul.f32 %v488, %v495
    %502 = vrot.lane.b32.xlu0 %v498, 64
    %v503 = vpop.permute.xlu0 %502
    %504 = vrot.lane.b32.xlu0 %v499, 64
    %v505 = vpop.permute.xlu0 %504
    %v508 = vadd.f32 %v469, %v503
    %v509 = vadd.f32 %v470, %v505
    %v510 = vtanh.pop %v508
    %v511 = vtanh.pop %v509
    %v512 = vsub.f32 1.0, %v486
    %v513 = vsub.f32 1.0, %v488
    %516 = vrot.lane.b32.xlu0 %v510, 96
    %v517 = vpop.permute.xlu0 %516
    %518 = vrot.lane.b32.xlu0 %v511, 96
    %v519 = vpop.permute.xlu0 %518
    %v522 = vmul.f32 %v512, %v517
    %v523 = vmul.f32 %v513, %v519
    %v524 = vmul.f32 %v486, %v379
    %v525 = vmul.f32 %v488, %v380
    %v526 = vadd.f32 %v522, %v524
    %v527 = vadd.f32 %v523, %v525
    %530 = vrot.lane.b32.xlu0 %v526, 96
    %v531 = vpop.permute.xlu0 %530
    %532 = vrot.lane.b32.xlu0 %v527, 96
    %v533 = vpop.permute.xlu0 %532
    %536 = vst.msk [vmem:[#allocation8 + $0x2] sm:$0x1] %vm240, %v531
    %537 = vst.msk [vmem:[#allocation8 + $0xa] sm:$0x1] %vm240, %v533
    %v538 = vrot.slane %v527, 7
    %v539 = vsel %vm244, %v538, %v526
    %540 = vrot.lane.b32.xlu0 %v539, 96
    %v541 = vpop.permute.xlu0 %540
    %v542 = vsel %vm76, %v541, 0
    %544 = vmatprep.subr.mxu0 0.0
    %545 = vmatpush1.msra.mxu0 0.0
    %546 = vmatprep.subr.mxu0 0.0
    %547 = vmatpush1.msra.mxu0 0.0
    %548 = vmatprep.subr.mxu0 0.0
    %549 = vmatpush1.msra.mxu0 0.0
    %550 = vmatprep.subr.mxu0 0.0
    %551 = vmatpush1.msra.mxu0 0.0
    %552 = vmatprep.subr.mxu0 0.0
    %553 = vmatpush1.msra.mxu0 0.0
    %554 = vmatprep.subr.mxu0 0.0
    %555 = vmatpush1.msra.mxu0 0.0
    %556 = vmatprep.subr.mxu0 0.0
    %557 = vmatpush1.msra.mxu0 0.0
    %558 = vmatprep.subr.mxu0 0.0
    %559 = vmatpush1.msra.mxu0 0.0
    %560 = vmatprep.subr.mxu0 0.0
    %561 = vmatpush1.msra.mxu0 0.0
    %562 = vmatprep.subr.mxu0 0.0
    %563 = vmatpush1.msra.mxu0 0.0
    %564 = vmatprep.subr.mxu0 0.0
    %565 = vmatpush1.msra.mxu0 0.0
    %566 = vmatprep.subr.mxu0 0.0
    %567 = vmatpush1.msra.mxu0 0.0
    %568 = vmatprep.subr.mxu0 0.0
    %569 = vmatpush1.msra.mxu0 %v72
    %570 = vmatprep.subr.mxu0 0.0
    %571 = vmatpush1.msra.mxu0 %v71
    %572 = vmatprep.subr.mxu0 0.0
    %573 = vmatpush1.msra.mxu0 %v70
    %574 = vmatprep.subr.mxu0 0.0
    %575 = vmatpush1.msra.mxu0 %v69
    %576 = vmatprep.subr.mxu0 0.0
    %577 = vmatpush2.msra.mxu0 0.0
    %578 = vmatprep.subr.mxu0 0.0
    %579 = vmatpush2.msra.mxu0 0.0
    %580 = vmatprep.subr.mxu0 0.0
    %581 = vmatpush2.msra.mxu0 0.0
    %582 = vmatprep.subr.mxu0 0.0
    %583 = vmatpush2.msra.mxu0 0.0
    %584 = vmatprep.subr.mxu0 0.0
    %585 = vmatpush2.msra.mxu0 0.0
    %586 = vmatprep.subr.mxu0 0.0
    %587 = vmatpush2.msra.mxu0 0.0
    %588 = vmatprep.subr.mxu0 0.0
    %589 = vmatpush2.msra.mxu0 0.0
    %590 = vmatprep.subr.mxu0 0.0
    %591 = vmatpush2.msra.mxu0 0.0
    %592 = vmatprep.subr.mxu0 0.0
    %593 = vmatpush2.msra.mxu0 0.0
    %594 = vmatprep.subr.mxu0 0.0
    %595 = vmatpush2.msra.mxu0 0.0
    %596 = vmatprep.subr.mxu0 0.0
    %597 = vmatpush2.msra.mxu0 0.0
    %598 = vmatprep.subr.mxu0 0.0
    %599 = vmatpush2.msra.mxu0 0.0
    %600 = vmatprep.subr.mxu0 0.0
    %601 = vmatpush2.msra.mxu0 0.0
    %602 = vmatprep.subr.mxu0 0.0
    %603 = vmatpush2.msra.mxu0 0.0
    %604 = vmatprep.subr.mxu0 0.0
    %605 = vmatpush2.msra.mxu0 0.0
    %606 = vmatprep.subr.mxu0 0.0
    %607 = vmatpush2.msra.mxu0 0.0
    %608 = vmatprep.mubr.f32.mxu0 0.0
    %609 = vmatmul.mubr.f32.gmra.mxu0 %v542
    %v610 = vpop.f32.mrf.mxu0
    %v611 = vadd.f32 0.0, %v610
    %v612 = vpop.f32.mrf.mxu0
    %613 = vdwg.mxu0
    %v614 = vld [vmem:[#allocation3 + $0x3] sm:$0x1]
    %v615 = vld [vmem:[#allocation3 + $0xb] sm:$0x1]
    %v616 = vadd.f32 %v614, %v156
    %v617 = vadd.f32 %v615, %v156
    %v619 = vrot.slane %v611, 1
    %v622 = vadd.f32 %v616, %v611
    %v623 = vadd.f32 %v617, %v619
    %v624 = vxor.u32 %v622, 2147483648
    %v625 = vxor.u32 %v623, 2147483648
    %v626 = vmul.f32 %v624, 1.442695
    %v627 = vpow.pop %v626
    %v628 = vmul.f32 %v625, 1.442695
    %v629 = vpow.pop %v628
    %v630 = vadd.f32 %v627, 1.0
    %v631 = vadd.f32 %v629, 1.0
    %v632 = vrcp.pop %v630
    %v633 = vmul.f32 1.0, %v632
    %v634 = vrcp.pop %v631
    %v635 = vmul.f32 1.0, %v634
    %v636 = vadd.f32 %v611, %v184
    %v638 = vrot.slane %v636, 1
    %639 = vrot.lane.b32.xlu0 %v636, 64
    %v640 = vpop.permute.xlu0 %639
    %641 = vrot.lane.b32.xlu0 %v638, 64
    %v642 = vpop.permute.xlu0 %641
    %v645 = vmul.f32 %v633, %v640
    %v646 = vmul.f32 %v635, %v642
    %649 = vrot.lane.b32.xlu0 %v645, 64
    %v650 = vpop.permute.xlu0 %649
    %651 = vrot.lane.b32.xlu0 %v646, 64
    %v652 = vpop.permute.xlu0 %651
    %v655 = vadd.f32 %v616, %v650
    %v656 = vadd.f32 %v617, %v652
    %v657 = vtanh.pop %v655
    %v658 = vtanh.pop %v656
    %v659 = vsub.f32 1.0, %v633
    %v660 = vsub.f32 1.0, %v635
    %663 = vrot.lane.b32.xlu0 %v657, 96
    %v664 = vpop.permute.xlu0 %663
    %665 = vrot.lane.b32.xlu0 %v658, 96
    %v666 = vpop.permute.xlu0 %665
    %v669 = vmul.f32 %v659, %v664
    %v670 = vmul.f32 %v660, %v666
    %v671 = vmul.f32 %v633, %v526
    %v672 = vmul.f32 %v635, %v527
    %v673 = vadd.f32 %v669, %v671
    %v674 = vadd.f32 %v670, %v672
    %677 = vrot.lane.b32.xlu0 %v673, 96
    %v678 = vpop.permute.xlu0 %677
    %679 = vrot.lane.b32.xlu0 %v674, 96
    %v680 = vpop.permute.xlu0 %679
    %683 = vst.msk [vmem:[#allocation8 + $0x3] sm:$0x1] %vm240, %v678
    %684 = vst.msk [vmem:[#allocation8 + $0xb] sm:$0x1] %vm240, %v680
    %v685 = vrot.slane %v674, 7
    %v686 = vsel %vm244, %v685, %v673
    %687 = vrot.lane.b32.xlu0 %v686, 96
    %v688 = vpop.permute.xlu0 %687
    %v689 = vsel %vm76, %v688, 0
    %691 = vmatprep.subr.mxu0 0.0
    %692 = vmatpush1.msra.mxu0 0.0
    %693 = vmatprep.subr.mxu0 0.0
    %694 = vmatpush1.msra.mxu0 0.0
    %695 = vmatprep.subr.mxu0 0.0
    %696 = vmatpush1.msra.mxu0 0.0
    %697 = vmatprep.subr.mxu0 0.0
    %698 = vmatpush1.msra.mxu0 0.0
    %699 = vmatprep.subr.mxu0 0.0
    %700 = vmatpush1.msra.mxu0 0.0
    %701 = vmatprep.subr.mxu0 0.0
    %702 = vmatpush1.msra.mxu0 0.0
    %703 = vmatprep.subr.mxu0 0.0
    %704 = vmatpush1.msra.mxu0 0.0
    %705 = vmatprep.subr.mxu0 0.0
    %706 = vmatpush1.msra.mxu0 0.0
    %707 = vmatprep.subr.mxu0 0.0
    %708 = vmatpush1.msra.mxu0 0.0
    %709 = vmatprep.subr.mxu0 0.0
    %710 = vmatpush1.msra.mxu0 0.0
    %711 = vmatprep.subr.mxu0 0.0
    %712 = vmatpush1.msra.mxu0 0.0
    %713 = vmatprep.subr.mxu0 0.0
    %714 = vmatpush1.msra.mxu0 0.0
    %715 = vmatprep.subr.mxu0 0.0
    %716 = vmatpush1.msra.mxu0 %v72
    %717 = vmatprep.subr.mxu0 0.0
    %718 = vmatpush1.msra.mxu0 %v71
    %719 = vmatprep.subr.mxu0 0.0
    %720 = vmatpush1.msra.mxu0 %v70
    %721 = vmatprep.subr.mxu0 0.0
    %722 = vmatpush1.msra.mxu0 %v69
    %723 = vmatprep.subr.mxu0 0.0
    %724 = vmatpush2.msra.mxu0 0.0
    %725 = vmatprep.subr.mxu0 0.0
    %726 = vmatpush2.msra.mxu0 0.0
    %727 = vmatprep.subr.mxu0 0.0
    %728 = vmatpush2.msra.mxu0 0.0
    %729 = vmatprep.subr.mxu0 0.0
    %730 = vmatpush2.msra.mxu0 0.0
    %731 = vmatprep.subr.mxu0 0.0
    %732 = vmatpush2.msra.mxu0 0.0
    %733 = vmatprep.subr.mxu0 0.0
    %734 = vmatpush2.msra.mxu0 0.0
    %735 = vmatprep.subr.mxu0 0.0
    %736 = vmatpush2.msra.mxu0 0.0
    %737 = vmatprep.subr.mxu0 0.0
    %738 = vmatpush2.msra.mxu0 0.0
    %739 = vmatprep.subr.mxu0 0.0
    %740 = vmatpush2.msra.mxu0 0.0
    %741 = vmatprep.subr.mxu0 0.0
    %742 = vmatpush2.msra.mxu0 0.0
    %743 = vmatprep.subr.mxu0 0.0
    %744 = vmatpush2.msra.mxu0 0.0
    %745 = vmatprep.subr.mxu0 0.0
    %746 = vmatpush2.msra.mxu0 0.0
    %747 = vmatprep.subr.mxu0 0.0
    %748 = vmatpush2.msra.mxu0 0.0
    %749 = vmatprep.subr.mxu0 0.0
    %750 = vmatpush2.msra.mxu0 0.0
    %751 = vmatprep.subr.mxu0 0.0
    %752 = vmatpush2.msra.mxu0 0.0
    %753 = vmatprep.subr.mxu0 0.0
    %754 = vmatpush2.msra.mxu0 0.0
    %755 = vmatprep.mubr.f32.mxu0 0.0
    %756 = vmatmul.mubr.f32.gmra.mxu0 %v689
    %v757 = vpop.f32.mrf.mxu0
    %v758 = vadd.f32 0.0, %v757
    %v759 = vpop.f32.mrf.mxu0
    %760 = vdwg.mxu0
    %v761 = vld [vmem:[#allocation3 + $0x4] sm:$0x1]
    %v762 = vld [vmem:[#allocation3 + $0xc] sm:$0x1]
    %v763 = vadd.f32 %v761, %v156
    %v764 = vadd.f32 %v762, %v156
    %v766 = vrot.slane %v758, 1
    %v769 = vadd.f32 %v763, %v758
    %v770 = vadd.f32 %v764, %v766
    %v771 = vxor.u32 %v769, 2147483648
    %v772 = vxor.u32 %v770, 2147483648
    %v773 = vmul.f32 %v771, 1.442695
    %v774 = vpow.pop %v773
    %v775 = vmul.f32 %v772, 1.442695
    %v776 = vpow.pop %v775
    %v777 = vadd.f32 %v774, 1.0
    %v778 = vadd.f32 %v776, 1.0
    %v779 = vrcp.pop %v777
    %v780 = vmul.f32 1.0, %v779
    %v781 = vrcp.pop %v778
    %v782 = vmul.f32 1.0, %v781
    %v783 = vadd.f32 %v758, %v184
    %v785 = vrot.slane %v783, 1
    %786 = vrot.lane.b32.xlu0 %v783, 64
    %v787 = vpop.permute.xlu0 %786
    %788 = vrot.lane.b32.xlu0 %v785, 64
    %v789 = vpop.permute.xlu0 %788
    %v792 = vmul.f32 %v780, %v787
    %v793 = vmul.f32 %v782, %v789
    %796 = vrot.lane.b32.xlu0 %v792, 64
    %v797 = vpop.permute.xlu0 %796
    %798 = vrot.lane.b32.xlu0 %v793, 64
    %v799 = vpop.permute.xlu0 %798
    %v802 = vadd.f32 %v763, %v797
    %v803 = vadd.f32 %v764, %v799
    %v804 = vtanh.pop %v802
    %v805 = vtanh.pop %v803
    %v806 = vsub.f32 1.0, %v780
    %v807 = vsub.f32 1.0, %v782
    %810 = vrot.lane.b32.xlu0 %v804, 96
    %v811 = vpop.permute.xlu0 %810
    %812 = vrot.lane.b32.xlu0 %v805, 96
    %v813 = vpop.permute.xlu0 %812
    %v816 = vmul.f32 %v806, %v811
    %v817 = vmul.f32 %v807, %v813
    %v818 = vmul.f32 %v780, %v673
    %v819 = vmul.f32 %v782, %v674
    %v820 = vadd.f32 %v816, %v818
    %v821 = vadd.f32 %v817, %v819
    %824 = vrot.lane.b32.xlu0 %v820, 96
    %v825 = vpop.permute.xlu0 %824
    %826 = vrot.lane.b32.xlu0 %v821, 96
    %v827 = vpop.permute.xlu0 %826
    %830 = vst.msk [vmem:[#allocation8 + $0x4] sm:$0x1] %vm240, %v825
    %831 = vst.msk [vmem:[#allocation8 + $0xc] sm:$0x1] %vm240, %v827
    %v832 = vrot.slane %v821, 7
    %v833 = vsel %vm244, %v832, %v820
    %834 = vrot.lane.b32.xlu0 %v833, 96
    %v835 = vpop.permute.xlu0 %834
    %v836 = vsel %vm76, %v835, 0
    %838 = vmatprep.subr.mxu0 0.0
    %839 = vmatpush1.msra.mxu0 0.0
    %840 = vmatprep.subr.mxu0 0.0
    %841 = vmatpush1.msra.mxu0 0.0
    %842 = vmatprep.subr.mxu0 0.0
    %843 = vmatpush1.msra.mxu0 0.0
    %844 = vmatprep.subr.mxu0 0.0
    %845 = vmatpush1.msra.mxu0 0.0
    %846 = vmatprep.subr.mxu0 0.0
    %847 = vmatpush1.msra.mxu0 0.0
    %848 = vmatprep.subr.mxu0 0.0
    %849 = vmatpush1.msra.mxu0 0.0
    %850 = vmatprep.subr.mxu0 0.0
    %851 = vmatpush1.msra.mxu0 0.0
    %852 = vmatprep.subr.mxu0 0.0
    %853 = vmatpush1.msra.mxu0 0.0
    %854 = vmatprep.subr.mxu0 0.0
    %855 = vmatpush1.msra.mxu0 0.0
    %856 = vmatprep.subr.mxu0 0.0
    %857 = vmatpush1.msra.mxu0 0.0
    %858 = vmatprep.subr.mxu0 0.0
    %859 = vmatpush1.msra.mxu0 0.0
    %860 = vmatprep.subr.mxu0 0.0
    %861 = vmatpush1.msra.mxu0 0.0
    %862 = vmatprep.subr.mxu0 0.0
    %863 = vmatpush1.msra.mxu0 %v72
    %864 = vmatprep.subr.mxu0 0.0
    %865 = vmatpush1.msra.mxu0 %v71
    %866 = vmatprep.subr.mxu0 0.0
    %867 = vmatpush1.msra.mxu0 %v70
    %868 = vmatprep.subr.mxu0 0.0
    %869 = vmatpush1.msra.mxu0 %v69
    %870 = vmatprep.subr.mxu0 0.0
    %871 = vmatpush2.msra.mxu0 0.0
    %872 = vmatprep.subr.mxu0 0.0
    %873 = vmatpush2.msra.mxu0 0.0
    %874 = vmatprep.subr.mxu0 0.0
    %875 = vmatpush2.msra.mxu0 0.0
    %876 = vmatprep.subr.mxu0 0.0
    %877 = vmatpush2.msra.mxu0 0.0
    %878 = vmatprep.subr.mxu0 0.0
    %879 = vmatpush2.msra.mxu0 0.0
    %880 = vmatprep.subr.mxu0 0.0
    %881 = vmatpush2.msra.mxu0 0.0
    %882 = vmatprep.subr.mxu0 0.0
    %883 = vmatpush2.msra.mxu0 0.0
    %884 = vmatprep.subr.mxu0 0.0
    %885 = vmatpush2.msra.mxu0 0.0
    %886 = vmatprep.subr.mxu0 0.0
    %887 = vmatpush2.msra.mxu0 0.0
    %888 = vmatprep.subr.mxu0 0.0
    %889 = vmatpush2.msra.mxu0 0.0
    %890 = vmatprep.subr.mxu0 0.0
    %891 = vmatpush2.msra.mxu0 0.0
    %892 = vmatprep.subr.mxu0 0.0
    %893 = vmatpush2.msra.mxu0 0.0
    %894 = vmatprep.subr.mxu0 0.0
    %895 = vmatpush2.msra.mxu0 0.0
    %896 = vmatprep.subr.mxu0 0.0
    %897 = vmatpush2.msra.mxu0 0.0
    %898 = vmatprep.subr.mxu0 0.0
    %899 = vmatpush2.msra.mxu0 0.0
    %900 = vmatprep.subr.mxu0 0.0
    %901 = vmatpush2.msra.mxu0 0.0
    %902 = vmatprep.mubr.f32.mxu0 0.0
    %903 = vmatmul.mubr.f32.gmra.mxu0 %v836
    %v904 = vpop.f32.mrf.mxu0
    %v905 = vadd.f32 0.0, %v904
    %v906 = vpop.f32.mrf.mxu0
    %907 = vdwg.mxu0
    %v908 = vld [vmem:[#allocation3 + $0x5] sm:$0x1]
    %v909 = vld [vmem:[#allocation3 + $0xd] sm:$0x1]
    %v910 = vadd.f32 %v908, %v156
    %v911 = vadd.f32 %v909, %v156
    %v913 = vrot.slane %v905, 1
    %v916 = vadd.f32 %v910, %v905
    %v917 = vadd.f32 %v911, %v913
    %v918 = vxor.u32 %v916, 2147483648
    %v919 = vxor.u32 %v917, 2147483648
    %v920 = vmul.f32 %v918, 1.442695
    %v921 = vpow.pop %v920
    %v922 = vmul.f32 %v919, 1.442695
    %v923 = vpow.pop %v922
    %v924 = vadd.f32 %v921, 1.0
    %v925 = vadd.f32 %v923, 1.0
    %v926 = vrcp.pop %v924
    %v927 = vmul.f32 1.0, %v926
    %v928 = vrcp.pop %v925
    %v929 = vmul.f32 1.0, %v928
    %v930 = vadd.f32 %v905, %v184
    %v932 = vrot.slane %v930, 1
    %933 = vrot.lane.b32.xlu0 %v930, 64
    %v934 = vpop.permute.xlu0 %933
    %935 = vrot.lane.b32.xlu0 %v932, 64
    %v936 = vpop.permute.xlu0 %935
    %v939 = vmul.f32 %v927, %v934
    %v940 = vmul.f32 %v929, %v936
    %943 = vrot.lane.b32.xlu0 %v939, 64
    %v944 = vpop.permute.xlu0 %943
    %945 = vrot.lane.b32.xlu0 %v940, 64
    %v946 = vpop.permute.xlu0 %945
    %v949 = vadd.f32 %v910, %v944
    %v950 = vadd.f32 %v911, %v946
    %v951 = vtanh.pop %v949
    %v952 = vtanh.pop %v950
    %v953 = vsub.f32 1.0, %v927
    %v954 = vsub.f32 1.0, %v929
    %957 = vrot.lane.b32.xlu0 %v951, 96
    %v958 = vpop.permute.xlu0 %957
    %959 = vrot.lane.b32.xlu0 %v952, 96
    %v960 = vpop.permute.xlu0 %959
    %v963 = vmul.f32 %v953, %v958
    %v964 = vmul.f32 %v954, %v960
    %v965 = vmul.f32 %v927, %v820
    %v966 = vmul.f32 %v929, %v821
    %v967 = vadd.f32 %v963, %v965
    %v968 = vadd.f32 %v964, %v966
    %971 = vrot.lane.b32.xlu0 %v967, 96
    %v972 = vpop.permute.xlu0 %971
    %973 = vrot.lane.b32.xlu0 %v968, 96
    %v974 = vpop.permute.xlu0 %973
    %977 = vst.msk [vmem:[#allocation8 + $0x5] sm:$0x1] %vm240, %v972
    %978 = vst.msk [vmem:[#allocation8 + $0xd] sm:$0x1] %vm240, %v974
    %v979 = vrot.slane %v968, 7
    %v980 = vsel %vm244, %v979, %v967
    %981 = vrot.lane.b32.xlu0 %v980, 96
    %v982 = vpop.permute.xlu0 %981
    %v983 = vsel %vm76, %v982, 0
    %985 = vmatprep.subr.mxu0 0.0
    %986 = vmatpush1.msra.mxu0 0.0
    %987 = vmatprep.subr.mxu0 0.0
    %988 = vmatpush1.msra.mxu0 0.0
    %989 = vmatprep.subr.mxu0 0.0
    %990 = vmatpush1.msra.mxu0 0.0
    %991 = vmatprep.subr.mxu0 0.0
    %992 = vmatpush1.msra.mxu0 0.0
    %993 = vmatprep.subr.mxu0 0.0
    %994 = vmatpush1.msra.mxu0 0.0
    %995 = vmatprep.subr.mxu0 0.0
    %996 = vmatpush1.msra.mxu0 0.0
    %997 = vmatprep.subr.mxu0 0.0
    %998 = vmatpush1.msra.mxu0 0.0
    %999 = vmatprep.subr.mxu0 0.0
    %1000 = vmatpush1.msra.mxu0 0.0
    %1001 = vmatprep.subr.mxu0 0.0
    %1002 = vmatpush1.msra.mxu0 0.0
    %1003 = vmatprep.subr.mxu0 0.0
    %1004 = vmatpush1.msra.mxu0 0.0
    %1005 = vmatprep.subr.mxu0 0.0
    %1006 = vmatpush1.msra.mxu0 0.0
    %1007 = vmatprep.subr.mxu0 0.0
    %1008 = vmatpush1.msra.mxu0 0.0
    %1009 = vmatprep.subr.mxu0 0.0
    %1010 = vmatpush1.msra.mxu0 %v72
    %1011 = vmatprep.subr.mxu0 0.0
    %1012 = vmatpush1.msra.mxu0 %v71
    %1013 = vmatprep.subr.mxu0 0.0
    %1014 = vmatpush1.msra.mxu0 %v70
    %1015 = vmatprep.subr.mxu0 0.0
    %1016 = vmatpush1.msra.mxu0 %v69
    %1017 = vmatprep.subr.mxu0 0.0
    %1018 = vmatpush2.msra.mxu0 0.0
    %1019 = vmatprep.subr.mxu0 0.0
    %1020 = vmatpush2.msra.mxu0 0.0
    %1021 = vmatprep.subr.mxu0 0.0
    %1022 = vmatpush2.msra.mxu0 0.0
    %1023 = vmatprep.subr.mxu0 0.0
    %1024 = vmatpush2.msra.mxu0 0.0
    %1025 = vmatprep.subr.mxu0 0.0
    %1026 = vmatpush2.msra.mxu0 0.0
    %1027 = vmatprep.subr.mxu0 0.0
    %1028 = vmatpush2.msra.mxu0 0.0
    %1029 = vmatprep.subr.mxu0 0.0
    %1030 = vmatpush2.msra.mxu0 0.0
    %1031 = vmatprep.subr.mxu0 0.0
    %1032 = vmatpush2.msra.mxu0 0.0
    %1033 = vmatprep.subr.mxu0 0.0
    %1034 = vmatpush2.msra.mxu0 0.0
    %1035 = vmatprep.subr.mxu0 0.0
    %1036 = vmatpush2.msra.mxu0 0.0
    %1037 = vmatprep.subr.mxu0 0.0
    %1038 = vmatpush2.msra.mxu0 0.0
    %1039 = vmatprep.subr.mxu0 0.0
    %1040 = vmatpush2.msra.mxu0 0.0
    %1041 = vmatprep.subr.mxu0 0.0
    %1042 = vmatpush2.msra.mxu0 0.0
    %1043 = vmatprep.subr.mxu0 0.0
    %1044 = vmatpush2.msra.mxu0 0.0
    %1045 = vmatprep.subr.mxu0 0.0
    %1046 = vmatpush2.msra.mxu0 0.0
    %1047 = vmatprep.subr.mxu0 0.0
    %1048 = vmatpush2.msra.mxu0 0.0
    %1049 = vmatprep.mubr.f32.mxu0 0.0
    %1050 = vmatmul.mubr.f32.gmra.mxu0 %v983
    %v1051 = vpop.f32.mrf.mxu0
    %v1052 = vadd.f32 0.0, %v1051
    %v1053 = vpop.f32.mrf.mxu0
    %1054 = vdwg.mxu0
    %v1055 = vld [vmem:[#allocation3 + $0x6] sm:$0x1]
    %v1056 = vld [vmem:[#allocation3 + $0xe] sm:$0x1]
    %v1057 = vadd.f32 %v1055, %v156
    %v1058 = vadd.f32 %v1056, %v156
    %v1060 = vrot.slane %v1052, 1
    %v1063 = vadd.f32 %v1057, %v1052
    %v1064 = vadd.f32 %v1058, %v1060
    %v1065 = vxor.u32 %v1063, 2147483648
    %v1066 = vxor.u32 %v1064, 2147483648
    %v1067 = vmul.f32 %v1065, 1.442695
    %v1068 = vpow.pop %v1067
    %v1069 = vmul.f32 %v1066, 1.442695
    %v1070 = vpow.pop %v1069
    %v1071 = vadd.f32 %v1068, 1.0
    %v1072 = vadd.f32 %v1070, 1.0
    %v1073 = vrcp.pop %v1071
    %v1074 = vmul.f32 1.0, %v1073
    %v1075 = vrcp.pop %v1072
    %v1076 = vmul.f32 1.0, %v1075
    %v1077 = vadd.f32 %v1052, %v184
    %v1079 = vrot.slane %v1077, 1
    %1080 = vrot.lane.b32.xlu0 %v1077, 64
    %v1081 = vpop.permute.xlu0 %1080
    %1082 = vrot.lane.b32.xlu0 %v1079, 64
    %v1083 = vpop.permute.xlu0 %1082
    %v1086 = vmul.f32 %v1074, %v1081
    %v1087 = vmul.f32 %v1076, %v1083
    %1090 = vrot.lane.b32.xlu0 %v1086, 64
    %v1091 = vpop.permute.xlu0 %1090
    %1092 = vrot.lane.b32.xlu0 %v1087, 64
    %v1093 = vpop.permute.xlu0 %1092
    %v1096 = vadd.f32 %v1057, %v1091
    %v1097 = vadd.f32 %v1058, %v1093
    %v1098 = vtanh.pop %v1096
    %v1099 = vtanh.pop %v1097
    %v1100 = vsub.f32 1.0, %v1074
    %v1101 = vsub.f32 1.0, %v1076
    %1104 = vrot.lane.b32.xlu0 %v1098, 96
    %v1105 = vpop.permute.xlu0 %1104
    %1106 = vrot.lane.b32.xlu0 %v1099, 96
    %v1107 = vpop.permute.xlu0 %1106
    %v1110 = vmul.f32 %v1100, %v1105
    %v1111 = vmul.f32 %v1101, %v1107
    %v1112 = vmul.f32 %v1074, %v967
    %v1113 = vmul.f32 %v1076, %v968
    %v1114 = vadd.f32 %v1110, %v1112
    %v1115 = vadd.f32 %v1111, %v1113
    %1118 = vrot.lane.b32.xlu0 %v1114, 96
    %v1119 = vpop.permute.xlu0 %1118
    %1120 = vrot.lane.b32.xlu0 %v1115, 96
    %v1121 = vpop.permute.xlu0 %1120
    %1124 = vst.msk [vmem:[#allocation8 + $0x6] sm:$0x1] %vm240, %v1119
    %1125 = vst.msk [vmem:[#allocation8 + $0xe] sm:$0x1] %vm240, %v1121
    %v1126 = vrot.slane %v1115, 7
    %v1127 = vsel %vm244, %v1126, %v1114
    %1128 = vrot.lane.b32.xlu0 %v1127, 96
    %v1129 = vpop.permute.xlu0 %1128
    %v1130 = vsel %vm76, %v1129, 0
    %1132 = vmatprep.subr.mxu0 0.0
    %1133 = vmatpush1.msra.mxu0 0.0
    %1134 = vmatprep.subr.mxu0 0.0
    %1135 = vmatpush1.msra.mxu0 0.0
    %1136 = vmatprep.subr.mxu0 0.0
    %1137 = vmatpush1.msra.mxu0 0.0
    %1138 = vmatprep.subr.mxu0 0.0
    %1139 = vmatpush1.msra.mxu0 0.0
    %1140 = vmatprep.subr.mxu0 0.0
    %1141 = vmatpush1.msra.mxu0 0.0
    %1142 = vmatprep.subr.mxu0 0.0
    %1143 = vmatpush1.msra.mxu0 0.0
    %1144 = vmatprep.subr.mxu0 0.0
    %1145 = vmatpush1.msra.mxu0 0.0
    %1146 = vmatprep.subr.mxu0 0.0
    %1147 = vmatpush1.msra.mxu0 0.0
    %1148 = vmatprep.subr.mxu0 0.0
    %1149 = vmatpush1.msra.mxu0 0.0
    %1150 = vmatprep.subr.mxu0 0.0
    %1151 = vmatpush1.msra.mxu0 0.0
    %1152 = vmatprep.subr.mxu0 0.0
    %1153 = vmatpush1.msra.mxu0 0.0
    %1154 = vmatprep.subr.mxu0 0.0
    %1155 = vmatpush1.msra.mxu0 0.0
    %1156 = vmatprep.subr.mxu0 0.0
    %1157 = vmatpush1.msra.mxu0 %v72
    %1158 = vmatprep.subr.mxu0 0.0
    %1159 = vmatpush1.msra.mxu0 %v71
    %1160 = vmatprep.subr.mxu0 0.0
    %1161 = vmatpush1.msra.mxu0 %v70
    %1162 = vmatprep.subr.mxu0 0.0
    %1163 = vmatpush1.msra.mxu0 %v69
    %1164 = vmatprep.subr.mxu0 0.0
    %1165 = vmatpush2.msra.mxu0 0.0
    %1166 = vmatprep.subr.mxu0 0.0
    %1167 = vmatpush2.msra.mxu0 0.0
    %1168 = vmatprep.subr.mxu0 0.0
    %1169 = vmatpush2.msra.mxu0 0.0
    %1170 = vmatprep.subr.mxu0 0.0
    %1171 = vmatpush2.msra.mxu0 0.0
    %1172 = vmatprep.subr.mxu0 0.0
    %1173 = vmatpush2.msra.mxu0 0.0
    %1174 = vmatprep.subr.mxu0 0.0
    %1175 = vmatpush2.msra.mxu0 0.0
    %1176 = vmatprep.subr.mxu0 0.0
    %1177 = vmatpush2.msra.mxu0 0.0
    %1178 = vmatprep.subr.mxu0 0.0
    %1179 = vmatpush2.msra.mxu0 0.0
    %1180 = vmatprep.subr.mxu0 0.0
    %1181 = vmatpush2.msra.mxu0 0.0
    %1182 = vmatprep.subr.mxu0 0.0
    %1183 = vmatpush2.msra.mxu0 0.0
    %1184 = vmatprep.subr.mxu0 0.0
    %1185 = vmatpush2.msra.mxu0 0.0
    %1186 = vmatprep.subr.mxu0 0.0
    %1187 = vmatpush2.msra.mxu0 0.0
    %1188 = vmatprep.subr.mxu0 0.0
    %1189 = vmatpush2.msra.mxu0 0.0
    %1190 = vmatprep.subr.mxu0 0.0
    %1191 = vmatpush2.msra.mxu0 0.0
    %1192 = vmatprep.subr.mxu0 0.0
    %1193 = vmatpush2.msra.mxu0 0.0
    %1194 = vmatprep.subr.mxu0 0.0
    %1195 = vmatpush2.msra.mxu0 0.0
    %1196 = vmatprep.mubr.f32.mxu0 0.0
    %1197 = vmatmul.mubr.f32.gmra.mxu0 %v1130
    %v1198 = vpop.f32.mrf.mxu0
    %v1199 = vadd.f32 0.0, %v1198
    %v1200 = vpop.f32.mrf.mxu0
    %1201 = vdwg.mxu0
    %v1202 = vld [vmem:[#allocation3 + $0x7] sm:$0x1]
    %v1203 = vld [vmem:[#allocation3 + $0xf] sm:$0x1]
    %v1204 = vadd.f32 %v1202, %v156
    %v1205 = vadd.f32 %v1203, %v156
    %v1207 = vrot.slane %v1199, 1
    %v1210 = vadd.f32 %v1204, %v1199
    %v1211 = vadd.f32 %v1205, %v1207
    %v1212 = vxor.u32 %v1210, 2147483648
    %v1213 = vxor.u32 %v1211, 2147483648
    %v1214 = vmul.f32 %v1212, 1.442695
    %v1215 = vpow.pop %v1214
    %v1216 = vmul.f32 %v1213, 1.442695
    %v1217 = vpow.pop %v1216
    %v1218 = vadd.f32 %v1215, 1.0
    %v1219 = vadd.f32 %v1217, 1.0
    %v1220 = vrcp.pop %v1218
    %v1221 = vmul.f32 1.0, %v1220
    %v1222 = vrcp.pop %v1219
    %v1223 = vmul.f32 1.0, %v1222
    %v1224 = vadd.f32 %v1199, %v184
    %v1226 = vrot.slane %v1224, 1
    %1227 = vrot.lane.b32.xlu0 %v1224, 64
    %v1228 = vpop.permute.xlu0 %1227
    %1229 = vrot.lane.b32.xlu0 %v1226, 64
    %v1230 = vpop.permute.xlu0 %1229
    %v1233 = vmul.f32 %v1221, %v1228
    %v1234 = vmul.f32 %v1223, %v1230
    %1237 = vrot.lane.b32.xlu0 %v1233, 64
    %v1238 = vpop.permute.xlu0 %1237
    %1239 = vrot.lane.b32.xlu0 %v1234, 64
    %v1240 = vpop.permute.xlu0 %1239
    %v1243 = vadd.f32 %v1204, %v1238
    %v1244 = vadd.f32 %v1205, %v1240
    %v1245 = vtanh.pop %v1243
    %v1246 = vtanh.pop %v1244
    %v1247 = vsub.f32 1.0, %v1221
    %v1248 = vsub.f32 1.0, %v1223
    %1251 = vrot.lane.b32.xlu0 %v1245, 96
    %v1252 = vpop.permute.xlu0 %1251
    %1253 = vrot.lane.b32.xlu0 %v1246, 96
    %v1254 = vpop.permute.xlu0 %1253
    %v1257 = vmul.f32 %v1247, %v1252
    %v1258 = vmul.f32 %v1248, %v1254
    %v1259 = vmul.f32 %v1221, %v1114
    %v1260 = vmul.f32 %v1223, %v1115
    %v1261 = vadd.f32 %v1257, %v1259
    %v1262 = vadd.f32 %v1258, %v1260
    %1265 = vrot.lane.b32.xlu0 %v1261, 96
    %v1266 = vpop.permute.xlu0 %1265
    %1267 = vrot.lane.b32.xlu0 %v1262, 96
    %v1268 = vpop.permute.xlu0 %1267
    %1271 = vst.msk [vmem:[#allocation8 + $0x7] sm:$0x1] %vm240, %v1266
    %1272 = vst.msk [vmem:[#allocation8 + $0xf] sm:$0x1] %vm240, %v1268
    %v1273 = vrot.slane %v1262, 7
    %v1274 = vsel %vm244, %v1273, %v1261
    %1275 = vrot.lane.b32.xlu0 %v1274, 96
    %v1276 = vpop.permute.xlu0 %1275
    %vm1278 = vcmask 254976
    %1279 = vst.msk [vmem:[#allocation2] sm:$0x3] %vm1278, %v1276
    // Predicated region
    $region30: #{tpu_custom_call.1} parent=1 // pred_check
      %p1280 = pneg %p63
    $region31: #{tpu_custom_call.1} parent=1 // pred_check_branch
      %1282 = sbr.rel (%p1280) target = $region33
    $region32: #{tpu_custom_call.1} parent=1 // pred_region
      %v1283 = vld [vmem:[#allocation2] sm:$0x3]
      %1284 = vst.msk [vmem:[#allocation9] sm:$0x3] %vm1278, %v1283
    $region33: #{tpu_custom_call.1} parent=1 // pred_fallthru
      _
    // Predicated region
    $region34: #{tpu_custom_call.1} parent=1 // pred_check
      _
    $region35: #{tpu_custom_call.1} parent=1 // pred_check_branch
      %1286 = sbr.rel (0) target = $region37
    $region36: #{tpu_custom_call.1} parent=1 // pred_region
      %s1287 = smul.u32 0, 2
      %s1288 = ssub.s32 0, %s1287
      %s1289 = smul.u32 0, %s1288
      %s1290 = sadd.s32 0, %s1289
      %s1292 = ssub.s32 256, 256
      %1293 = vsyncadd [#allocation5], %s1292
      %s1294 = smul.addr %s1290, 128
      %s1295 = scalar_lea.hbm %s4, %s1294
      %s1296 = sshll.u32 [#allocation8], 4
      %s1297 = int_to_ptr.vmem [resolvable:$true] %s1296
      %1302 = dma.vmem_to_hbm [thread:$0]  %s1297, 256, %s1295, [#allocation5], 128, 128, 8
    $region37: #{tpu_custom_call.1} parent=1 // pred_fallthru
      _
    // Predicated region
    $region38: #{tpu_custom_call.1} parent=1 // pred_check
      _
    $region39: #{tpu_custom_call.1} parent=1 // pred_check_branch
      %1304 = sbr.rel (0) target = $region41
    $region40: #{tpu_custom_call.1} parent=1 // pred_region
      %s1306 = ssub.s32 32, 32
      %1307 = vsyncadd [#allocation10], %s1306
      %s1309 = sshll.u32 [#allocation9], 4
      %s1310 = int_to_ptr.vmem [resolvable:$true] %s1309
      %1312 = dma.vmem_to_hbm [thread:$0]  %s1310, 32, %s5, [#allocation10]
    $region41: #{tpu_custom_call.1} parent=1 // pred_fallthru
      _
    // Predicated region
    $region42: #{tpu_custom_call.1} parent=1 // pred_check
      _
    $region43: #{tpu_custom_call.1} parent=1 // pred_check_branch
      %1314 = sbr.rel (0) target = $region45
    $region44: #{tpu_custom_call.1} parent=1 // pred_region
      %1315 = dma.done [#allocation5], 256
    $region45: #{tpu_custom_call.1} parent=1 // pred_fallthru
      _
    // Predicated region
    $region46: #{tpu_custom_call.1} parent=1 // pred_check
      _
    $region47: #{tpu_custom_call.1} parent=1 // pred_check_branch
      %1317 = sbr.rel (0) target = $region49
    $region48: #{tpu_custom_call.1} parent=1 // pred_region
      %1318 = dma.done [#allocation10], 32
    $region49: #{tpu_custom_call.1} parent=1 // pred_fallthru
      _
    %1319 = vsyncpa [#allocation4], 1
    %1320 = vsyncpa [#allocation7], 1
    %1321 = vsyncpa [#allocation5], 1
    %1322 = vsyncpa [#allocation10], 1

</llo_original>
